<compile_context>
chip_gen: v7x
topology: tpu7x:2x2x1
jax: 0.10.0
libtpu: 0.0.40
codegen_flags: <defaults>
</compile_context>

<pallas_src>
import functools
import math

import jax
import jax.numpy as jnp
import numpy as np
from jax.experimental import pallas as pl
from jax.experimental.pallas import tpu as pltpu

NEG_INF = -1e30   # large finite negative: fully-masked rows stay NaN-free


# ---------------------------------------------------------------------------
# In-kernel helpers (operate on loaded VMEM values; stats in f32)
# ---------------------------------------------------------------------------
def _layer_norm(v, w, b, eps=1e-6):
    # BertLayerNorm: biased variance, eps inside sqrt
    u = jnp.mean(v, axis=-1, keepdims=True)
    s = jnp.mean((v - u) ** 2, axis=-1, keepdims=True)
    return (v - u) * jax.lax.rsqrt(s + eps) * w + b


def _gelu(x):
    # BERT tanh-approximation GeLU (matches the repo's custom GeLU module)
    return 0.5 * x * (1.0 + jnp.tanh(math.sqrt(2.0 / math.pi)
                                     * (x + 0.044715 * x * x * x)))


def _softmax(s):
    # last-axis softmax; divide goes to the EUP via approx reciprocal
    m = jnp.max(s, axis=-1, keepdims=True)
    e = jnp.exp(s - m)
    denom = jnp.sum(e, axis=-1, keepdims=True)
    return e * pl.reciprocal(denom, approx=True)


def _attention(q, k, v, bias, wo, bo, num_heads, cdt):
    """Multi-head attention core.

    q: [Bb, Tq, D] f32 (already projected; 1/sqrt(hd) folded into weights),
    k/v: [Bb, Tk, D] f32 (already projected),
    bias: additive mask [Bb|1, Tq|1, Tk] (0 / -1e30), reused by every head.
    Per-head contexts are concatenated along lanes and projected with ONE
    [Bb*Tq, D] x [D, D] matmul.  Returns [Bb*Tq, D] f32.
    """
    Bb, Tq, D = q.shape
    hd = D // num_heads

    ctx_parts = []
    for h in range(num_heads):                      # static unroll over heads
        sl = slice(h * hd, (h + 1) * hd)
        qh = q[:, :, sl].astype(cdt)
        kh = k[:, :, sl].astype(cdt)
        vh = v[:, :, sl].astype(cdt)
        s = jnp.einsum("bqd,bkd->bqk", qh, kh,
                       preferred_element_type=jnp.float32)
        p = _softmax(s + bias)                      # bias hoisted out of loop
        ctx_parts.append(jnp.einsum("bqk,bkd->bqd", p.astype(cdt), vh,
                                    preferred_element_type=jnp.float32))
    ctx = jnp.concatenate(ctx_parts, axis=-1).reshape(Bb * Tq, D)
    return jnp.dot(ctx.astype(cdt), wo, preferred_element_type=jnp.float32) + bo


# ---------------------------------------------------------------------------
# The Pallas kernel: one grid step == one block of batch elements.
# ---------------------------------------------------------------------------
def decoder_layer_kernel(num_heads, cdt, causal, *args):
    o_ref = args[-1]
    if causal:
        x_ref, mem_ref, smask_ref = args[:3]
        tmask_ref = None
        wrefs = args[3:-1]
    else:
        x_ref, mem_ref, tmask_ref, smask_ref = args[:4]
        wrefs = args[4:-1]
    (xln_w, xln_b,
     sa_wqkv, sa_bqkv, sa_wo, sa_bo,
     dln_w, dln_b,
     ca_wq, ca_bq, ca_wkv, ca_bkv, ca_wo, ca_bo,
     ffln_w, ffln_b, w1, b1, w2, b2) = wrefs

    Bb, T, D = x_ref.shape
    S = mem_ref.shape[1]

    x2 = x_ref[...].astype(jnp.float32).reshape(Bb * T, D)      # [Bb*T, D]
    mem2 = mem_ref[...].astype(jnp.float32).reshape(Bb * S, D)  # [Bb*S, D]

    # Additive mask biases, computed ONCE and reused for every head.
    if causal:
        # Build the causal bias in-kernel (no [B,T,T] HBM traffic / VMEM block)
        row = jax.lax.broadcasted_iota(jnp.int32, (T, T), 0)
        col = jax.lax.broadcasted_iota(jnp.int32, (T, T), 1)
        tbias = jnp.where(row >= col, 0.0, NEG_INF)[None, :, :]   # [1, T, T]
    else:
        tbias = jnp.where(tmask_ref[...] > 0, 0.0, NEG_INF)       # [Bb, T, T]
    sbias = jnp.where(smask_ref[...] > 0, 0.0, NEG_INF)           # [Bb, 1, S]

    # ---- 1) self-attention: LN -> fused QKV -> MHA -> residual -----------
    x_norm = _layer_norm(x2, xln_w[...], xln_b[...])
    qkv = jnp.dot(x_norm.astype(cdt), sa_wqkv[...],
                  preferred_element_type=jnp.float32) + sa_bqkv[...]
    q = qkv[:, :D].reshape(Bb, T, D)
    k = qkv[:, D:2 * D].reshape(Bb, T, D)
    v = qkv[:, 2 * D:].reshape(Bb, T, D)
    h1 = _attention(q, k, v, tbias, sa_wo[...], sa_bo[...], num_heads, cdt)
    h1 = h1 + x2                                  # dropout == identity (eval)

    # ---- 2) cross-attention: LN(q) ; fused KV from memory ; residual ------
    h1_norm = _layer_norm(h1, dln_w[...], dln_b[...])
    q = (jnp.dot(h1_norm.astype(cdt), ca_wq[...],
                 preferred_element_type=jnp.float32) + ca_bq[...]).reshape(Bb, T, D)
    kv = jnp.dot(mem2.astype(cdt), ca_wkv[...],
                 preferred_element_type=jnp.float32) + ca_bkv[...]
    k = kv[:, :D].reshape(Bb, S, D)
    v = kv[:, D:].reshape(Bb, S, D)
    h2 = _attention(q, k, v, sbias, ca_wo[...], ca_bo[...], num_heads, cdt)
    ff_in = h2 + h1

    # ---- 3) PositionwiseFeedForward: LN -> Linear -> GeLU -> Linear -> +res
    ff_norm = _layer_norm(ff_in, ffln_w[...], ffln_b[...])
    hid = _gelu(jnp.dot(ff_norm.astype(cdt), w1[...],
                        preferred_element_type=jnp.float32) + b1[...])
    ff_out = jnp.dot(hid.astype(cdt), w2[...],
                     preferred_element_type=jnp.float32) + b2[...]

    o_ref[...] = (ff_out + ff_in).reshape(Bb, T, D).astype(o_ref.dtype)


# ---------------------------------------------------------------------------
# Wrapper: weight fusion (QKV / KV / scale), dtype casting, BlockSpecs, grid.
# ---------------------------------------------------------------------------
WEIGHT_ORDER = [
    "xln_w", "xln_b",
    "sa_wqkv", "sa_bqkv", "sa_wo", "sa_bo",
    "dln_w", "dln_b",
    "ca_wq", "ca_bq", "ca_wkv", "ca_bkv", "ca_wo", "ca_bo",
    "ffln_w", "ffln_b", "w1", "b1", "w2", "b2",
]
_MATMUL_WEIGHTS = {"sa_wqkv", "sa_wo", "ca_wq", "ca_wkv", "ca_wo", "w1", "w2"}


def _fuse_params(p, matmul_dtype, num_heads):
    D = p["sa_wq"].shape[0]
    scale = 1.0 / math.sqrt(D // num_heads)      # folded into Q projections
    fused = {
        "xln_w": p["xln_w"], "xln_b": p["xln_b"],
        "sa_wqkv": jnp.concatenate([p["sa_wq"] * scale, p["sa_wk"], p["sa_wv"]], axis=1),
        "sa_bqkv": jnp.concatenate([p["sa_bq"] * scale, p["sa_bk"], p["sa_bv"]], axis=1),
        "sa_wo": p["sa_wo"], "sa_bo": p["sa_bo"],
        "dln_w": p["dln_w"], "dln_b": p["dln_b"],
        "ca_wq": p["ca_wq"] * scale, "ca_bq": p["ca_bq"] * scale,
        "ca_wkv": jnp.concatenate([p["ca_wk"], p["ca_wv"]], axis=1),
        "ca_bkv": jnp.concatenate([p["ca_bk"], p["ca_bv"]], axis=1),
        "ca_wo": p["ca_wo"], "ca_bo": p["ca_bo"],
        "ffln_w": p["ffln_w"], "ffln_b": p["ffln_b"],
        "w1": p["w1"], "b1": p["b1"], "w2": p["w2"], "b2": p["b2"],
    }
    for n in _MATMUL_WEIGHTS:      # only matmul operands change dtype
        fused[n] = fused[n].astype(matmul_dtype)
    return [fused[n] for n in WEIGHT_ORDER]


def _estimate_vmem_bytes(block_b, T, S, D, FF, weights, in_itemsize):
    """Rough per-step VMEM footprint (weights double-buffered, f32 temps)."""
    rows = block_b * T
    weight_bytes = sum(int(np.prod(w.shape)) * w.dtype.itemsize for w in weights)
    act_bytes = 4 * (rows * 3 * D          # qkv
                     + rows * FF           # ffn hidden
                     + 8 * rows * D        # misc f32 temps
                     + block_b * T * T     # self scores / bias
                     + block_b * T * S)    # cross scores
    io_bytes = 2 * in_itemsize * block_b * (2 * T * D + S * D + T * T + S)
    return 2 * weight_bytes + act_bytes + io_bytes


def _cost_estimate(B, T, S, D, FF, H, weights, in_itemsize):
    flops = 2 * B * (T * D * 3 * D          # self qkv
                     + 2 * T * T * D        # self scores + ctx
                     + 2 * T * D * D        # self out proj + cross q
                     + S * D * 2 * D        # cross kv
                     + 2 * T * S * D        # cross scores + ctx
                     + T * D * D            # cross out proj
                     + 2 * T * D * FF)      # ffn
    transcendentals = B * (H * T * T + H * T * S    # exp
                           + T * FF                 # tanh (gelu)
                           + 3 * T)                 # rsqrt (3 LayerNorms)
    weight_bytes = sum(int(np.prod(w.shape)) * w.dtype.itemsize for w in weights)
    bytes_accessed = (in_itemsize * B * (3 * T * D + S * D + T * T + S)
                      + weight_bytes)
    return pl.CostEstimate(flops=int(flops),
                           transcendentals=int(transcendentals),
                           bytes_accessed=int(bytes_accessed))


def transformer_decoder_layer(x, memory, trg_mask, src_mask, params, num_heads,
                              *, block_b=None, matmul_dtype=jnp.bfloat16,
                              causal_trg_mask=False):
    B, T, D = x.shape
    S = memory.shape[1]
    FF = params["w1"].shape[1]
    if block_b is None:
        # grid >= 2 when possible so the "parallel" batch axis can be sharded
        # across v7x's two TensorCores (neutral on v5e/v6e); also halves the
        # per-step activation footprint.
        block_b = B // 2 if (B % 2 == 0 and B >= 2) else B
    assert B % block_b == 0, "B must be divisible by block_b"

    weights = _fuse_params(params, matmul_dtype, num_heads)   # all 2-D

    inputs = [x, memory]
    in_specs = [
        pl.BlockSpec((block_b, T, D), lambda b: (b, 0, 0)),   # x
        pl.BlockSpec((block_b, S, D), lambda b: (b, 0, 0)),   # memory
    ]
    if not causal_trg_mask:
        inputs.append(trg_mask)
        in_specs.append(pl.BlockSpec((block_b, T, T), lambda b: (b, 0, 0)))
    inputs.append(src_mask)
    in_specs.append(pl.BlockSpec((block_b, 1, S), lambda b: (b, 0, 0)))
    in_specs += [pl.BlockSpec(w.shape, lambda b: (0, 0)) for w in weights]
    inputs += weights

    in_itemsize = x.dtype.itemsize
    est = _estimate_vmem_bytes(block_b, T, S, D, FF, weights, in_itemsize)
    # Only raise the scoped-VMEM limit when the footprint needs it (demo sizes
    # stay on the compiler default).  NOTE: v7x physical VMEM is 64 MiB/core —
    # shrink block_b there rather than raising past it.
    vmem_limit = None if est <= (32 << 20) else int(min(est * 5 // 4, 128 << 20))

    return pl.pallas_call(
        functools.partial(decoder_layer_kernel, num_heads, matmul_dtype,
                          causal_trg_mask),
        out_shape=jax.ShapeDtypeStruct((B, T, D), x.dtype),
        grid=(B // block_b,),
        in_specs=in_specs,
        out_specs=pl.BlockSpec((block_b, T, D), lambda b: (b, 0, 0)),
        compiler_params=pltpu.CompilerParams(
            dimension_semantics=("parallel",),       # batch blocks independent
            vmem_limit_bytes=vmem_limit),
        cost_estimate=_cost_estimate(B, T, S, D, FF, num_heads, weights,
                                     in_itemsize),
    )(*inputs)


# ---------------------------------------------------------------------------
# Pure-JAX reference (mirrors the PyTorch forward) for correctness checking.
# ---------------------------------------------------------------------------
def reference(x, memory, trg_mask, src_mask, p, H):
    def ln(v, w, b):
        u = v.mean(-1, keepdims=True)
        s = ((v - u) ** 2).mean(-1, keepdims=True)
        return (v - u) / jnp.sqrt(s + 1e-6) * w + b

    def gelu(v):
        return 0.5 * v * (1 + jnp.tanh(np.sqrt(2 / np.pi) * (v + 0.044715 * v ** 3)))

    def mha(q_in, k_in, v_in, mask, wq, bq, wk, bk, wv, bv, wo, bo):
        B, Tq, D = q_in.shape
        Tk = k_in.shape[1]
        hd = D // H
        q = (q_in @ wq + bq).reshape(B, Tq, H, hd).transpose(0, 2, 1, 3) / np.sqrt(hd)
        k = (k_in @ wk + bk).reshape(B, Tk, H, hd).transpose(0, 2, 1, 3)
        v = (v_in @ wv + bv).reshape(B, Tk, H, hd).transpose(0, 2, 1, 3)
        s = jnp.einsum("bhqd,bhkd->bhqk", q, k)
        s = jnp.where(mask[:, None] > 0, s, -jnp.inf)
        a = jax.nn.softmax(s, -1)
        ctx = jnp.einsum("bhqk,bhkd->bhqd", a, v).transpose(0, 2, 1, 3).reshape(B, Tq, D)
        return ctx @ wo + bo

    x_norm = ln(x, p["xln_w"], p["xln_b"])
    h1 = mha(x_norm, x_norm, x_norm, trg_mask,
             p["sa_wq"], p["sa_bq"], p["sa_wk"], p["sa_bk"],
             p["sa_wv"], p["sa_bv"], p["sa_wo"], p["sa_bo"]) + x
    h1_norm = ln(h1, p["dln_w"], p["dln_b"])
    h2 = mha(h1_norm, memory, memory, src_mask,
             p["ca_wq"], p["ca_bq"], p["ca_wk"], p["ca_bk"],
             p["ca_wv"], p["ca_bv"], p["ca_wo"], p["ca_bo"])
    ff_in = h2 + h1
    ff_norm = ln(ff_in, p["ffln_w"], p["ffln_b"])
    return gelu(ff_norm @ p["w1"] + p["b1"]) @ p["w2"] + p["b2"] + ff_in


# ---------------------------------------------------------------------------
if __name__ == "__main__":
    B, T, S, D, H, FF = 2, 8, 8, 32, 4, 64

    key = jax.random.PRNGKey(0)
    keys = iter(jax.random.split(key, 64))

    def nrm(shape, scale=0.05):
        return (scale * jax.random.normal(next(keys), shape)).astype(jnp.float32)

    def ln_w(n):
        return 1.0 + nrm((1, n), 0.01)

    def ln_b(n):
        return nrm((1, n), 0.01)

    def lin(i, o):
        return nrm((i, o)), nrm((1, o))

    params = {}
    params["xln_w"], params["xln_b"] = ln_w(D), ln_b(D)
    for pre in ("sa", "ca"):
        for nm in ("q", "k", "v", "o"):
            w, b = lin(D, D)
            params[f"{pre}_w{nm}"] = w
            params[f"{pre}_b{nm}"] = b
    params["dln_w"], params["dln_b"] = ln_w(D), ln_b(D)
    params["ffln_w"], params["ffln_b"] = ln_w(D), ln_b(D)
    params["w1"], params["b1"] = lin(D, FF)
    params["w2"], params["b2"] = lin(FF, D)

    x = nrm((B, T, D), 1.0)
    memory = nrm((B, S, D), 1.0)
    trg_mask = jnp.asarray(
        np.broadcast_to(np.tril(np.ones((T, T), np.float32)), (B, T, T)))
    sm = np.ones((B, 1, S), np.float32)
    sm[1, 0, S - 2:] = 0.0          # exercise partial src-mask path
    src_mask = jnp.asarray(sm)

    ref = reference(x, memory, trg_mask, src_mask, params, H)

    # Default path: bf16 MXU operands, f32 accumulation, grid = B//(B//2) = 2.
    out = jax.block_until_ready(
        transformer_decoder_layer(x, memory, trg_mask, src_mask, params, H))
    np.testing.assert_allclose(np.asarray(out), np.asarray(ref),
                               rtol=5e-2, atol=5e-2)

    # f32 matmul-operand path (close PyTorch numerical parity).
    out_f32 = jax.block_until_ready(
        transformer_decoder_layer(x, memory, trg_mask, src_mask, params, H,
                                  matmul_dtype=jnp.float32))
    np.testing.assert_allclose(np.asarray(out_f32), np.asarray(ref),
                               rtol=2e-3, atol=2e-3)

    # In-kernel causal trg-mask path (the AR model's trg_mask is lower-tri).
    out_causal = jax.block_until_ready(
        transformer_decoder_layer(x, memory, trg_mask, src_mask, params, H,
                                  causal_trg_mask=True))
    np.testing.assert_allclose(np.asarray(out_causal), np.asarray(ref),
                               rtol=5e-2, atol=5e-2)

    print("KERNEL_OK")
</pallas_src>

<mosaic_0001>
module attributes {stable_mosaic.version = 11 : i64} {
  func.func @decoder_layer_kernel(%arg0: i32, %arg1: memref<1x8x32xf32, #tpu.memory_space<vmem>>, %arg2: memref<1x8x32xf32, #tpu.memory_space<vmem>>, %arg3: memref<1x8x8xf32, #tpu.memory_space<vmem>>, %arg4: memref<1x1x8xf32, #tpu.memory_space<vmem>>, %arg5: memref<1x32xf32, #tpu.memory_space<vmem>>, %arg6: memref<1x32xf32, #tpu.memory_space<vmem>>, %arg7: memref<32x96xbf16, #tpu.memory_space<vmem>>, %arg8: memref<1x96xf32, #tpu.memory_space<vmem>>, %arg9: memref<32x32xbf16, #tpu.memory_space<vmem>>, %arg10: memref<1x32xf32, #tpu.memory_space<vmem>>, %arg11: memref<1x32xf32, #tpu.memory_space<vmem>>, %arg12: memref<1x32xf32, #tpu.memory_space<vmem>>, %arg13: memref<32x32xbf16, #tpu.memory_space<vmem>>, %arg14: memref<1x32xf32, #tpu.memory_space<vmem>>, %arg15: memref<32x64xbf16, #tpu.memory_space<vmem>>, %arg16: memref<1x64xf32, #tpu.memory_space<vmem>>, %arg17: memref<32x32xbf16, #tpu.memory_space<vmem>>, %arg18: memref<1x32xf32, #tpu.memory_space<vmem>>, %arg19: memref<1x32xf32, #tpu.memory_space<vmem>>, %arg20: memref<1x32xf32, #tpu.memory_space<vmem>>, %arg21: memref<32x64xbf16, #tpu.memory_space<vmem>>, %arg22: memref<1x64xf32, #tpu.memory_space<vmem>>, %arg23: memref<64x32xbf16, #tpu.memory_space<vmem>>, %arg24: memref<1x32xf32, #tpu.memory_space<vmem>>, %arg25: memref<1x8x32xf32, #tpu.memory_space<vmem>>) attributes {dimension_semantics = [#tpu.dimension_semantics<parallel>], iteration_bounds = array<i64: 2>, scalar_prefetch = 0 : i64, scratch_operands = 0 : i64, tpu.core_type = #tpu.core_type<tc>, window_params = [{transform_indices = @transform_0, window_bounds = array<i64: 1, 8, 32>}, {transform_indices = @transform_1, window_bounds = array<i64: 1, 8, 32>}, {transform_indices = @transform_2, window_bounds = array<i64: 1, 8, 8>}, {transform_indices = @transform_3, window_bounds = array<i64: 1, 1, 8>}, {pipeline_mode = #tpu.pipeline_mode<synchronous>, transform_indices = @transform_4, window_bounds = array<i64: 1, 32>}, {pipeline_mode = #tpu.pipeline_mode<synchronous>, transform_indices = @transform_5, window_bounds = array<i64: 1, 32>}, {pipeline_mode = #tpu.pipeline_mode<synchronous>, transform_indices = @transform_6, window_bounds = array<i64: 32, 96>}, {pipeline_mode = #tpu.pipeline_mode<synchronous>, transform_indices = @transform_7, window_bounds = array<i64: 1, 96>}, {pipeline_mode = #tpu.pipeline_mode<synchronous>, transform_indices = @transform_8, window_bounds = array<i64: 32, 32>}, {pipeline_mode = #tpu.pipeline_mode<synchronous>, transform_indices = @transform_9, window_bounds = array<i64: 1, 32>}, {pipeline_mode = #tpu.pipeline_mode<synchronous>, transform_indices = @transform_10, window_bounds = array<i64: 1, 32>}, {pipeline_mode = #tpu.pipeline_mode<synchronous>, transform_indices = @transform_11, window_bounds = array<i64: 1, 32>}, {pipeline_mode = #tpu.pipeline_mode<synchronous>, transform_indices = @transform_12, window_bounds = array<i64: 32, 32>}, {pipeline_mode = #tpu.pipeline_mode<synchronous>, transform_indices = @transform_13, window_bounds = array<i64: 1, 32>}, {pipeline_mode = #tpu.pipeline_mode<synchronous>, transform_indices = @transform_14, window_bounds = array<i64: 32, 64>}, {pipeline_mode = #tpu.pipeline_mode<synchronous>, transform_indices = @transform_15, window_bounds = array<i64: 1, 64>}, {pipeline_mode = #tpu.pipeline_mode<synchronous>, transform_indices = @transform_16, window_bounds = array<i64: 32, 32>}, {pipeline_mode = #tpu.pipeline_mode<synchronous>, transform_indices = @transform_17, window_bounds = array<i64: 1, 32>}, {pipeline_mode = #tpu.pipeline_mode<synchronous>, transform_indices = @transform_18, window_bounds = array<i64: 1, 32>}, {pipeline_mode = #tpu.pipeline_mode<synchronous>, transform_indices = @transform_19, window_bounds = array<i64: 1, 32>}, {pipeline_mode = #tpu.pipeline_mode<synchronous>, transform_indices = @transform_20, window_bounds = array<i64: 32, 64>}, {pipeline_mode = #tpu.pipeline_mode<synchronous>, transform_indices = @transform_21, window_bounds = array<i64: 1, 64>}, {pipeline_mode = #tpu.pipeline_mode<synchronous>, transform_indices = @transform_22, window_bounds = array<i64: 64, 32>}, {pipeline_mode = #tpu.pipeline_mode<synchronous>, transform_indices = @transform_23, window_bounds = array<i64: 1, 32>}, {transform_indices = @transform_24, window_bounds = array<i64: 1, 8, 32>}]} {
    %c0 = arith.constant 0 : index
    %c0_0 = arith.constant 0 : index
    %c0_1 = arith.constant 0 : index
    %0 = vector.load %arg1[%c0, %c0_0, %c0_1] : memref<1x8x32xf32, #tpu.memory_space<vmem>>, vector<1x8x32xf32>
    %1 = vector.shape_cast %0 : vector<1x8x32xf32> to vector<8x32xf32>
    %c0_2 = arith.constant 0 : index
    %c0_3 = arith.constant 0 : index
    %c0_4 = arith.constant 0 : index
    %2 = vector.load %arg2[%c0_2, %c0_3, %c0_4] : memref<1x8x32xf32, #tpu.memory_space<vmem>>, vector<1x8x32xf32>
    %3 = vector.shape_cast %2 : vector<1x8x32xf32> to vector<8x32xf32>
    %c0_5 = arith.constant 0 : index
    %c0_6 = arith.constant 0 : index
    %c0_7 = arith.constant 0 : index
    %4 = vector.load %arg3[%c0_5, %c0_6, %c0_7] : memref<1x8x8xf32, #tpu.memory_space<vmem>>, vector<1x8x8xf32>
    %cst = arith.constant 0.000000e+00 : f32
    %5 = vector.broadcast %cst : f32 to vector<1x8x8xf32>
    %6 = arith.cmpf ogt, %4, %5 : vector<1x8x8xf32>
    %cst_8 = arith.constant 0.000000e+00 : f32
    %cst_9 = arith.constant -1.000000e+30 : f32
    %7 = vector.broadcast %cst_8 : f32 to vector<1x8x8xf32>
    %8 = vector.broadcast %cst_9 : f32 to vector<1x8x8xf32>
    %9 = arith.select %6, %7, %8 : vector<1x8x8xi1>, vector<1x8x8xf32>
    %c0_10 = arith.constant 0 : index
    %c0_11 = arith.constant 0 : index
    %c0_12 = arith.constant 0 : index
    %10 = vector.load %arg4[%c0_10, %c0_11, %c0_12] : memref<1x1x8xf32, #tpu.memory_space<vmem>>, vector<1x1x8xf32>
    %cst_13 = arith.constant 0.000000e+00 : f32
    %11 = vector.broadcast %cst_13 : f32 to vector<1x1x8xf32>
    %12 = arith.cmpf ogt, %10, %11 : vector<1x1x8xf32>
    %cst_14 = arith.constant 0.000000e+00 : f32
    %cst_15 = arith.constant -1.000000e+30 : f32
    %13 = vector.broadcast %cst_14 : f32 to vector<1x1x8xf32>
    %14 = vector.broadcast %cst_15 : f32 to vector<1x1x8xf32>
    %15 = arith.select %12, %13, %14 : vector<1x1x8xi1>, vector<1x1x8xf32>
    %c0_16 = arith.constant 0 : index
    %c0_17 = arith.constant 0 : index
    %16 = vector.load %arg5[%c0_16, %c0_17] : memref<1x32xf32, #tpu.memory_space<vmem>>, vector<1x32xf32>
    %c0_18 = arith.constant 0 : index
    %c0_19 = arith.constant 0 : index
    %17 = vector.load %arg6[%c0_18, %c0_19] : memref<1x32xf32, #tpu.memory_space<vmem>>, vector<1x32xf32>
    %cst_20 = arith.constant dense<0.000000e+00> : vector<8xf32>
    %18 = vector.multi_reduction <add>, %1, %cst_20 [1] : vector<8x32xf32> to vector<8xf32>
    %19 = vector.shape_cast %18 : vector<8xf32> to vector<8x1xf32>
    %cst_21 = arith.constant 3.200000e+01 : f32
    %20 = vector.broadcast %cst_21 : f32 to vector<8x1xf32>
    %21 = arith.divf %19, %20 : vector<8x1xf32>
    %22 = vector.broadcast %21 : vector<8x1xf32> to vector<8x32xf32>
    %23 = arith.subf %1, %22 : vector<8x32xf32>
    %24 = arith.mulf %23, %23 : vector<8x32xf32>
    %cst_22 = arith.constant dense<0.000000e+00> : vector<8xf32>
    %25 = vector.multi_reduction <add>, %24, %cst_22 [1] : vector<8x32xf32> to vector<8xf32>
    %26 = vector.shape_cast %25 : vector<8xf32> to vector<8x1xf32>
    %cst_23 = arith.constant 3.200000e+01 : f32
    %27 = vector.broadcast %cst_23 : f32 to vector<8x1xf32>
    %28 = arith.divf %26, %27 : vector<8x1xf32>
    %29 = vector.broadcast %21 : vector<8x1xf32> to vector<8x32xf32>
    %30 = arith.subf %1, %29 : vector<8x32xf32>
    %cst_24 = arith.constant 9.99999997E-7 : f32
    %31 = vector.broadcast %cst_24 : f32 to vector<8x1xf32>
    %32 = arith.addf %28, %31 : vector<8x1xf32>
    %33 = math.rsqrt %32 : vector<8x1xf32>
    %34 = vector.broadcast %33 : vector<8x1xf32> to vector<8x32xf32>
    %35 = arith.mulf %30, %34 : vector<8x32xf32>
    %36 = vector.broadcast %16 : vector<1x32xf32> to vector<8x32xf32>
    %37 = arith.mulf %35, %36 : vector<8x32xf32>
    %38 = vector.broadcast %17 : vector<1x32xf32> to vector<8x32xf32>
    %39 = arith.addf %37, %38 : vector<8x32xf32>
    %40 = arith.truncf %39 : vector<8x32xf32> to vector<8x32xbf16>
    %c0_25 = arith.constant 0 : index
    %c0_26 = arith.constant 0 : index
    %41 = vector.load %arg7[%c0_25, %c0_26] : memref<32x96xbf16, #tpu.memory_space<vmem>>, vector<32x96xbf16>
    %cst_27 = arith.constant dense<0.000000e+00> : vector<8x96xf32>
    %42 = tpu.matmul %40, %41, %cst_27 {dimension_numbers = #tpu.dot_dimension_numbers<[1], [0], [0], [1], [0, 0, 1, 1], [], []>} : vector<8x32xbf16>, vector<32x96xbf16>, vector<8x96xf32> -> vector<8x96xf32>
    %c0_28 = arith.constant 0 : index
    %c0_29 = arith.constant 0 : index
    %43 = vector.load %arg8[%c0_28, %c0_29] : memref<1x96xf32, #tpu.memory_space<vmem>>, vector<1x96xf32>
    %44 = vector.broadcast %43 : vector<1x96xf32> to vector<8x96xf32>
    %45 = arith.addf %42, %44 : vector<8x96xf32>
    %46 = vector.extract_strided_slice %45 {offsets = [0, 0], sizes = [8, 32], strides = [1, 1]} : vector<8x96xf32> to vector<8x32xf32>
    %47 = vector.shape_cast %46 : vector<8x32xf32> to vector<1x8x32xf32>
    %48 = vector.extract_strided_slice %45 {offsets = [0, 32], sizes = [8, 32], strides = [1, 1]} : vector<8x96xf32> to vector<8x32xf32>
    %49 = vector.shape_cast %48 : vector<8x32xf32> to vector<1x8x32xf32>
    %50 = vector.extract_strided_slice %45 {offsets = [0, 64], sizes = [8, 32], strides = [1, 1]} : vector<8x96xf32> to vector<8x32xf32>
    %51 = vector.shape_cast %50 : vector<8x32xf32> to vector<1x8x32xf32>
    %c0_30 = arith.constant 0 : index
    %c0_31 = arith.constant 0 : index
    %52 = vector.load %arg9[%c0_30, %c0_31] : memref<32x32xbf16, #tpu.memory_space<vmem>>, vector<32x32xbf16>
    %c0_32 = arith.constant 0 : index
    %c0_33 = arith.constant 0 : index
    %53 = vector.load %arg10[%c0_32, %c0_33] : memref<1x32xf32, #tpu.memory_space<vmem>>, vector<1x32xf32>
    %54 = vector.extract_strided_slice %47 {offsets = [0, 0, 0], sizes = [1, 8, 8], strides = [1, 1, 1]} : vector<1x8x32xf32> to vector<1x8x8xf32>
    %55 = arith.truncf %54 : vector<1x8x8xf32> to vector<1x8x8xbf16>
    %56 = vector.extract_strided_slice %49 {offsets = [0, 0, 0], sizes = [1, 8, 8], strides = [1, 1, 1]} : vector<1x8x32xf32> to vector<1x8x8xf32>
    %57 = arith.truncf %56 : vector<1x8x8xf32> to vector<1x8x8xbf16>
    %58 = vector.extract_strided_slice %51 {offsets = [0, 0, 0], sizes = [1, 8, 8], strides = [1, 1, 1]} : vector<1x8x32xf32> to vector<1x8x8xf32>
    %59 = arith.truncf %58 : vector<1x8x8xf32> to vector<1x8x8xbf16>
    "tpu.trace_start"() <{level = 10 : i32, message = "bqd,bkd->bqk"}> : () -> ()
    %cst_34 = arith.constant dense<0.000000e+00> : vector<1x8x8xf32>
    %60 = tpu.matmul %55, %57, %cst_34 {dimension_numbers = #tpu.dot_dimension_numbers<[2], [2], [1], [1], [0, 0, 0, 1, 1, 1], [0], [0]>} : vector<1x8x8xbf16>, vector<1x8x8xbf16>, vector<1x8x8xf32> -> vector<1x8x8xf32>
    "tpu.trace_stop"() : () -> ()
    %61 = arith.addf %60, %9 : vector<1x8x8xf32>
    %cst_35 = arith.constant dense<0xFF800000> : vector<1x8xf32>
    %62 = vector.multi_reduction <maximumf>, %61, %cst_35 [2] : vector<1x8x8xf32> to vector<1x8xf32>
    %63 = vector.shape_cast %62 : vector<1x8xf32> to vector<1x8x1xf32>
    %64 = vector.broadcast %63 : vector<1x8x1xf32> to vector<1x8x8xf32>
    %65 = arith.subf %61, %64 : vector<1x8x8xf32>
    %66 = math.exp %65 : vector<1x8x8xf32>
    %cst_36 = arith.constant dense<0.000000e+00> : vector<1x8xf32>
    %67 = vector.multi_reduction <add>, %66, %cst_36 [2] : vector<1x8x8xf32> to vector<1x8xf32>
    %68 = vector.shape_cast %67 : vector<1x8xf32> to vector<1x8x1xf32>
    %69 = tpu.reciprocal %68 {approx = true} : vector<1x8x1xf32> -> vector<1x8x1xf32>
    %70 = vector.broadcast %69 : vector<1x8x1xf32> to vector<1x8x8xf32>
    %71 = arith.mulf %66, %70 : vector<1x8x8xf32>
    %72 = arith.truncf %71 : vector<1x8x8xf32> to vector<1x8x8xbf16>
    "tpu.trace_start"() <{level = 10 : i32, message = "bqk,bkd->bqd"}> : () -> ()
    %cst_37 = arith.constant dense<0.000000e+00> : vector<1x8x8xf32>
    %73 = tpu.matmul %72, %59, %cst_37 {dimension_numbers = #tpu.dot_dimension_numbers<[2], [1], [1], [2], [0, 0, 0, 1, 1, 2], [0], [0]>} : vector<1x8x8xbf16>, vector<1x8x8xbf16>, vector<1x8x8xf32> -> vector<1x8x8xf32>
    "tpu.trace_stop"() : () -> ()
    %74 = vector.extract_strided_slice %47 {offsets = [0, 0, 8], sizes = [1, 8, 8], strides = [1, 1, 1]} : vector<1x8x32xf32> to vector<1x8x8xf32>
    %75 = arith.truncf %74 : vector<1x8x8xf32> to vector<1x8x8xbf16>
    %76 = vector.extract_strided_slice %49 {offsets = [0, 0, 8], sizes = [1, 8, 8], strides = [1, 1, 1]} : vector<1x8x32xf32> to vector<1x8x8xf32>
    %77 = arith.truncf %76 : vector<1x8x8xf32> to vector<1x8x8xbf16>
    %78 = vector.extract_strided_slice %51 {offsets = [0, 0, 8], sizes = [1, 8, 8], strides = [1, 1, 1]} : vector<1x8x32xf32> to vector<1x8x8xf32>
    %79 = arith.truncf %78 : vector<1x8x8xf32> to vector<1x8x8xbf16>
    "tpu.trace_start"() <{level = 10 : i32, message = "bqd,bkd->bqk"}> : () -> ()
    %cst_38 = arith.constant dense<0.000000e+00> : vector<1x8x8xf32>
    %80 = tpu.matmul %75, %77, %cst_38 {dimension_numbers = #tpu.dot_dimension_numbers<[2], [2], [1], [1], [0, 0, 0, 1, 1, 1], [0], [0]>} : vector<1x8x8xbf16>, vector<1x8x8xbf16>, vector<1x8x8xf32> -> vector<1x8x8xf32>
    "tpu.trace_stop"() : () -> ()
    %81 = arith.addf %80, %9 : vector<1x8x8xf32>
    %cst_39 = arith.constant dense<0xFF800000> : vector<1x8xf32>
    %82 = vector.multi_reduction <maximumf>, %81, %cst_39 [2] : vector<1x8x8xf32> to vector<1x8xf32>
    %83 = vector.shape_cast %82 : vector<1x8xf32> to vector<1x8x1xf32>
    %84 = vector.broadcast %83 : vector<1x8x1xf32> to vector<1x8x8xf32>
    %85 = arith.subf %81, %84 : vector<1x8x8xf32>
    %86 = math.exp %85 : vector<1x8x8xf32>
    %cst_40 = arith.constant dense<0.000000e+00> : vector<1x8xf32>
    %87 = vector.multi_reduction <add>, %86, %cst_40 [2] : vector<1x8x8xf32> to vector<1x8xf32>
    %88 = vector.shape_cast %87 : vector<1x8xf32> to vector<1x8x1xf32>
    %89 = tpu.reciprocal %88 {approx = true} : vector<1x8x1xf32> -> vector<1x8x1xf32>
    %90 = vector.broadcast %89 : vector<1x8x1xf32> to vector<1x8x8xf32>
    %91 = arith.mulf %86, %90 : vector<1x8x8xf32>
    %92 = arith.truncf %91 : vector<1x8x8xf32> to vector<1x8x8xbf16>
    "tpu.trace_start"() <{level = 10 : i32, message = "bqk,bkd->bqd"}> : () -> ()
    %cst_41 = arith.constant dense<0.000000e+00> : vector<1x8x8xf32>
    %93 = tpu.matmul %92, %79, %cst_41 {dimension_numbers = #tpu.dot_dimension_numbers<[2], [1], [1], [2], [0, 0, 0, 1, 1, 2], [0], [0]>} : vector<1x8x8xbf16>, vector<1x8x8xbf16>, vector<1x8x8xf32> -> vector<1x8x8xf32>
    "tpu.trace_stop"() : () -> ()
    %94 = vector.extract_strided_slice %47 {offsets = [0, 0, 16], sizes = [1, 8, 8], strides = [1, 1, 1]} : vector<1x8x32xf32> to vector<1x8x8xf32>
    %95 = arith.truncf %94 : vector<1x8x8xf32> to vector<1x8x8xbf16>
    %96 = vector.extract_strided_slice %49 {offsets = [0, 0, 16], sizes = [1, 8, 8], strides = [1, 1, 1]} : vector<1x8x32xf32> to vector<1x8x8xf32>
    %97 = arith.truncf %96 : vector<1x8x8xf32> to vector<1x8x8xbf16>
    %98 = vector.extract_strided_slice %51 {offsets = [0, 0, 16], sizes = [1, 8, 8], strides = [1, 1, 1]} : vector<1x8x32xf32> to vector<1x8x8xf32>
    %99 = arith.truncf %98 : vector<1x8x8xf32> to vector<1x8x8xbf16>
    "tpu.trace_start"() <{level = 10 : i32, message = "bqd,bkd->bqk"}> : () -> ()
    %cst_42 = arith.constant dense<0.000000e+00> : vector<1x8x8xf32>
    %100 = tpu.matmul %95, %97, %cst_42 {dimension_numbers = #tpu.dot_dimension_numbers<[2], [2], [1], [1], [0, 0, 0, 1, 1, 1], [0], [0]>} : vector<1x8x8xbf16>, vector<1x8x8xbf16>, vector<1x8x8xf32> -> vector<1x8x8xf32>
    "tpu.trace_stop"() : () -> ()
    %101 = arith.addf %100, %9 : vector<1x8x8xf32>
    %cst_43 = arith.constant dense<0xFF800000> : vector<1x8xf32>
    %102 = vector.multi_reduction <maximumf>, %101, %cst_43 [2] : vector<1x8x8xf32> to vector<1x8xf32>
    %103 = vector.shape_cast %102 : vector<1x8xf32> to vector<1x8x1xf32>
    %104 = vector.broadcast %103 : vector<1x8x1xf32> to vector<1x8x8xf32>
    %105 = arith.subf %101, %104 : vector<1x8x8xf32>
    %106 = math.exp %105 : vector<1x8x8xf32>
    %cst_44 = arith.constant dense<0.000000e+00> : vector<1x8xf32>
    %107 = vector.multi_reduction <add>, %106, %cst_44 [2] : vector<1x8x8xf32> to vector<1x8xf32>
    %108 = vector.shape_cast %107 : vector<1x8xf32> to vector<1x8x1xf32>
    %109 = tpu.reciprocal %108 {approx = true} : vector<1x8x1xf32> -> vector<1x8x1xf32>
    %110 = vector.broadcast %109 : vector<1x8x1xf32> to vector<1x8x8xf32>
    %111 = arith.mulf %106, %110 : vector<1x8x8xf32>
    %112 = arith.truncf %111 : vector<1x8x8xf32> to vector<1x8x8xbf16>
    "tpu.trace_start"() <{level = 10 : i32, message = "bqk,bkd->bqd"}> : () -> ()
    %cst_45 = arith.constant dense<0.000000e+00> : vector<1x8x8xf32>
    %113 = tpu.matmul %112, %99, %cst_45 {dimension_numbers = #tpu.dot_dimension_numbers<[2], [1], [1], [2], [0, 0, 0, 1, 1, 2], [0], [0]>} : vector<1x8x8xbf16>, vector<1x8x8xbf16>, vector<1x8x8xf32> -> vector<1x8x8xf32>
    "tpu.trace_stop"() : () -> ()
    %114 = vector.extract_strided_slice %47 {offsets = [0, 0, 24], sizes = [1, 8, 8], strides = [1, 1, 1]} : vector<1x8x32xf32> to vector<1x8x8xf32>
    %115 = arith.truncf %114 : vector<1x8x8xf32> to vector<1x8x8xbf16>
    %116 = vector.extract_strided_slice %49 {offsets = [0, 0, 24], sizes = [1, 8, 8], strides = [1, 1, 1]} : vector<1x8x32xf32> to vector<1x8x8xf32>
    %117 = arith.truncf %116 : vector<1x8x8xf32> to vector<1x8x8xbf16>
    %118 = vector.extract_strided_slice %51 {offsets = [0, 0, 24], sizes = [1, 8, 8], strides = [1, 1, 1]} : vector<1x8x32xf32> to vector<1x8x8xf32>
    %119 = arith.truncf %118 : vector<1x8x8xf32> to vector<1x8x8xbf16>
    "tpu.trace_start"() <{level = 10 : i32, message = "bqd,bkd->bqk"}> : () -> ()
    %cst_46 = arith.constant dense<0.000000e+00> : vector<1x8x8xf32>
    %120 = tpu.matmul %115, %117, %cst_46 {dimension_numbers = #tpu.dot_dimension_numbers<[2], [2], [1], [1], [0, 0, 0, 1, 1, 1], [0], [0]>} : vector<1x8x8xbf16>, vector<1x8x8xbf16>, vector<1x8x8xf32> -> vector<1x8x8xf32>
    "tpu.trace_stop"() : () -> ()
    %121 = arith.addf %120, %9 : vector<1x8x8xf32>
    %cst_47 = arith.constant dense<0xFF800000> : vector<1x8xf32>
    %122 = vector.multi_reduction <maximumf>, %121, %cst_47 [2] : vector<1x8x8xf32> to vector<1x8xf32>
    %123 = vector.shape_cast %122 : vector<1x8xf32> to vector<1x8x1xf32>
    %124 = vector.broadcast %123 : vector<1x8x1xf32> to vector<1x8x8xf32>
    %125 = arith.subf %121, %124 : vector<1x8x8xf32>
    %126 = math.exp %125 : vector<1x8x8xf32>
    %cst_48 = arith.constant dense<0.000000e+00> : vector<1x8xf32>
    %127 = vector.multi_reduction <add>, %126, %cst_48 [2] : vector<1x8x8xf32> to vector<1x8xf32>
    %128 = vector.shape_cast %127 : vector<1x8xf32> to vector<1x8x1xf32>
    %129 = tpu.reciprocal %128 {approx = true} : vector<1x8x1xf32> -> vector<1x8x1xf32>
    %130 = vector.broadcast %129 : vector<1x8x1xf32> to vector<1x8x8xf32>
    %131 = arith.mulf %126, %130 : vector<1x8x8xf32>
    %132 = arith.truncf %131 : vector<1x8x8xf32> to vector<1x8x8xbf16>
    "tpu.trace_start"() <{level = 10 : i32, message = "bqk,bkd->bqd"}> : () -> ()
    %cst_49 = arith.constant dense<0.000000e+00> : vector<1x8x8xf32>
    %133 = tpu.matmul %132, %119, %cst_49 {dimension_numbers = #tpu.dot_dimension_numbers<[2], [1], [1], [2], [0, 0, 0, 1, 1, 2], [0], [0]>} : vector<1x8x8xbf16>, vector<1x8x8xbf16>, vector<1x8x8xf32> -> vector<1x8x8xf32>
    "tpu.trace_stop"() : () -> ()
    %134 = tpu.concatenate %73, %93, %113, %133 in 2 : vector<1x8x8xf32>, vector<1x8x8xf32>, vector<1x8x8xf32>, vector<1x8x8xf32> -> vector<1x8x32xf32>
    %135 = vector.shape_cast %134 : vector<1x8x32xf32> to vector<8x32xf32>
    %136 = arith.truncf %135 : vector<8x32xf32> to vector<8x32xbf16>
    %cst_50 = arith.constant dense<0.000000e+00> : vector<8x32xf32>
    %137 = tpu.matmul %136, %52, %cst_50 {dimension_numbers = #tpu.dot_dimension_numbers<[1], [0], [0], [1], [0, 0, 1, 1], [], []>} : vector<8x32xbf16>, vector<32x32xbf16>, vector<8x32xf32> -> vector<8x32xf32>
    %138 = vector.broadcast %53 : vector<1x32xf32> to vector<8x32xf32>
    %139 = arith.addf %137, %138 : vector<8x32xf32>
    %140 = arith.addf %139, %1 : vector<8x32xf32>
    %c0_51 = arith.constant 0 : index
    %c0_52 = arith.constant 0 : index
    %141 = vector.load %arg11[%c0_51, %c0_52] : memref<1x32xf32, #tpu.memory_space<vmem>>, vector<1x32xf32>
    %c0_53 = arith.constant 0 : index
    %c0_54 = arith.constant 0 : index
    %142 = vector.load %arg12[%c0_53, %c0_54] : memref<1x32xf32, #tpu.memory_space<vmem>>, vector<1x32xf32>
    %cst_55 = arith.constant dense<0.000000e+00> : vector<8xf32>
    %143 = vector.multi_reduction <add>, %140, %cst_55 [1] : vector<8x32xf32> to vector<8xf32>
    %144 = vector.shape_cast %143 : vector<8xf32> to vector<8x1xf32>
    %cst_56 = arith.constant 3.200000e+01 : f32
    %145 = vector.broadcast %cst_56 : f32 to vector<8x1xf32>
    %146 = arith.divf %144, %145 : vector<8x1xf32>
    %147 = vector.broadcast %146 : vector<8x1xf32> to vector<8x32xf32>
    %148 = arith.subf %140, %147 : vector<8x32xf32>
    %149 = arith.mulf %148, %148 : vector<8x32xf32>
    %cst_57 = arith.constant dense<0.000000e+00> : vector<8xf32>
    %150 = vector.multi_reduction <add>, %149, %cst_57 [1] : vector<8x32xf32> to vector<8xf32>
    %151 = vector.shape_cast %150 : vector<8xf32> to vector<8x1xf32>
    %cst_58 = arith.constant 3.200000e+01 : f32
    %152 = vector.broadcast %cst_58 : f32 to vector<8x1xf32>
    %153 = arith.divf %151, %152 : vector<8x1xf32>
    %154 = vector.broadcast %146 : vector<8x1xf32> to vector<8x32xf32>
    %155 = arith.subf %140, %154 : vector<8x32xf32>
    %cst_59 = arith.constant 9.99999997E-7 : f32
    %156 = vector.broadcast %cst_59 : f32 to vector<8x1xf32>
    %157 = arith.addf %153, %156 : vector<8x1xf32>
    %158 = math.rsqrt %157 : vector<8x1xf32>
    %159 = vector.broadcast %158 : vector<8x1xf32> to vector<8x32xf32>
    %160 = arith.mulf %155, %159 : vector<8x32xf32>
    %161 = vector.broadcast %141 : vector<1x32xf32> to vector<8x32xf32>
    %162 = arith.mulf %160, %161 : vector<8x32xf32>
    %163 = vector.broadcast %142 : vector<1x32xf32> to vector<8x32xf32>
    %164 = arith.addf %162, %163 : vector<8x32xf32>
    %165 = arith.truncf %164 : vector<8x32xf32> to vector<8x32xbf16>
    %c0_60 = arith.constant 0 : index
    %c0_61 = arith.constant 0 : index
    %166 = vector.load %arg13[%c0_60, %c0_61] : memref<32x32xbf16, #tpu.memory_space<vmem>>, vector<32x32xbf16>
    %cst_62 = arith.constant dense<0.000000e+00> : vector<8x32xf32>
    %167 = tpu.matmul %165, %166, %cst_62 {dimension_numbers = #tpu.dot_dimension_numbers<[1], [0], [0], [1], [0, 0, 1, 1], [], []>} : vector<8x32xbf16>, vector<32x32xbf16>, vector<8x32xf32> -> vector<8x32xf32>
    %c0_63 = arith.constant 0 : index
    %c0_64 = arith.constant 0 : index
    %168 = vector.load %arg14[%c0_63, %c0_64] : memref<1x32xf32, #tpu.memory_space<vmem>>, vector<1x32xf32>
    %169 = vector.broadcast %168 : vector<1x32xf32> to vector<8x32xf32>
    %170 = arith.addf %167, %169 : vector<8x32xf32>
    %171 = vector.shape_cast %170 : vector<8x32xf32> to vector<1x8x32xf32>
    %172 = arith.truncf %3 : vector<8x32xf32> to vector<8x32xbf16>
    %c0_65 = arith.constant 0 : index
    %c0_66 = arith.constant 0 : index
    %173 = vector.load %arg15[%c0_65, %c0_66] : memref<32x64xbf16, #tpu.memory_space<vmem>>, vector<32x64xbf16>
    %cst_67 = arith.constant dense<0.000000e+00> : vector<8x64xf32>
    %174 = tpu.matmul %172, %173, %cst_67 {dimension_numbers = #tpu.dot_dimension_numbers<[1], [0], [0], [1], [0, 0, 1, 1], [], []>} : vector<8x32xbf16>, vector<32x64xbf16>, vector<8x64xf32> -> vector<8x64xf32>
    %c0_68 = arith.constant 0 : index
    %c0_69 = arith.constant 0 : index
    %175 = vector.load %arg16[%c0_68, %c0_69] : memref<1x64xf32, #tpu.memory_space<vmem>>, vector<1x64xf32>
    %176 = vector.broadcast %175 : vector<1x64xf32> to vector<8x64xf32>
    %177 = arith.addf %174, %176 : vector<8x64xf32>
    %178 = vector.extract_strided_slice %177 {offsets = [0, 0], sizes = [8, 32], strides = [1, 1]} : vector<8x64xf32> to vector<8x32xf32>
    %179 = vector.shape_cast %178 : vector<8x32xf32> to vector<1x8x32xf32>
    %180 = vector.extract_strided_slice %177 {offsets = [0, 32], sizes = [8, 32], strides = [1, 1]} : vector<8x64xf32> to vector<8x32xf32>
    %181 = vector.shape_cast %180 : vector<8x32xf32> to vector<1x8x32xf32>
    %c0_70 = arith.constant 0 : index
    %c0_71 = arith.constant 0 : index
    %182 = vector.load %arg17[%c0_70, %c0_71] : memref<32x32xbf16, #tpu.memory_space<vmem>>, vector<32x32xbf16>
    %c0_72 = arith.constant 0 : index
    %c0_73 = arith.constant 0 : index
    %183 = vector.load %arg18[%c0_72, %c0_73] : memref<1x32xf32, #tpu.memory_space<vmem>>, vector<1x32xf32>
    %184 = vector.extract_strided_slice %171 {offsets = [0, 0, 0], sizes = [1, 8, 8], strides = [1, 1, 1]} : vector<1x8x32xf32> to vector<1x8x8xf32>
    %185 = arith.truncf %184 : vector<1x8x8xf32> to vector<1x8x8xbf16>
    %186 = vector.extract_strided_slice %179 {offsets = [0, 0, 0], sizes = [1, 8, 8], strides = [1, 1, 1]} : vector<1x8x32xf32> to vector<1x8x8xf32>
    %187 = arith.truncf %186 : vector<1x8x8xf32> to vector<1x8x8xbf16>
    %188 = vector.extract_strided_slice %181 {offsets = [0, 0, 0], sizes = [1, 8, 8], strides = [1, 1, 1]} : vector<1x8x32xf32> to vector<1x8x8xf32>
    %189 = arith.truncf %188 : vector<1x8x8xf32> to vector<1x8x8xbf16>
    "tpu.trace_start"() <{level = 10 : i32, message = "bqd,bkd->bqk"}> : () -> ()
    %cst_74 = arith.constant dense<0.000000e+00> : vector<1x8x8xf32>
    %190 = tpu.matmul %185, %187, %cst_74 {dimension_numbers = #tpu.dot_dimension_numbers<[2], [2], [1], [1], [0, 0, 0, 1, 1, 1], [0], [0]>} : vector<1x8x8xbf16>, vector<1x8x8xbf16>, vector<1x8x8xf32> -> vector<1x8x8xf32>
    "tpu.trace_stop"() : () -> ()
    %191 = vector.broadcast %15 : vector<1x1x8xf32> to vector<1x8x8xf32>
    %192 = arith.addf %190, %191 : vector<1x8x8xf32>
    %cst_75 = arith.constant dense<0xFF800000> : vector<1x8xf32>
    %193 = vector.multi_reduction <maximumf>, %192, %cst_75 [2] : vector<1x8x8xf32> to vector<1x8xf32>
    %194 = vector.shape_cast %193 : vector<1x8xf32> to vector<1x8x1xf32>
    %195 = vector.broadcast %194 : vector<1x8x1xf32> to vector<1x8x8xf32>
    %196 = arith.subf %192, %195 : vector<1x8x8xf32>
    %197 = math.exp %196 : vector<1x8x8xf32>
    %cst_76 = arith.constant dense<0.000000e+00> : vector<1x8xf32>
    %198 = vector.multi_reduction <add>, %197, %cst_76 [2] : vector<1x8x8xf32> to vector<1x8xf32>
    %199 = vector.shape_cast %198 : vector<1x8xf32> to vector<1x8x1xf32>
    %200 = tpu.reciprocal %199 {approx = true} : vector<1x8x1xf32> -> vector<1x8x1xf32>
    %201 = vector.broadcast %200 : vector<1x8x1xf32> to vector<1x8x8xf32>
    %202 = arith.mulf %197, %201 : vector<1x8x8xf32>
    %203 = arith.truncf %202 : vector<1x8x8xf32> to vector<1x8x8xbf16>
    "tpu.trace_start"() <{level = 10 : i32, message = "bqk,bkd->bqd"}> : () -> ()
    %cst_77 = arith.constant dense<0.000000e+00> : vector<1x8x8xf32>
    %204 = tpu.matmul %203, %189, %cst_77 {dimension_numbers = #tpu.dot_dimension_numbers<[2], [1], [1], [2], [0, 0, 0, 1, 1, 2], [0], [0]>} : vector<1x8x8xbf16>, vector<1x8x8xbf16>, vector<1x8x8xf32> -> vector<1x8x8xf32>
    "tpu.trace_stop"() : () -> ()
    %205 = vector.extract_strided_slice %171 {offsets = [0, 0, 8], sizes = [1, 8, 8], strides = [1, 1, 1]} : vector<1x8x32xf32> to vector<1x8x8xf32>
    %206 = arith.truncf %205 : vector<1x8x8xf32> to vector<1x8x8xbf16>
    %207 = vector.extract_strided_slice %179 {offsets = [0, 0, 8], sizes = [1, 8, 8], strides = [1, 1, 1]} : vector<1x8x32xf32> to vector<1x8x8xf32>
    %208 = arith.truncf %207 : vector<1x8x8xf32> to vector<1x8x8xbf16>
    %209 = vector.extract_strided_slice %181 {offsets = [0, 0, 8], sizes = [1, 8, 8], strides = [1, 1, 1]} : vector<1x8x32xf32> to vector<1x8x8xf32>
    %210 = arith.truncf %209 : vector<1x8x8xf32> to vector<1x8x8xbf16>
    "tpu.trace_start"() <{level = 10 : i32, message = "bqd,bkd->bqk"}> : () -> ()
    %cst_78 = arith.constant dense<0.000000e+00> : vector<1x8x8xf32>
    %211 = tpu.matmul %206, %208, %cst_78 {dimension_numbers = #tpu.dot_dimension_numbers<[2], [2], [1], [1], [0, 0, 0, 1, 1, 1], [0], [0]>} : vector<1x8x8xbf16>, vector<1x8x8xbf16>, vector<1x8x8xf32> -> vector<1x8x8xf32>
    "tpu.trace_stop"() : () -> ()
    %212 = vector.broadcast %15 : vector<1x1x8xf32> to vector<1x8x8xf32>
    %213 = arith.addf %211, %212 : vector<1x8x8xf32>
    %cst_79 = arith.constant dense<0xFF800000> : vector<1x8xf32>
    %214 = vector.multi_reduction <maximumf>, %213, %cst_79 [2] : vector<1x8x8xf32> to vector<1x8xf32>
    %215 = vector.shape_cast %214 : vector<1x8xf32> to vector<1x8x1xf32>
    %216 = vector.broadcast %215 : vector<1x8x1xf32> to vector<1x8x8xf32>
    %217 = arith.subf %213, %216 : vector<1x8x8xf32>
    %218 = math.exp %217 : vector<1x8x8xf32>
    %cst_80 = arith.constant dense<0.000000e+00> : vector<1x8xf32>
    %219 = vector.multi_reduction <add>, %218, %cst_80 [2] : vector<1x8x8xf32> to vector<1x8xf32>
    %220 = vector.shape_cast %219 : vector<1x8xf32> to vector<1x8x1xf32>
    %221 = tpu.reciprocal %220 {approx = true} : vector<1x8x1xf32> -> vector<1x8x1xf32>
    %222 = vector.broadcast %221 : vector<1x8x1xf32> to vector<1x8x8xf32>
    %223 = arith.mulf %218, %222 : vector<1x8x8xf32>
    %224 = arith.truncf %223 : vector<1x8x8xf32> to vector<1x8x8xbf16>
    "tpu.trace_start"() <{level = 10 : i32, message = "bqk,bkd->bqd"}> : () -> ()
    %cst_81 = arith.constant dense<0.000000e+00> : vector<1x8x8xf32>
    %225 = tpu.matmul %224, %210, %cst_81 {dimension_numbers = #tpu.dot_dimension_numbers<[2], [1], [1], [2], [0, 0, 0, 1, 1, 2], [0], [0]>} : vector<1x8x8xbf16>, vector<1x8x8xbf16>, vector<1x8x8xf32> -> vector<1x8x8xf32>
    "tpu.trace_stop"() : () -> ()
    %226 = vector.extract_strided_slice %171 {offsets = [0, 0, 16], sizes = [1, 8, 8], strides = [1, 1, 1]} : vector<1x8x32xf32> to vector<1x8x8xf32>
    %227 = arith.truncf %226 : vector<1x8x8xf32> to vector<1x8x8xbf16>
    %228 = vector.extract_strided_slice %179 {offsets = [0, 0, 16], sizes = [1, 8, 8], strides = [1, 1, 1]} : vector<1x8x32xf32> to vector<1x8x8xf32>
    %229 = arith.truncf %228 : vector<1x8x8xf32> to vector<1x8x8xbf16>
    %230 = vector.extract_strided_slice %181 {offsets = [0, 0, 16], sizes = [1, 8, 8], strides = [1, 1, 1]} : vector<1x8x32xf32> to vector<1x8x8xf32>
    %231 = arith.truncf %230 : vector<1x8x8xf32> to vector<1x8x8xbf16>
    "tpu.trace_start"() <{level = 10 : i32, message = "bqd,bkd->bqk"}> : () -> ()
    %cst_82 = arith.constant dense<0.000000e+00> : vector<1x8x8xf32>
    %232 = tpu.matmul %227, %229, %cst_82 {dimension_numbers = #tpu.dot_dimension_numbers<[2], [2], [1], [1], [0, 0, 0, 1, 1, 1], [0], [0]>} : vector<1x8x8xbf16>, vector<1x8x8xbf16>, vector<1x8x8xf32> -> vector<1x8x8xf32>
    "tpu.trace_stop"() : () -> ()
    %233 = vector.broadcast %15 : vector<1x1x8xf32> to vector<1x8x8xf32>
    %234 = arith.addf %232, %233 : vector<1x8x8xf32>
    %cst_83 = arith.constant dense<0xFF800000> : vector<1x8xf32>
    %235 = vector.multi_reduction <maximumf>, %234, %cst_83 [2] : vector<1x8x8xf32> to vector<1x8xf32>
    %236 = vector.shape_cast %235 : vector<1x8xf32> to vector<1x8x1xf32>
    %237 = vector.broadcast %236 : vector<1x8x1xf32> to vector<1x8x8xf32>
    %238 = arith.subf %234, %237 : vector<1x8x8xf32>
    %239 = math.exp %238 : vector<1x8x8xf32>
    %cst_84 = arith.constant dense<0.000000e+00> : vector<1x8xf32>
    %240 = vector.multi_reduction <add>, %239, %cst_84 [2] : vector<1x8x8xf32> to vector<1x8xf32>
    %241 = vector.shape_cast %240 : vector<1x8xf32> to vector<1x8x1xf32>
    %242 = tpu.reciprocal %241 {approx = true} : vector<1x8x1xf32> -> vector<1x8x1xf32>
    %243 = vector.broadcast %242 : vector<1x8x1xf32> to vector<1x8x8xf32>
    %244 = arith.mulf %239, %243 : vector<1x8x8xf32>
    %245 = arith.truncf %244 : vector<1x8x8xf32> to vector<1x8x8xbf16>
    "tpu.trace_start"() <{level = 10 : i32, message = "bqk,bkd->bqd"}> : () -> ()
    %cst_85 = arith.constant dense<0.000000e+00> : vector<1x8x8xf32>
    %246 = tpu.matmul %245, %231, %cst_85 {dimension_numbers = #tpu.dot_dimension_numbers<[2], [1], [1], [2], [0, 0, 0, 1, 1, 2], [0], [0]>} : vector<1x8x8xbf16>, vector<1x8x8xbf16>, vector<1x8x8xf32> -> vector<1x8x8xf32>
    "tpu.trace_stop"() : () -> ()
    %247 = vector.extract_strided_slice %171 {offsets = [0, 0, 24], sizes = [1, 8, 8], strides = [1, 1, 1]} : vector<1x8x32xf32> to vector<1x8x8xf32>
    %248 = arith.truncf %247 : vector<1x8x8xf32> to vector<1x8x8xbf16>
    %249 = vector.extract_strided_slice %179 {offsets = [0, 0, 24], sizes = [1, 8, 8], strides = [1, 1, 1]} : vector<1x8x32xf32> to vector<1x8x8xf32>
    %250 = arith.truncf %249 : vector<1x8x8xf32> to vector<1x8x8xbf16>
    %251 = vector.extract_strided_slice %181 {offsets = [0, 0, 24], sizes = [1, 8, 8], strides = [1, 1, 1]} : vector<1x8x32xf32> to vector<1x8x8xf32>
    %252 = arith.truncf %251 : vector<1x8x8xf32> to vector<1x8x8xbf16>
    "tpu.trace_start"() <{level = 10 : i32, message = "bqd,bkd->bqk"}> : () -> ()
    %cst_86 = arith.constant dense<0.000000e+00> : vector<1x8x8xf32>
    %253 = tpu.matmul %248, %250, %cst_86 {dimension_numbers = #tpu.dot_dimension_numbers<[2], [2], [1], [1], [0, 0, 0, 1, 1, 1], [0], [0]>} : vector<1x8x8xbf16>, vector<1x8x8xbf16>, vector<1x8x8xf32> -> vector<1x8x8xf32>
    "tpu.trace_stop"() : () -> ()
    %254 = vector.broadcast %15 : vector<1x1x8xf32> to vector<1x8x8xf32>
    %255 = arith.addf %253, %254 : vector<1x8x8xf32>
    %cst_87 = arith.constant dense<0xFF800000> : vector<1x8xf32>
    %256 = vector.multi_reduction <maximumf>, %255, %cst_87 [2] : vector<1x8x8xf32> to vector<1x8xf32>
    %257 = vector.shape_cast %256 : vector<1x8xf32> to vector<1x8x1xf32>
    %258 = vector.broadcast %257 : vector<1x8x1xf32> to vector<1x8x8xf32>
    %259 = arith.subf %255, %258 : vector<1x8x8xf32>
    %260 = math.exp %259 : vector<1x8x8xf32>
    %cst_88 = arith.constant dense<0.000000e+00> : vector<1x8xf32>
    %261 = vector.multi_reduction <add>, %260, %cst_88 [2] : vector<1x8x8xf32> to vector<1x8xf32>
    %262 = vector.shape_cast %261 : vector<1x8xf32> to vector<1x8x1xf32>
    %263 = tpu.reciprocal %262 {approx = true} : vector<1x8x1xf32> -> vector<1x8x1xf32>
    %264 = vector.broadcast %263 : vector<1x8x1xf32> to vector<1x8x8xf32>
    %265 = arith.mulf %260, %264 : vector<1x8x8xf32>
    %266 = arith.truncf %265 : vector<1x8x8xf32> to vector<1x8x8xbf16>
    "tpu.trace_start"() <{level = 10 : i32, message = "bqk,bkd->bqd"}> : () -> ()
    %cst_89 = arith.constant dense<0.000000e+00> : vector<1x8x8xf32>
    %267 = tpu.matmul %266, %252, %cst_89 {dimension_numbers = #tpu.dot_dimension_numbers<[2], [1], [1], [2], [0, 0, 0, 1, 1, 2], [0], [0]>} : vector<1x8x8xbf16>, vector<1x8x8xbf16>, vector<1x8x8xf32> -> vector<1x8x8xf32>
    "tpu.trace_stop"() : () -> ()
    %268 = tpu.concatenate %204, %225, %246, %267 in 2 : vector<1x8x8xf32>, vector<1x8x8xf32>, vector<1x8x8xf32>, vector<1x8x8xf32> -> vector<1x8x32xf32>
    %269 = vector.shape_cast %268 : vector<1x8x32xf32> to vector<8x32xf32>
    %270 = arith.truncf %269 : vector<8x32xf32> to vector<8x32xbf16>
    %cst_90 = arith.constant dense<0.000000e+00> : vector<8x32xf32>
    %271 = tpu.matmul %270, %182, %cst_90 {dimension_numbers = #tpu.dot_dimension_numbers<[1], [0], [0], [1], [0, 0, 1, 1], [], []>} : vector<8x32xbf16>, vector<32x32xbf16>, vector<8x32xf32> -> vector<8x32xf32>
    %272 = vector.broadcast %183 : vector<1x32xf32> to vector<8x32xf32>
    %273 = arith.addf %271, %272 : vector<8x32xf32>
    %274 = arith.addf %273, %140 : vector<8x32xf32>
    %c0_91 = arith.constant 0 : index
    %c0_92 = arith.constant 0 : index
    %275 = vector.load %arg19[%c0_91, %c0_92] : memref<1x32xf32, #tpu.memory_space<vmem>>, vector<1x32xf32>
    %c0_93 = arith.constant 0 : index
    %c0_94 = arith.constant 0 : index
    %276 = vector.load %arg20[%c0_93, %c0_94] : memref<1x32xf32, #tpu.memory_space<vmem>>, vector<1x32xf32>
    %cst_95 = arith.constant dense<0.000000e+00> : vector<8xf32>
    %277 = vector.multi_reduction <add>, %274, %cst_95 [1] : vector<8x32xf32> to vector<8xf32>
    %278 = vector.shape_cast %277 : vector<8xf32> to vector<8x1xf32>
    %cst_96 = arith.constant 3.200000e+01 : f32
    %279 = vector.broadcast %cst_96 : f32 to vector<8x1xf32>
    %280 = arith.divf %278, %279 : vector<8x1xf32>
    %281 = vector.broadcast %280 : vector<8x1xf32> to vector<8x32xf32>
    %282 = arith.subf %274, %281 : vector<8x32xf32>
    %283 = arith.mulf %282, %282 : vector<8x32xf32>
    %cst_97 = arith.constant dense<0.000000e+00> : vector<8xf32>
    %284 = vector.multi_reduction <add>, %283, %cst_97 [1] : vector<8x32xf32> to vector<8xf32>
    %285 = vector.shape_cast %284 : vector<8xf32> to vector<8x1xf32>
    %cst_98 = arith.constant 3.200000e+01 : f32
    %286 = vector.broadcast %cst_98 : f32 to vector<8x1xf32>
    %287 = arith.divf %285, %286 : vector<8x1xf32>
    %288 = vector.broadcast %280 : vector<8x1xf32> to vector<8x32xf32>
    %289 = arith.subf %274, %288 : vector<8x32xf32>
    %cst_99 = arith.constant 9.99999997E-7 : f32
    %290 = vector.broadcast %cst_99 : f32 to vector<8x1xf32>
    %291 = arith.addf %287, %290 : vector<8x1xf32>
    %292 = math.rsqrt %291 : vector<8x1xf32>
    %293 = vector.broadcast %292 : vector<8x1xf32> to vector<8x32xf32>
    %294 = arith.mulf %289, %293 : vector<8x32xf32>
    %295 = vector.broadcast %275 : vector<1x32xf32> to vector<8x32xf32>
    %296 = arith.mulf %294, %295 : vector<8x32xf32>
    %297 = vector.broadcast %276 : vector<1x32xf32> to vector<8x32xf32>
    %298 = arith.addf %296, %297 : vector<8x32xf32>
    %299 = arith.truncf %298 : vector<8x32xf32> to vector<8x32xbf16>
    %c0_100 = arith.constant 0 : index
    %c0_101 = arith.constant 0 : index
    %300 = vector.load %arg21[%c0_100, %c0_101] : memref<32x64xbf16, #tpu.memory_space<vmem>>, vector<32x64xbf16>
    %cst_102 = arith.constant dense<0.000000e+00> : vector<8x64xf32>
    %301 = tpu.matmul %299, %300, %cst_102 {dimension_numbers = #tpu.dot_dimension_numbers<[1], [0], [0], [1], [0, 0, 1, 1], [], []>} : vector<8x32xbf16>, vector<32x64xbf16>, vector<8x64xf32> -> vector<8x64xf32>
    %c0_103 = arith.constant 0 : index
    %c0_104 = arith.constant 0 : index
    %302 = vector.load %arg22[%c0_103, %c0_104] : memref<1x64xf32, #tpu.memory_space<vmem>>, vector<1x64xf32>
    %303 = vector.broadcast %302 : vector<1x64xf32> to vector<8x64xf32>
    %304 = arith.addf %301, %303 : vector<8x64xf32>
    %cst_105 = arith.constant 5.000000e-01 : f32
    %305 = vector.broadcast %cst_105 : f32 to vector<8x64xf32>
    %306 = arith.mulf %305, %304 : vector<8x64xf32>
    %cst_106 = arith.constant 4.471500e-02 : f32
    %307 = vector.broadcast %cst_106 : f32 to vector<8x64xf32>
    %308 = arith.mulf %307, %304 : vector<8x64xf32>
    %309 = arith.mulf %308, %304 : vector<8x64xf32>
    %310 = arith.mulf %309, %304 : vector<8x64xf32>
    %311 = arith.addf %304, %310 : vector<8x64xf32>
    %cst_107 = arith.constant 0.797884583 : f32
    %312 = vector.broadcast %cst_107 : f32 to vector<8x64xf32>
    %313 = arith.mulf %312, %311 : vector<8x64xf32>
    %314 = math.tanh %313 : vector<8x64xf32>
    %cst_108 = arith.constant 1.000000e+00 : f32
    %315 = vector.broadcast %cst_108 : f32 to vector<8x64xf32>
    %316 = arith.addf %315, %314 : vector<8x64xf32>
    %317 = arith.mulf %306, %316 : vector<8x64xf32>
    %318 = arith.truncf %317 : vector<8x64xf32> to vector<8x64xbf16>
    %c0_109 = arith.constant 0 : index
    %c0_110 = arith.constant 0 : index
    %319 = vector.load %arg23[%c0_109, %c0_110] : memref<64x32xbf16, #tpu.memory_space<vmem>>, vector<64x32xbf16>
    %cst_111 = arith.constant dense<0.000000e+00> : vector<8x32xf32>
    %320 = tpu.matmul %318, %319, %cst_111 {dimension_numbers = #tpu.dot_dimension_numbers<[1], [0], [0], [1], [0, 0, 1, 1], [], []>} : vector<8x64xbf16>, vector<64x32xbf16>, vector<8x32xf32> -> vector<8x32xf32>
    %c0_112 = arith.constant 0 : index
    %c0_113 = arith.constant 0 : index
    %321 = vector.load %arg24[%c0_112, %c0_113] : memref<1x32xf32, #tpu.memory_space<vmem>>, vector<1x32xf32>
    %322 = vector.broadcast %321 : vector<1x32xf32> to vector<8x32xf32>
    %323 = arith.addf %320, %322 : vector<8x32xf32>
    %324 = arith.addf %323, %274 : vector<8x32xf32>
    %325 = vector.shape_cast %324 : vector<8x32xf32> to vector<1x8x32xf32>
    %c0_114 = arith.constant 0 : index
    %c0_115 = arith.constant 0 : index
    %c0_116 = arith.constant 0 : index
    %326 = vector.load %arg25[%c0_114, %c0_115, %c0_116] : memref<1x8x32xf32, #tpu.memory_space<vmem>>, vector<1x8x32xf32>
    tpu.vector_store %arg25[%c0_114, %c0_115, %c0_116], %325 {strides = array<i32>} : memref<1x8x32xf32, #tpu.memory_space<vmem>>, vector<1x8x32xf32>,
    return
  }
  func.func @transform_0(%arg0: i32) -> (i32, i32, i32) {
    %c0_i32 = arith.constant 0 : i32
    %c0_i32_0 = arith.constant 0 : i32
    %c0_i32_1 = arith.constant 0 : i32
    return %arg0, %c0_i32, %c0_i32_0 : i32, i32, i32
  }
  func.func @transform_1(%arg0: i32) -> (i32, i32, i32) {
    %c0_i32 = arith.constant 0 : i32
    %c0_i32_0 = arith.constant 0 : i32
    %c0_i32_1 = arith.constant 0 : i32
    return %arg0, %c0_i32, %c0_i32_0 : i32, i32, i32
  }
  func.func @transform_2(%arg0: i32) -> (i32, i32, i32) {
    %c0_i32 = arith.constant 0 : i32
    %c0_i32_0 = arith.constant 0 : i32
    %c0_i32_1 = arith.constant 0 : i32
    return %arg0, %c0_i32, %c0_i32_0 : i32, i32, i32
  }
  func.func @transform_3(%arg0: i32) -> (i32, i32, i32) {
    %c0_i32 = arith.constant 0 : i32
    %c0_i32_0 = arith.constant 0 : i32
    %c0_i32_1 = arith.constant 0 : i32
    return %arg0, %c0_i32, %c0_i32_0 : i32, i32, i32
  }
  func.func @transform_4(%arg0: i32) -> (i32, i32) {
    %c0_i32 = arith.constant 0 : i32
    %c0_i32_0 = arith.constant 0 : i32
    %c0_i32_1 = arith.constant 0 : i32
    return %c0_i32, %c0_i32_0 : i32, i32
  }
  func.func @transform_5(%arg0: i32) -> (i32, i32) {
    %c0_i32 = arith.constant 0 : i32
    %c0_i32_0 = arith.constant 0 : i32
    %c0_i32_1 = arith.constant 0 : i32
    return %c0_i32, %c0_i32_0 : i32, i32
  }
  func.func @transform_6(%arg0: i32) -> (i32, i32) {
    %c0_i32 = arith.constant 0 : i32
    %c0_i32_0 = arith.constant 0 : i32
    %c0_i32_1 = arith.constant 0 : i32
    return %c0_i32, %c0_i32_0 : i32, i32
  }
  func.func @transform_7(%arg0: i32) -> (i32, i32) {
    %c0_i32 = arith.constant 0 : i32
    %c0_i32_0 = arith.constant 0 : i32
    %c0_i32_1 = arith.constant 0 : i32
    return %c0_i32, %c0_i32_0 : i32, i32
  }
  func.func @transform_8(%arg0: i32) -> (i32, i32) {
    %c0_i32 = arith.constant 0 : i32
    %c0_i32_0 = arith.constant 0 : i32
    %c0_i32_1 = arith.constant 0 : i32
    return %c0_i32, %c0_i32_0 : i32, i32
  }
  func.func @transform_9(%arg0: i32) -> (i32, i32) {
    %c0_i32 = arith.constant 0 : i32
    %c0_i32_0 = arith.constant 0 : i32
    %c0_i32_1 = arith.constant 0 : i32
    return %c0_i32, %c0_i32_0 : i32, i32
  }
  func.func @transform_10(%arg0: i32) -> (i32, i32) {
    %c0_i32 = arith.constant 0 : i32
    %c0_i32_0 = arith.constant 0 : i32
    %c0_i32_1 = arith.constant 0 : i32
    return %c0_i32, %c0_i32_0 : i32, i32
  }
  func.func @transform_11(%arg0: i32) -> (i32, i32) {
    %c0_i32 = arith.constant 0 : i32
    %c0_i32_0 = arith.constant 0 : i32
    %c0_i32_1 = arith.constant 0 : i32
    return %c0_i32, %c0_i32_0 : i32, i32
  }
  func.func @transform_12(%arg0: i32) -> (i32, i32) {
    %c0_i32 = arith.constant 0 : i32
    %c0_i32_0 = arith.constant 0 : i32
    %c0_i32_1 = arith.constant 0 : i32
    return %c0_i32, %c0_i32_0 : i32, i32
  }
  func.func @transform_13(%arg0: i32) -> (i32, i32) {
    %c0_i32 = arith.constant 0 : i32
    %c0_i32_0 = arith.constant 0 : i32
    %c0_i32_1 = arith.constant 0 : i32
    return %c0_i32, %c0_i32_0 : i32, i32
  }
  func.func @transform_14(%arg0: i32) -> (i32, i32) {
    %c0_i32 = arith.constant 0 : i32
    %c0_i32_0 = arith.constant 0 : i32
    %c0_i32_1 = arith.constant 0 : i32
    return %c0_i32, %c0_i32_0 : i32, i32
  }
  func.func @transform_15(%arg0: i32) -> (i32, i32) {
    %c0_i32 = arith.constant 0 : i32
    %c0_i32_0 = arith.constant 0 : i32
    %c0_i32_1 = arith.constant 0 : i32
    return %c0_i32, %c0_i32_0 : i32, i32
  }
  func.func @transform_16(%arg0: i32) -> (i32, i32) {
    %c0_i32 = arith.constant 0 : i32
    %c0_i32_0 = arith.constant 0 : i32
    %c0_i32_1 = arith.constant 0 : i32
    return %c0_i32, %c0_i32_0 : i32, i32
  }
  func.func @transform_17(%arg0: i32) -> (i32, i32) {
    %c0_i32 = arith.constant 0 : i32
    %c0_i32_0 = arith.constant 0 : i32
    %c0_i32_1 = arith.constant 0 : i32
    return %c0_i32, %c0_i32_0 : i32, i32
  }
  func.func @transform_18(%arg0: i32) -> (i32, i32) {
    %c0_i32 = arith.constant 0 : i32
    %c0_i32_0 = arith.constant 0 : i32
    %c0_i32_1 = arith.constant 0 : i32
    return %c0_i32, %c0_i32_0 : i32, i32
  }
  func.func @transform_19(%arg0: i32) -> (i32, i32) {
    %c0_i32 = arith.constant 0 : i32
    %c0_i32_0 = arith.constant 0 : i32
    %c0_i32_1 = arith.constant 0 : i32
    return %c0_i32, %c0_i32_0 : i32, i32
  }
  func.func @transform_20(%arg0: i32) -> (i32, i32) {
    %c0_i32 = arith.constant 0 : i32
    %c0_i32_0 = arith.constant 0 : i32
    %c0_i32_1 = arith.constant 0 : i32
    return %c0_i32, %c0_i32_0 : i32, i32
  }
  func.func @transform_21(%arg0: i32) -> (i32, i32) {
    %c0_i32 = arith.constant 0 : i32
    %c0_i32_0 = arith.constant 0 : i32
    %c0_i32_1 = arith.constant 0 : i32
    return %c0_i32, %c0_i32_0 : i32, i32
  }
  func.func @transform_22(%arg0: i32) -> (i32, i32) {
    %c0_i32 = arith.constant 0 : i32
    %c0_i32_0 = arith.constant 0 : i32
    %c0_i32_1 = arith.constant 0 : i32
    return %c0_i32, %c0_i32_0 : i32, i32
  }
  func.func @transform_23(%arg0: i32) -> (i32, i32) {
    %c0_i32 = arith.constant 0 : i32
    %c0_i32_0 = arith.constant 0 : i32
    %c0_i32_1 = arith.constant 0 : i32
    return %c0_i32, %c0_i32_0 : i32, i32
  }
  func.func @transform_24(%arg0: i32) -> (i32, i32, i32) {
    %c0_i32 = arith.constant 0 : i32
    %c0_i32_0 = arith.constant 0 : i32
    %c0_i32_1 = arith.constant 0 : i32
    return %arg0, %c0_i32, %c0_i32_0 : i32, i32, i32
  }
}

</mosaic_0001>

<llo_original>
// kernel: tpu_custom_call.1
$region0: #{tpu_custom_call.1}
  #allocation0 [shape = 'u32[]', space=smem, size = 0x4, offset = 0x4, fixed_abs, tag = 'smem constant byte address 0x4 - core index']
  #allocation1 [shape = 'u32[144,128]{1,0:T(1,128)}', space=vmem, size = 0x12000, scoped, tag = 'internal scratch']
  %s0 = inlined_call_operand.vmem [shape: f32[2,8,32], index: 0, kind: input, shape index: {}]
  %s1 = inlined_call_operand.vmem [shape: f32[2,8,32], index: 1, kind: input, shape index: {}]
  %s2 = inlined_call_operand.vmem [shape: f32[2,8,8], index: 2, kind: input, shape index: {}]
  %s3 = inlined_call_operand.hbm [shape: f32[2,1,8], index: 3, kind: input, shape index: {}]
  %s4 = inlined_call_operand.hbm [shape: f32[1,32], index: 4, kind: input, shape index: {}]
  %s5 = inlined_call_operand.hbm [shape: f32[1,32], index: 5, kind: input, shape index: {}]
  %s6 = inlined_call_operand.hbm [shape: bf16[32,96], index: 6, kind: input, shape index: {}]
  %s7 = inlined_call_operand.hbm [shape: f32[1,96], index: 7, kind: input, shape index: {}]
  %s8 = inlined_call_operand.hbm [shape: bf16[32,32], index: 8, kind: input, shape index: {}]
  %s9 = inlined_call_operand.hbm [shape: f32[1,32], index: 9, kind: input, shape index: {}]
  %s10 = inlined_call_operand.hbm [shape: f32[1,32], index: 10, kind: input, shape index: {}]
  %s11 = inlined_call_operand.hbm [shape: f32[1,32], index: 11, kind: input, shape index: {}]
  %s12 = inlined_call_operand.vmem [shape: bf16[32,32], index: 12, kind: input, shape index: {}]
  %s13 = inlined_call_operand.hbm [shape: f32[1,32], index: 13, kind: input, shape index: {}]
  %s14 = inlined_call_operand.vmem [shape: bf16[32,64], index: 14, kind: input, shape index: {}]
  %s15 = inlined_call_operand.hbm [shape: f32[1,64], index: 15, kind: input, shape index: {}]
  %s16 = inlined_call_operand.hbm [shape: bf16[32,32], index: 16, kind: input, shape index: {}]
  %s17 = inlined_call_operand.hbm [shape: f32[1,32], index: 17, kind: input, shape index: {}]
  %s18 = inlined_call_operand.vmem [shape: f32[1,32], index: 18, kind: input, shape index: {}]
  %s19 = inlined_call_operand.vmem [shape: f32[1,32], index: 19, kind: input, shape index: {}]
  %s20 = inlined_call_operand.vmem [shape: bf16[32,64], index: 20, kind: input, shape index: {}]
  %s21 = inlined_call_operand.vmem [shape: f32[1,64], index: 21, kind: input, shape index: {}]
  %s22 = inlined_call_operand.vmem [shape: bf16[64,32], index: 22, kind: input, shape index: {}]
  %s23 = inlined_call_operand.vmem [shape: f32[1,32], index: 23, kind: input, shape index: {}]
  %s24 = inlined_call_operand.hbm [shape: f32[2,8,32], index: 24, kind: output, shape index: {}]
  %s25 = sld [smem:[#allocation0]]
  $region181: #{tpu_custom_call.1} parent=0
    _
  %s27 = ssub.s32 1, %s25
  %s28 = scalar_select 0, %s27, %s25
  $region1: #{tpu_custom_call.1} parent=0
    #allocation2 [shape = 'u8[1024]{0}', space=vmem, size = 0x400, scoped, tag = 'input window, operand 3']
    #allocation3 [shape = 's32[2]{0}', space=sflag, size = 0x8, scoped, tag = 'scoped memory for tpu_custom_call.1']
    #allocation4 [shape = 's32[2]{0}', space=sflag, size = 0x8, scoped, tag = 'scoped memory for tpu_custom_call.1']
    #allocation5 [shape = 'u8[512]{0}', space=vmem, size = 0x400, scoped, tag = 'input window, operand 4, single buffered']
    #allocation6 [shape = 's32[1]{0}', space=sflag, size = 0x4, scoped, tag = 'scoped memory for tpu_custom_call.1']
    #allocation7 [shape = 'u8[512]{0}', space=vmem, size = 0x400, scoped, tag = 'input window, operand 5, single buffered']
    #allocation8 [shape = 'u8[8192]{0}', space=vmem, size = 0x2000, scoped, tag = 'input window, operand 6, single buffered']
    #allocation9 [shape = 's32[1]{0}', space=sflag, size = 0x4, scoped, tag = 'scoped memory for tpu_custom_call.1']
    #allocation10 [shape = 'u8[512]{0}', space=vmem, size = 0x400, scoped, tag = 'input window, operand 7, single buffered']
    #allocation11 [shape = 'u8[8192]{0}', space=vmem, size = 0x2000, scoped, tag = 'input window, operand 8, single buffered']
    #allocation12 [shape = 's32[1]{0}', space=sflag, size = 0x4, scoped, tag = 'scoped memory for tpu_custom_call.1']
    #allocation13 [shape = 'u8[512]{0}', space=vmem, size = 0x400, scoped, tag = 'input window, operand 9, single buffered']
    #allocation14 [shape = 'u8[512]{0}', space=vmem, size = 0x400, scoped, tag = 'input window, operand 10, single buffered']
    #allocation15 [shape = 's32[1]{0}', space=sflag, size = 0x4, scoped, tag = 'scoped memory for tpu_custom_call.1']
    #allocation16 [shape = 'u8[512]{0}', space=vmem, size = 0x400, scoped, tag = 'input window, operand 11, single buffered']
    #allocation17 [shape = 'u8[512]{0}', space=vmem, size = 0x400, scoped, tag = 'input window, operand 13, single buffered']
    #allocation18 [shape = 's32[1]{0}', space=sflag, size = 0x4, scoped, tag = 'scoped memory for tpu_custom_call.1']
    #allocation19 [shape = 'u8[512]{0}', space=vmem, size = 0x400, scoped, tag = 'input window, operand 15, single buffered']
    #allocation20 [shape = 'u8[8192]{0}', space=vmem, size = 0x2000, scoped, tag = 'input window, operand 16, single buffered']
    #allocation21 [shape = 's32[1]{0}', space=sflag, size = 0x4, scoped, tag = 'scoped memory for tpu_custom_call.1']
    #allocation22 [shape = 'u8[512]{0}', space=vmem, size = 0x400, scoped, tag = 'input window, operand 17, single buffered']
    #allocation23 [shape = 'u8[8192]{0}', space=vmem, size = 0x2000, scoped, tag = 'output window, operand 0']
    %29 = vsyncpa [#allocation3], 0
    %s30 = scalar_lea.sflag [#allocation3], 1
    %31 = vsyncpa %s30, 0
    %32 = vsyncpa [#allocation6], 0
    %33 = vsyncpa [#allocation9], 0
    %34 = vsyncpa [#allocation12], 0
    %35 = vsyncpa [#allocation15], 0
    %36 = vsyncpa [#allocation18], 0
    %37 = vsyncpa [#allocation21], 0
    %38 = vsyncpa [#allocation4], 0
    %s39 = scalar_lea.sflag [#allocation4], 1
    %40 = vsyncpa %s39, 0
    loop: start=0, step=1, limit=4
    $region2: #{tpu_custom_call.1} parent=1 // loop_pre_header
      _
    $region3: #{tpu_custom_call.1} parent=1 // loop_header
      %s42 = sphi 0, %s46
      %p43 = scmp.ge.s32.totalorder %s42, 4
      %s52 = sphi 0, %s54
      %s55 = sphi 0, %s52
      %s56 = sphi 0, %s55
      %s72 = sphi 0, %s56
      %s78 = sphi 0, %s80
      %s81 = sphi 0, %s78
      %s82 = sphi 0, %s81
      %s98 = sphi 0, %s82
      %s104 = sphi 0, %s106
      %s107 = sphi 0, %s104
      %s108 = sphi 0, %s107
      %s124 = sphi 0, %s108
      %s130 = sphi 0, %s132
      %s133 = sphi 0, %s130
      %s134 = sphi 0, %s133
      %s150 = sphi 0, %s134
      %s154 = sphi 0, %s154
      %s156 = sphi 0, %s154
      %s157 = sphi 0, %s156
      %s171 = sphi 0, %s157
      %s175 = sphi 0, %s175
      %s177 = sphi 0, %s175
      %s178 = sphi 0, %s177
      %s192 = sphi 0, %s178
      %s196 = sphi 0, %s196
      %s198 = sphi 0, %s196
      %s199 = sphi 0, %s198
      %s213 = sphi 0, %s199
      %s217 = sphi 0, %s217
      %s219 = sphi 0, %s217
      %s220 = sphi 0, %s219
      %s234 = sphi 0, %s220
      %s238 = sphi 0, %s238
      %s240 = sphi 0, %s238
      %s241 = sphi 0, %s240
      %s255 = sphi 0, %s241
      %s259 = sphi 0, %s259
      %s261 = sphi 0, %s259
      %s262 = sphi 0, %s261
      %s276 = sphi 0, %s262
      %s280 = sphi 0, %s280
      %s282 = sphi 0, %s280
      %s283 = sphi 0, %s282
      %s297 = sphi 0, %s283
      %s301 = sphi 0, %s301
      %s303 = sphi 0, %s301
      %s304 = sphi 0, %s303
      %s318 = sphi 0, %s304
      %s322 = sphi 0, %s322
      %s324 = sphi 0, %s322
      %s325 = sphi 0, %s324
      %s339 = sphi 0, %s325
      %s343 = sphi 0, %s343
      %s345 = sphi 0, %s343
      %s346 = sphi 0, %s345
      %s360 = sphi 0, %s346
      %s364 = sphi 0, %s364
      %s366 = sphi 0, %s364
      %s367 = sphi 0, %s366
      %s381 = sphi 0, %s367
      %s385 = sphi 0, %s385
      %s387 = sphi 0, %s385
      %s388 = sphi 0, %s387
      %s402 = sphi 0, %s388
      %s406 = sphi 0, %s406
      %s408 = sphi 0, %s406
      %s409 = sphi 0, %s408
      %s423 = sphi 0, %s409
      %s427 = sphi 0, %s427
      %s429 = sphi 0, %s427
      %s430 = sphi 0, %s429
      %s444 = sphi 0, %s430
      %s448 = sphi 0, %s448
      %s450 = sphi 0, %s448
      %s451 = sphi 0, %s450
      %s465 = sphi 0, %s451
      %s469 = sphi 0, %s469
      %s471 = sphi 0, %s469
      %s472 = sphi 0, %s471
      %s486 = sphi 0, %s472
      %s490 = sphi 0, %s490
      %s492 = sphi 0, %s490
      %s493 = sphi 0, %s492
      %s507 = sphi 0, %s493
      %s511 = sphi 0, %s511
      %s513 = sphi 0, %s511
      %s514 = sphi 0, %s513
      %s528 = sphi 0, %s514
      %s532 = sphi 0, %s532
      %s534 = sphi 0, %s532
      %s535 = sphi 0, %s534
      %s549 = sphi 0, %s535
      %s553 = sphi 0, %s553
      %s555 = sphi 0, %s553
      %s556 = sphi 0, %s555
      %s570 = sphi 0, %s556
      %s576 = sphi 0, %s578
      %s579 = sphi 0, %s576
      %s580 = sphi 0, %s579
      %s596 = sphi 0, %s580
    $region4: #{tpu_custom_call.1} parent=1 // loop_header_branch
      %45 = sbr.rel (%p43) target = $region8
    $region5: #{tpu_custom_call.1} parent=1 // loop_body
      %s47 = ssub.s32 %s42, 1
      %s48 = ssub.s32 %s42, 2
      %s49 = sadd.s32 %s42, 1
      %s50 = ssub.s32 %s42, %s49
      %p51 = scmp.eq.s32.totalorder %s50, 0
      %s53 = sadd.s32 %s52, 1
      %s54 = scalar_select %p51, %s52, %s53
      %p57 = pneg %p51
      %p58 = scmp.eq.s32.totalorder %s42, 1
      %p59 = por %p57, %p58
      %p60 = scmp.ne.s32.totalorder %s52, %s55
      %p61 = scmp.eq.s32.totalorder %s42, 0
      %p62 = por %p60, %p61
      %p63 = scmp.ne.s32.totalorder %s52, %s55
      %p64 = scmp.eq.s32.totalorder %s47, 1
      %p65 = por %p63, %p64
      %p66 = scmp.ne.s32.totalorder %s55, %s56
      %p67 = scmp.eq.s32.totalorder %s47, 0
      %p68 = por %p66, %p67
      %p69 = scmp.ne.s32.totalorder %s55, %s56
      %p70 = scmp.eq.s32.totalorder %s48, 1
      %p71 = por %p69, %p70
      %p73 = scmp.ne.s32.totalorder %s56, %s72
      %p74 = scmp.eq.s32.totalorder %s48, 0
      %p75 = por %p73, %p74
      %s76 = ssub.s32 %s42, %s49
      %p77 = scmp.eq.s32.totalorder %s76, 0
      %s79 = sadd.s32 %s78, 1
      %s80 = scalar_select %p77, %s78, %s79
      %p83 = pneg %p77
      %p84 = scmp.eq.s32.totalorder %s42, 1
      %p85 = por %p83, %p84
      %p86 = scmp.ne.s32.totalorder %s78, %s81
      %p87 = scmp.eq.s32.totalorder %s42, 0
      %p88 = por %p86, %p87
      %p89 = scmp.ne.s32.totalorder %s78, %s81
      %p90 = scmp.eq.s32.totalorder %s47, 1
      %p91 = por %p89, %p90
      %p92 = scmp.ne.s32.totalorder %s81, %s82
      %p93 = scmp.eq.s32.totalorder %s47, 0
      %p94 = por %p92, %p93
      %p95 = scmp.ne.s32.totalorder %s81, %s82
      %p96 = scmp.eq.s32.totalorder %s48, 1
      %p97 = por %p95, %p96
      %p99 = scmp.ne.s32.totalorder %s82, %s98
      %p100 = scmp.eq.s32.totalorder %s48, 0
      %p101 = por %p99, %p100
      %s102 = ssub.s32 %s42, %s49
      %p103 = scmp.eq.s32.totalorder %s102, 0
      %s105 = sadd.s32 %s104, 1
      %s106 = scalar_select %p103, %s104, %s105
      %p109 = pneg %p103
      %p110 = scmp.eq.s32.totalorder %s42, 1
      %p111 = por %p109, %p110
      %p112 = scmp.ne.s32.totalorder %s104, %s107
      %p113 = scmp.eq.s32.totalorder %s42, 0
      %p114 = por %p112, %p113
      %p115 = scmp.ne.s32.totalorder %s104, %s107
      %p116 = scmp.eq.s32.totalorder %s47, 1
      %p117 = por %p115, %p116
      %p118 = scmp.ne.s32.totalorder %s107, %s108
      %p119 = scmp.eq.s32.totalorder %s47, 0
      %p120 = por %p118, %p119
      %p121 = scmp.ne.s32.totalorder %s107, %s108
      %p122 = scmp.eq.s32.totalorder %s48, 1
      %p123 = por %p121, %p122
      %p125 = scmp.ne.s32.totalorder %s108, %s124
      %p126 = scmp.eq.s32.totalorder %s48, 0
      %p127 = por %p125, %p126
      %s128 = ssub.s32 %s42, %s49
      %p129 = scmp.eq.s32.totalorder %s128, 0
      %s131 = sadd.s32 %s130, 1
      %s132 = scalar_select %p129, %s130, %s131
      %p135 = pneg %p129
      %p136 = scmp.eq.s32.totalorder %s42, 1
      %p137 = por %p135, %p136
      %p138 = scmp.ne.s32.totalorder %s130, %s133
      %p139 = scmp.eq.s32.totalorder %s42, 0
      %p140 = por %p138, %p139
      %p141 = scmp.ne.s32.totalorder %s130, %s133
      %p142 = scmp.eq.s32.totalorder %s47, 1
      %p143 = por %p141, %p142
      %p144 = scmp.ne.s32.totalorder %s133, %s134
      %p145 = scmp.eq.s32.totalorder %s47, 0
      %p146 = por %p144, %p145
      %p147 = scmp.ne.s32.totalorder %s133, %s134
      %p148 = scmp.eq.s32.totalorder %s48, 1
      %p149 = por %p147, %p148
      %p151 = scmp.ne.s32.totalorder %s134, %s150
      %p152 = scmp.eq.s32.totalorder %s48, 0
      %p153 = por %p151, %p152
      %s155 = sadd.s32 %s154, 1
      %p158 = scmp.eq.s32.totalorder %s42, 1
      %p159 = scmp.ne.s32.totalorder %s154, %s156
      %p160 = scmp.eq.s32.totalorder %s42, 0
      %p161 = por %p159, %p160
      %p162 = scmp.ne.s32.totalorder %s154, %s156
      %p163 = scmp.eq.s32.totalorder %s47, 1
      %p164 = por %p162, %p163
      %p165 = scmp.ne.s32.totalorder %s156, %s157
      %p166 = scmp.eq.s32.totalorder %s47, 0
      %p167 = por %p165, %p166
      %p168 = scmp.ne.s32.totalorder %s156, %s157
      %p169 = scmp.eq.s32.totalorder %s48, 1
      %p170 = por %p168, %p169
      %p172 = scmp.ne.s32.totalorder %s157, %s171
      %p173 = scmp.eq.s32.totalorder %s48, 0
      %p174 = por %p172, %p173
      %s176 = sadd.s32 %s175, 1
      %p179 = scmp.eq.s32.totalorder %s42, 1
      %p180 = scmp.ne.s32.totalorder %s175, %s177
      %p181 = scmp.eq.s32.totalorder %s42, 0
      %p182 = por %p180, %p181
      %p183 = scmp.ne.s32.totalorder %s175, %s177
      %p184 = scmp.eq.s32.totalorder %s47, 1
      %p185 = por %p183, %p184
      %p186 = scmp.ne.s32.totalorder %s177, %s178
      %p187 = scmp.eq.s32.totalorder %s47, 0
      %p188 = por %p186, %p187
      %p189 = scmp.ne.s32.totalorder %s177, %s178
      %p190 = scmp.eq.s32.totalorder %s48, 1
      %p191 = por %p189, %p190
      %p193 = scmp.ne.s32.totalorder %s178, %s192
      %p194 = scmp.eq.s32.totalorder %s48, 0
      %p195 = por %p193, %p194
      %s197 = sadd.s32 %s196, 1
      %p200 = scmp.eq.s32.totalorder %s42, 1
      %p201 = scmp.ne.s32.totalorder %s196, %s198
      %p202 = scmp.eq.s32.totalorder %s42, 0
      %p203 = por %p201, %p202
      %p204 = scmp.ne.s32.totalorder %s196, %s198
      %p205 = scmp.eq.s32.totalorder %s47, 1
      %p206 = por %p204, %p205
      %p207 = scmp.ne.s32.totalorder %s198, %s199
      %p208 = scmp.eq.s32.totalorder %s47, 0
      %p209 = por %p207, %p208
      %p210 = scmp.ne.s32.totalorder %s198, %s199
      %p211 = scmp.eq.s32.totalorder %s48, 1
      %p212 = por %p210, %p211
      %p214 = scmp.ne.s32.totalorder %s199, %s213
      %p215 = scmp.eq.s32.totalorder %s48, 0
      %p216 = por %p214, %p215
      %s218 = sadd.s32 %s217, 1
      %p221 = scmp.eq.s32.totalorder %s42, 1
      %p222 = scmp.ne.s32.totalorder %s217, %s219
      %p223 = scmp.eq.s32.totalorder %s42, 0
      %p224 = por %p222, %p223
      %p225 = scmp.ne.s32.totalorder %s217, %s219
      %p226 = scmp.eq.s32.totalorder %s47, 1
      %p227 = por %p225, %p226
      %p228 = scmp.ne.s32.totalorder %s219, %s220
      %p229 = scmp.eq.s32.totalorder %s47, 0
      %p230 = por %p228, %p229
      %p231 = scmp.ne.s32.totalorder %s219, %s220
      %p232 = scmp.eq.s32.totalorder %s48, 1
      %p233 = por %p231, %p232
      %p235 = scmp.ne.s32.totalorder %s220, %s234
      %p236 = scmp.eq.s32.totalorder %s48, 0
      %p237 = por %p235, %p236
      %s239 = sadd.s32 %s238, 1
      %p242 = scmp.eq.s32.totalorder %s42, 1
      %p243 = scmp.ne.s32.totalorder %s238, %s240
      %p244 = scmp.eq.s32.totalorder %s42, 0
      %p245 = por %p243, %p244
      %p246 = scmp.ne.s32.totalorder %s238, %s240
      %p247 = scmp.eq.s32.totalorder %s47, 1
      %p248 = por %p246, %p247
      %p249 = scmp.ne.s32.totalorder %s240, %s241
      %p250 = scmp.eq.s32.totalorder %s47, 0
      %p251 = por %p249, %p250
      %p252 = scmp.ne.s32.totalorder %s240, %s241
      %p253 = scmp.eq.s32.totalorder %s48, 1
      %p254 = por %p252, %p253
      %p256 = scmp.ne.s32.totalorder %s241, %s255
      %p257 = scmp.eq.s32.totalorder %s48, 0
      %p258 = por %p256, %p257
      %s260 = sadd.s32 %s259, 1
      %p263 = scmp.eq.s32.totalorder %s42, 1
      %p264 = scmp.ne.s32.totalorder %s259, %s261
      %p265 = scmp.eq.s32.totalorder %s42, 0
      %p266 = por %p264, %p265
      %p267 = scmp.ne.s32.totalorder %s259, %s261
      %p268 = scmp.eq.s32.totalorder %s47, 1
      %p269 = por %p267, %p268
      %p270 = scmp.ne.s32.totalorder %s261, %s262
      %p271 = scmp.eq.s32.totalorder %s47, 0
      %p272 = por %p270, %p271
      %p273 = scmp.ne.s32.totalorder %s261, %s262
      %p274 = scmp.eq.s32.totalorder %s48, 1
      %p275 = por %p273, %p274
      %p277 = scmp.ne.s32.totalorder %s262, %s276
      %p278 = scmp.eq.s32.totalorder %s48, 0
      %p279 = por %p277, %p278
      %s281 = sadd.s32 %s280, 1
      %p284 = scmp.eq.s32.totalorder %s42, 1
      %p285 = scmp.ne.s32.totalorder %s280, %s282
      %p286 = scmp.eq.s32.totalorder %s42, 0
      %p287 = por %p285, %p286
      %p288 = scmp.ne.s32.totalorder %s280, %s282
      %p289 = scmp.eq.s32.totalorder %s47, 1
      %p290 = por %p288, %p289
      %p291 = scmp.ne.s32.totalorder %s282, %s283
      %p292 = scmp.eq.s32.totalorder %s47, 0
      %p293 = por %p291, %p292
      %p294 = scmp.ne.s32.totalorder %s282, %s283
      %p295 = scmp.eq.s32.totalorder %s48, 1
      %p296 = por %p294, %p295
      %p298 = scmp.ne.s32.totalorder %s283, %s297
      %p299 = scmp.eq.s32.totalorder %s48, 0
      %p300 = por %p298, %p299
      %s302 = sadd.s32 %s301, 1
      %p305 = scmp.eq.s32.totalorder %s42, 1
      %p306 = scmp.ne.s32.totalorder %s301, %s303
      %p307 = scmp.eq.s32.totalorder %s42, 0
      %p308 = por %p306, %p307
      %p309 = scmp.ne.s32.totalorder %s301, %s303
      %p310 = scmp.eq.s32.totalorder %s47, 1
      %p311 = por %p309, %p310
      %p312 = scmp.ne.s32.totalorder %s303, %s304
      %p313 = scmp.eq.s32.totalorder %s47, 0
      %p314 = por %p312, %p313
      %p315 = scmp.ne.s32.totalorder %s303, %s304
      %p316 = scmp.eq.s32.totalorder %s48, 1
      %p317 = por %p315, %p316
      %p319 = scmp.ne.s32.totalorder %s304, %s318
      %p320 = scmp.eq.s32.totalorder %s48, 0
      %p321 = por %p319, %p320
      %s323 = sadd.s32 %s322, 1
      %p326 = scmp.eq.s32.totalorder %s42, 1
      %p327 = scmp.ne.s32.totalorder %s322, %s324
      %p328 = scmp.eq.s32.totalorder %s42, 0
      %p329 = por %p327, %p328
      %p330 = scmp.ne.s32.totalorder %s322, %s324
      %p331 = scmp.eq.s32.totalorder %s47, 1
      %p332 = por %p330, %p331
      %p333 = scmp.ne.s32.totalorder %s324, %s325
      %p334 = scmp.eq.s32.totalorder %s47, 0
      %p335 = por %p333, %p334
      %p336 = scmp.ne.s32.totalorder %s324, %s325
      %p337 = scmp.eq.s32.totalorder %s48, 1
      %p338 = por %p336, %p337
      %p340 = scmp.ne.s32.totalorder %s325, %s339
      %p341 = scmp.eq.s32.totalorder %s48, 0
      %p342 = por %p340, %p341
      %s344 = sadd.s32 %s343, 1
      %p347 = scmp.eq.s32.totalorder %s42, 1
      %p348 = scmp.ne.s32.totalorder %s343, %s345
      %p349 = scmp.eq.s32.totalorder %s42, 0
      %p350 = por %p348, %p349
      %p351 = scmp.ne.s32.totalorder %s343, %s345
      %p352 = scmp.eq.s32.totalorder %s47, 1
      %p353 = por %p351, %p352
      %p354 = scmp.ne.s32.totalorder %s345, %s346
      %p355 = scmp.eq.s32.totalorder %s47, 0
      %p356 = por %p354, %p355
      %p357 = scmp.ne.s32.totalorder %s345, %s346
      %p358 = scmp.eq.s32.totalorder %s48, 1
      %p359 = por %p357, %p358
      %p361 = scmp.ne.s32.totalorder %s346, %s360
      %p362 = scmp.eq.s32.totalorder %s48, 0
      %p363 = por %p361, %p362
      %s365 = sadd.s32 %s364, 1
      %p368 = scmp.eq.s32.totalorder %s42, 1
      %p369 = scmp.ne.s32.totalorder %s364, %s366
      %p370 = scmp.eq.s32.totalorder %s42, 0
      %p371 = por %p369, %p370
      %p372 = scmp.ne.s32.totalorder %s364, %s366
      %p373 = scmp.eq.s32.totalorder %s47, 1
      %p374 = por %p372, %p373
      %p375 = scmp.ne.s32.totalorder %s366, %s367
      %p376 = scmp.eq.s32.totalorder %s47, 0
      %p377 = por %p375, %p376
      %p378 = scmp.ne.s32.totalorder %s366, %s367
      %p379 = scmp.eq.s32.totalorder %s48, 1
      %p380 = por %p378, %p379
      %p382 = scmp.ne.s32.totalorder %s367, %s381
      %p383 = scmp.eq.s32.totalorder %s48, 0
      %p384 = por %p382, %p383
      %s386 = sadd.s32 %s385, 1
      %p389 = scmp.eq.s32.totalorder %s42, 1
      %p390 = scmp.ne.s32.totalorder %s385, %s387
      %p391 = scmp.eq.s32.totalorder %s42, 0
      %p392 = por %p390, %p391
      %p393 = scmp.ne.s32.totalorder %s385, %s387
      %p394 = scmp.eq.s32.totalorder %s47, 1
      %p395 = por %p393, %p394
      %p396 = scmp.ne.s32.totalorder %s387, %s388
      %p397 = scmp.eq.s32.totalorder %s47, 0
      %p398 = por %p396, %p397
      %p399 = scmp.ne.s32.totalorder %s387, %s388
      %p400 = scmp.eq.s32.totalorder %s48, 1
      %p401 = por %p399, %p400
      %p403 = scmp.ne.s32.totalorder %s388, %s402
      %p404 = scmp.eq.s32.totalorder %s48, 0
      %p405 = por %p403, %p404
      %s407 = sadd.s32 %s406, 1
      %p410 = scmp.eq.s32.totalorder %s42, 1
      %p411 = scmp.ne.s32.totalorder %s406, %s408
      %p412 = scmp.eq.s32.totalorder %s42, 0
      %p413 = por %p411, %p412
      %p414 = scmp.ne.s32.totalorder %s406, %s408
      %p415 = scmp.eq.s32.totalorder %s47, 1
      %p416 = por %p414, %p415
      %p417 = scmp.ne.s32.totalorder %s408, %s409
      %p418 = scmp.eq.s32.totalorder %s47, 0
      %p419 = por %p417, %p418
      %p420 = scmp.ne.s32.totalorder %s408, %s409
      %p421 = scmp.eq.s32.totalorder %s48, 1
      %p422 = por %p420, %p421
      %p424 = scmp.ne.s32.totalorder %s409, %s423
      %p425 = scmp.eq.s32.totalorder %s48, 0
      %p426 = por %p424, %p425
      %s428 = sadd.s32 %s427, 1
      %p431 = scmp.eq.s32.totalorder %s42, 1
      %p432 = scmp.ne.s32.totalorder %s427, %s429
      %p433 = scmp.eq.s32.totalorder %s42, 0
      %p434 = por %p432, %p433
      %p435 = scmp.ne.s32.totalorder %s427, %s429
      %p436 = scmp.eq.s32.totalorder %s47, 1
      %p437 = por %p435, %p436
      %p438 = scmp.ne.s32.totalorder %s429, %s430
      %p439 = scmp.eq.s32.totalorder %s47, 0
      %p440 = por %p438, %p439
      %p441 = scmp.ne.s32.totalorder %s429, %s430
      %p442 = scmp.eq.s32.totalorder %s48, 1
      %p443 = por %p441, %p442
      %p445 = scmp.ne.s32.totalorder %s430, %s444
      %p446 = scmp.eq.s32.totalorder %s48, 0
      %p447 = por %p445, %p446
      %s449 = sadd.s32 %s448, 1
      %p452 = scmp.eq.s32.totalorder %s42, 1
      %p453 = scmp.ne.s32.totalorder %s448, %s450
      %p454 = scmp.eq.s32.totalorder %s42, 0
      %p455 = por %p453, %p454
      %p456 = scmp.ne.s32.totalorder %s448, %s450
      %p457 = scmp.eq.s32.totalorder %s47, 1
      %p458 = por %p456, %p457
      %p459 = scmp.ne.s32.totalorder %s450, %s451
      %p460 = scmp.eq.s32.totalorder %s47, 0
      %p461 = por %p459, %p460
      %p462 = scmp.ne.s32.totalorder %s450, %s451
      %p463 = scmp.eq.s32.totalorder %s48, 1
      %p464 = por %p462, %p463
      %p466 = scmp.ne.s32.totalorder %s451, %s465
      %p467 = scmp.eq.s32.totalorder %s48, 0
      %p468 = por %p466, %p467
      %s470 = sadd.s32 %s469, 1
      %p473 = scmp.eq.s32.totalorder %s42, 1
      %p474 = scmp.ne.s32.totalorder %s469, %s471
      %p475 = scmp.eq.s32.totalorder %s42, 0
      %p476 = por %p474, %p475
      %p477 = scmp.ne.s32.totalorder %s469, %s471
      %p478 = scmp.eq.s32.totalorder %s47, 1
      %p479 = por %p477, %p478
      %p480 = scmp.ne.s32.totalorder %s471, %s472
      %p481 = scmp.eq.s32.totalorder %s47, 0
      %p482 = por %p480, %p481
      %p483 = scmp.ne.s32.totalorder %s471, %s472
      %p484 = scmp.eq.s32.totalorder %s48, 1
      %p485 = por %p483, %p484
      %p487 = scmp.ne.s32.totalorder %s472, %s486
      %p488 = scmp.eq.s32.totalorder %s48, 0
      %p489 = por %p487, %p488
      %s491 = sadd.s32 %s490, 1
      %p494 = scmp.eq.s32.totalorder %s42, 1
      %p495 = scmp.ne.s32.totalorder %s490, %s492
      %p496 = scmp.eq.s32.totalorder %s42, 0
      %p497 = por %p495, %p496
      %p498 = scmp.ne.s32.totalorder %s490, %s492
      %p499 = scmp.eq.s32.totalorder %s47, 1
      %p500 = por %p498, %p499
      %p501 = scmp.ne.s32.totalorder %s492, %s493
      %p502 = scmp.eq.s32.totalorder %s47, 0
      %p503 = por %p501, %p502
      %p504 = scmp.ne.s32.totalorder %s492, %s493
      %p505 = scmp.eq.s32.totalorder %s48, 1
      %p506 = por %p504, %p505
      %p508 = scmp.ne.s32.totalorder %s493, %s507
      %p509 = scmp.eq.s32.totalorder %s48, 0
      %p510 = por %p508, %p509
      %s512 = sadd.s32 %s511, 1
      %p515 = scmp.eq.s32.totalorder %s42, 1
      %p516 = scmp.ne.s32.totalorder %s511, %s513
      %p517 = scmp.eq.s32.totalorder %s42, 0
      %p518 = por %p516, %p517
      %p519 = scmp.ne.s32.totalorder %s511, %s513
      %p520 = scmp.eq.s32.totalorder %s47, 1
      %p521 = por %p519, %p520
      %p522 = scmp.ne.s32.totalorder %s513, %s514
      %p523 = scmp.eq.s32.totalorder %s47, 0
      %p524 = por %p522, %p523
      %p525 = scmp.ne.s32.totalorder %s513, %s514
      %p526 = scmp.eq.s32.totalorder %s48, 1
      %p527 = por %p525, %p526
      %p529 = scmp.ne.s32.totalorder %s514, %s528
      %p530 = scmp.eq.s32.totalorder %s48, 0
      %p531 = por %p529, %p530
      %s533 = sadd.s32 %s532, 1
      %p536 = scmp.eq.s32.totalorder %s42, 1
      %p537 = scmp.ne.s32.totalorder %s532, %s534
      %p538 = scmp.eq.s32.totalorder %s42, 0
      %p539 = por %p537, %p538
      %p540 = scmp.ne.s32.totalorder %s532, %s534
      %p541 = scmp.eq.s32.totalorder %s47, 1
      %p542 = por %p540, %p541
      %p543 = scmp.ne.s32.totalorder %s534, %s535
      %p544 = scmp.eq.s32.totalorder %s47, 0
      %p545 = por %p543, %p544
      %p546 = scmp.ne.s32.totalorder %s534, %s535
      %p547 = scmp.eq.s32.totalorder %s48, 1
      %p548 = por %p546, %p547
      %p550 = scmp.ne.s32.totalorder %s535, %s549
      %p551 = scmp.eq.s32.totalorder %s48, 0
      %p552 = por %p550, %p551
      %s554 = sadd.s32 %s553, 1
      %p557 = scmp.eq.s32.totalorder %s42, 1
      %p558 = scmp.ne.s32.totalorder %s553, %s555
      %p559 = scmp.eq.s32.totalorder %s42, 0
      %p560 = por %p558, %p559
      %p561 = scmp.ne.s32.totalorder %s553, %s555
      %p562 = scmp.eq.s32.totalorder %s47, 1
      %p563 = por %p561, %p562
      %p564 = scmp.ne.s32.totalorder %s555, %s556
      %p565 = scmp.eq.s32.totalorder %s47, 0
      %p566 = por %p564, %p565
      %p567 = scmp.ne.s32.totalorder %s555, %s556
      %p568 = scmp.eq.s32.totalorder %s48, 1
      %p569 = por %p567, %p568
      %p571 = scmp.ne.s32.totalorder %s556, %s570
      %p572 = scmp.eq.s32.totalorder %s48, 0
      %p573 = por %p571, %p572
      %s574 = ssub.s32 %s42, %s49
      %p575 = scmp.eq.s32.totalorder %s574, 0
      %s577 = sadd.s32 %s576, 1
      %s578 = scalar_select %p575, %s576, %s577
      %p581 = pneg %p575
      %p582 = scmp.eq.s32.totalorder %s42, 1
      %p583 = por %p581, %p582
      %p584 = scmp.ne.s32.totalorder %s576, %s579
      %p585 = scmp.eq.s32.totalorder %s42, 0
      %p586 = por %p584, %p585
      %p587 = scmp.ne.s32.totalorder %s576, %s579
      %p588 = scmp.eq.s32.totalorder %s47, 1
      %p589 = por %p587, %p588
      %p590 = scmp.ne.s32.totalorder %s579, %s580
      %p591 = scmp.eq.s32.totalorder %s47, 0
      %p592 = por %p590, %p591
      %p593 = scmp.ne.s32.totalorder %s579, %s580
      %p594 = scmp.eq.s32.totalorder %s48, 1
      %p595 = por %p593, %p594
      %p597 = scmp.ne.s32.totalorder %s580, %s596
      %p598 = scmp.eq.s32.totalorder %s48, 0
      %p599 = por %p597, %p598
      %p600 = scmp.le.s32.totalorder 1, %s42
      %p601 = scmp.lt.s32.totalorder %s42, 3
      %p602 = pnand %p600, %p601
      %p603 = pneg %p602
      // Predicated region
      $region9: #{tpu_custom_call.1} parent=5 // pred_check
        _
      $region10: #{tpu_custom_call.1} parent=5 // pred_check_branch
        %605 = sbr.rel (%p602) target = $region12
      $region11: #{tpu_custom_call.1} parent=5 // pred_region
        %s606 = ssub.s32 %s42, 1
        // Predicated region
        $region13: #{tpu_custom_call.1} parent=11 // pred_check
          %p607 = pneg %p167
        $region14: #{tpu_custom_call.1} parent=11 // pred_check_branch
          %609 = sbr.rel (%p607) target = $region16
        $region15: #{tpu_custom_call.1} parent=11 // pred_region
          %s611 = ssub.s32 16, 16
          %612 = vsyncadd [#allocation6], %s611
          %s614 = sshll.u32 [#allocation5], 4
          %s615 = int_to_ptr.vmem [resolvable:$true] %s614
          %617 = dma.hbm_to_vmem [thread:$0]  %s4, 16, %s615, [#allocation6]
        $region16: #{tpu_custom_call.1} parent=11 // pred_fallthru
          _
        // Predicated region
        $region17: #{tpu_custom_call.1} parent=11 // pred_check
          %p618 = pneg %p188
        $region18: #{tpu_custom_call.1} parent=11 // pred_check_branch
          %620 = sbr.rel (%p618) target = $region20
        $region19: #{tpu_custom_call.1} parent=11 // pred_region
          %s622 = ssub.s32 16, 16
          %623 = vsyncadd [#allocation6], %s622
          %s625 = sshll.u32 [#allocation7], 4
          %s626 = int_to_ptr.vmem [resolvable:$true] %s625
          %628 = dma.hbm_to_vmem [thread:$0]  %s5, 16, %s626, [#allocation6]
        $region20: #{tpu_custom_call.1} parent=11 // pred_fallthru
          _
        // Predicated region
        $region21: #{tpu_custom_call.1} parent=11 // pred_check
          %p629 = pneg %p209
        $region22: #{tpu_custom_call.1} parent=11 // pred_check_branch
          %631 = sbr.rel (%p629) target = $region24
        $region23: #{tpu_custom_call.1} parent=11 // pred_region
          %s633 = ssub.s32 256, 256
          %634 = vsyncadd [#allocation9], %s633
          %s635 = sshll.u32 [#allocation8], 4
          %s636 = int_to_ptr.vmem [resolvable:$true] %s635
          %641 = dma.hbm_to_vmem [thread:$0]  %s6, 256, %s636, [#allocation9], 64, 64, 4
        $region24: #{tpu_custom_call.1} parent=11 // pred_fallthru
          _
        // Predicated region
        $region25: #{tpu_custom_call.1} parent=11 // pred_check
          %p642 = pneg %p230
        $region26: #{tpu_custom_call.1} parent=11 // pred_check_branch
          %644 = sbr.rel (%p642) target = $region28
        $region27: #{tpu_custom_call.1} parent=11 // pred_region
          %s646 = ssub.s32 16, 16
          %647 = vsyncadd [#allocation9], %s646
          %s649 = sshll.u32 [#allocation10], 4
          %s650 = int_to_ptr.vmem [resolvable:$true] %s649
          %652 = dma.hbm_to_vmem [thread:$0]  %s7, 16, %s650, [#allocation9]
        $region28: #{tpu_custom_call.1} parent=11 // pred_fallthru
          _
        // Predicated region
        $region29: #{tpu_custom_call.1} parent=11 // pred_check
          %p653 = pneg %p251
        $region30: #{tpu_custom_call.1} parent=11 // pred_check_branch
          %655 = sbr.rel (%p653) target = $region32
        $region31: #{tpu_custom_call.1} parent=11 // pred_region
          %s657 = ssub.s32 256, 256
          %658 = vsyncadd [#allocation12], %s657
          %s659 = sshll.u32 [#allocation11], 4
          %s660 = int_to_ptr.vmem [resolvable:$true] %s659
          %665 = dma.hbm_to_vmem [thread:$0]  %s8, 256, %s660, [#allocation12], 64, 64, 4
        $region32: #{tpu_custom_call.1} parent=11 // pred_fallthru
          _
        // Predicated region
        $region33: #{tpu_custom_call.1} parent=11 // pred_check
          %p666 = pneg %p272
        $region34: #{tpu_custom_call.1} parent=11 // pred_check_branch
          %668 = sbr.rel (%p666) target = $region36
        $region35: #{tpu_custom_call.1} parent=11 // pred_region
          %s670 = ssub.s32 16, 16
          %671 = vsyncadd [#allocation12], %s670
          %s673 = sshll.u32 [#allocation13], 4
          %s674 = int_to_ptr.vmem [resolvable:$true] %s673
          %676 = dma.hbm_to_vmem [thread:$0]  %s9, 16, %s674, [#allocation12]
        $region36: #{tpu_custom_call.1} parent=11 // pred_fallthru
          _
        // Predicated region
        $region37: #{tpu_custom_call.1} parent=11 // pred_check
          %p677 = pneg %p293
        $region38: #{tpu_custom_call.1} parent=11 // pred_check_branch
          %679 = sbr.rel (%p677) target = $region40
        $region39: #{tpu_custom_call.1} parent=11 // pred_region
          %s681 = ssub.s32 16, 16
          %682 = vsyncadd [#allocation15], %s681
          %s684 = sshll.u32 [#allocation14], 4
          %s685 = int_to_ptr.vmem [resolvable:$true] %s684
          %687 = dma.hbm_to_vmem [thread:$0]  %s10, 16, %s685, [#allocation15]
        $region40: #{tpu_custom_call.1} parent=11 // pred_fallthru
          _
        // Predicated region
        $region41: #{tpu_custom_call.1} parent=11 // pred_check
          %p688 = pneg %p314
        $region42: #{tpu_custom_call.1} parent=11 // pred_check_branch
          %690 = sbr.rel (%p688) target = $region44
        $region43: #{tpu_custom_call.1} parent=11 // pred_region
          %s692 = ssub.s32 16, 16
          %693 = vsyncadd [#allocation15], %s692
          %s695 = sshll.u32 [#allocation16], 4
          %s696 = int_to_ptr.vmem [resolvable:$true] %s695
          %698 = dma.hbm_to_vmem [thread:$0]  %s11, 16, %s696, [#allocation15]
        $region44: #{tpu_custom_call.1} parent=11 // pred_fallthru
          _
        // Predicated region
        $region45: #{tpu_custom_call.1} parent=11 // pred_check
          %p699 = pneg %p335
        $region46: #{tpu_custom_call.1} parent=11 // pred_check_branch
          %701 = sbr.rel (%p699) target = $region48
        $region47: #{tpu_custom_call.1} parent=11 // pred_region
          _
        $region48: #{tpu_custom_call.1} parent=11 // pred_fallthru
          _
        // Predicated region
        $region49: #{tpu_custom_call.1} parent=11 // pred_check
          %p702 = pneg %p356
        $region50: #{tpu_custom_call.1} parent=11 // pred_check_branch
          %704 = sbr.rel (%p702) target = $region52
        $region51: #{tpu_custom_call.1} parent=11 // pred_region
          %s706 = ssub.s32 16, 16
          %707 = vsyncadd [#allocation18], %s706
          %s709 = sshll.u32 [#allocation17], 4
          %s710 = int_to_ptr.vmem [resolvable:$true] %s709
          %712 = dma.hbm_to_vmem [thread:$0]  %s13, 16, %s710, [#allocation18]
        $region52: #{tpu_custom_call.1} parent=11 // pred_fallthru
          _
        // Predicated region
        $region53: #{tpu_custom_call.1} parent=11 // pred_check
          %p713 = pneg %p377
        $region54: #{tpu_custom_call.1} parent=11 // pred_check_branch
          %715 = sbr.rel (%p713) target = $region56
        $region55: #{tpu_custom_call.1} parent=11 // pred_region
          _
        $region56: #{tpu_custom_call.1} parent=11 // pred_fallthru
          _
        // Predicated region
        $region57: #{tpu_custom_call.1} parent=11 // pred_check
          %p716 = pneg %p398
        $region58: #{tpu_custom_call.1} parent=11 // pred_check_branch
          %718 = sbr.rel (%p716) target = $region60
        $region59: #{tpu_custom_call.1} parent=11 // pred_region
          %s720 = ssub.s32 16, 16
          %721 = vsyncadd [#allocation18], %s720
          %s723 = sshll.u32 [#allocation19], 4
          %s724 = int_to_ptr.vmem [resolvable:$true] %s723
          %726 = dma.hbm_to_vmem [thread:$0]  %s15, 16, %s724, [#allocation18]
        $region60: #{tpu_custom_call.1} parent=11 // pred_fallthru
          _
        // Predicated region
        $region61: #{tpu_custom_call.1} parent=11 // pred_check
          %p727 = pneg %p419
        $region62: #{tpu_custom_call.1} parent=11 // pred_check_branch
          %729 = sbr.rel (%p727) target = $region64
        $region63: #{tpu_custom_call.1} parent=11 // pred_region
          %s731 = ssub.s32 256, 256
          %732 = vsyncadd [#allocation21], %s731
          %s733 = sshll.u32 [#allocation20], 4
          %s734 = int_to_ptr.vmem [resolvable:$true] %s733
          %739 = dma.hbm_to_vmem [thread:$0]  %s16, 256, %s734, [#allocation21], 64, 64, 4
        $region64: #{tpu_custom_call.1} parent=11 // pred_fallthru
          _
        // Predicated region
        $region65: #{tpu_custom_call.1} parent=11 // pred_check
          %p740 = pneg %p440
        $region66: #{tpu_custom_call.1} parent=11 // pred_check_branch
          %742 = sbr.rel (%p740) target = $region68
        $region67: #{tpu_custom_call.1} parent=11 // pred_region
          %s744 = ssub.s32 16, 16
          %745 = vsyncadd [#allocation21], %s744
          %s747 = sshll.u32 [#allocation22], 4
          %s748 = int_to_ptr.vmem [resolvable:$true] %s747
          %750 = dma.hbm_to_vmem [thread:$0]  %s17, 16, %s748, [#allocation21]
        $region68: #{tpu_custom_call.1} parent=11 // pred_fallthru
          _
        // Predicated region
        $region69: #{tpu_custom_call.1} parent=11 // pred_check
          %p751 = pneg %p461
        $region70: #{tpu_custom_call.1} parent=11 // pred_check_branch
          %753 = sbr.rel (%p751) target = $region72
        $region71: #{tpu_custom_call.1} parent=11 // pred_region
          _
        $region72: #{tpu_custom_call.1} parent=11 // pred_fallthru
          _
        // Predicated region
        $region73: #{tpu_custom_call.1} parent=11 // pred_check
          %p754 = pneg %p482
        $region74: #{tpu_custom_call.1} parent=11 // pred_check_branch
          %756 = sbr.rel (%p754) target = $region76
        $region75: #{tpu_custom_call.1} parent=11 // pred_region
          _
        $region76: #{tpu_custom_call.1} parent=11 // pred_fallthru
          _
        // Predicated region
        $region77: #{tpu_custom_call.1} parent=11 // pred_check
          %p757 = pneg %p503
        $region78: #{tpu_custom_call.1} parent=11 // pred_check_branch
          %759 = sbr.rel (%p757) target = $region80
        $region79: #{tpu_custom_call.1} parent=11 // pred_region
          _
        $region80: #{tpu_custom_call.1} parent=11 // pred_fallthru
          _
        // Predicated region
        $region81: #{tpu_custom_call.1} parent=11 // pred_check
          %p760 = pneg %p524
        $region82: #{tpu_custom_call.1} parent=11 // pred_check_branch
          %762 = sbr.rel (%p760) target = $region84
        $region83: #{tpu_custom_call.1} parent=11 // pred_region
          _
        $region84: #{tpu_custom_call.1} parent=11 // pred_fallthru
          _
        // Predicated region
        $region85: #{tpu_custom_call.1} parent=11 // pred_check
          %p763 = pneg %p545
        $region86: #{tpu_custom_call.1} parent=11 // pred_check_branch
          %765 = sbr.rel (%p763) target = $region88
        $region87: #{tpu_custom_call.1} parent=11 // pred_region
          _
        $region88: #{tpu_custom_call.1} parent=11 // pred_fallthru
          _
        // Predicated region
        $region89: #{tpu_custom_call.1} parent=11 // pred_check
          %p766 = pneg %p566
        $region90: #{tpu_custom_call.1} parent=11 // pred_check_branch
          %768 = sbr.rel (%p766) target = $region92
        $region91: #{tpu_custom_call.1} parent=11 // pred_region
          _
        $region92: #{tpu_custom_call.1} parent=11 // pred_fallthru
          _
      $region12: #{tpu_custom_call.1} parent=5 // pred_fallthru
        _
      %p769 = scmp.lt.s32.totalorder %s42, 2
      // Predicated region
      $region93: #{tpu_custom_call.1} parent=5 // pred_check
        %p770 = pneg %p769
      $region94: #{tpu_custom_call.1} parent=5 // pred_check_branch
        %772 = sbr.rel (%p770) target = $region96
      $region95: #{tpu_custom_call.1} parent=5 // pred_region
        // Predicated region
        $region97: #{tpu_custom_call.1} parent=95 // pred_check
          %p773 = pneg %p62
        $region98: #{tpu_custom_call.1} parent=95 // pred_check_branch
          %775 = sbr.rel (%p773) target = $region100
        $region99: #{tpu_custom_call.1} parent=95 // pred_region
          %p776 = scmp.lt.s32.totalorder %s42, 1
          %s777 = scalar_select %p776, %s42, 1
          %s778 = smul.addr %s777, 8
          %s779 = scalar_lea.vmem %s0, %s778
        $region100: #{tpu_custom_call.1} parent=95 // pred_fallthru
          _
        // Predicated region
        $region101: #{tpu_custom_call.1} parent=95 // pred_check
          %p780 = pneg %p88
        $region102: #{tpu_custom_call.1} parent=95 // pred_check_branch
          %782 = sbr.rel (%p780) target = $region104
        $region103: #{tpu_custom_call.1} parent=95 // pred_region
          %p783 = scmp.lt.s32.totalorder %s42, 1
          %s784 = scalar_select %p783, %s42, 1
          %s785 = smul.addr %s784, 8
          %s786 = scalar_lea.vmem %s1, %s785
        $region104: #{tpu_custom_call.1} parent=95 // pred_fallthru
          _
        // Predicated region
        $region105: #{tpu_custom_call.1} parent=95 // pred_check
          %p787 = pneg %p114
        $region106: #{tpu_custom_call.1} parent=95 // pred_check_branch
          %789 = sbr.rel (%p787) target = $region108
        $region107: #{tpu_custom_call.1} parent=95 // pred_region
          %p790 = scmp.lt.s32.totalorder %s42, 1
          %s791 = scalar_select %p790, %s42, 1
          %s792 = smul.addr %s791, 8
          %s793 = scalar_lea.vmem %s2, %s792
        $region108: #{tpu_custom_call.1} parent=95 // pred_fallthru
          _
        // Predicated region
        $region109: #{tpu_custom_call.1} parent=95 // pred_check
          %p794 = pneg %p140
        $region110: #{tpu_custom_call.1} parent=95 // pred_check_branch
          %796 = sbr.rel (%p794) target = $region112
        $region111: #{tpu_custom_call.1} parent=95 // pred_region
          %s797 = sand.u32 %s130, 1
          %s798 = scalar_lea.sflag [#allocation3], %s797
          %s799 = sand.u32 %s130, 1
          %s800 = scalar_lea.vmem [#allocation2], %s799
          %s802 = ssub.s32 16, 16
          %803 = vsyncadd %s798, %s802
          %s804 = smul.addr %s42, 16
          %s805 = scalar_lea.hbm %s3, %s804
          %s807 = sshll.u32 %s800, 4
          %s808 = int_to_ptr.vmem [resolvable:$true] %s807
          %810 = dma.hbm_to_vmem [thread:$0]  %s805, 16, %s808, %s798
        $region112: #{tpu_custom_call.1} parent=95 // pred_fallthru
          _
      $region96: #{tpu_custom_call.1} parent=5 // pred_fallthru
        _
      %p811 = scmp.le.s32.totalorder 1, %s42
      %p812 = scmp.lt.s32.totalorder %s42, 3
      %p813 = pnand %p811, %p812
      %p814 = pneg %p813
      // Predicated region
      $region113: #{tpu_custom_call.1} parent=5 // pred_check
        _
      $region114: #{tpu_custom_call.1} parent=5 // pred_check_branch
        %816 = sbr.rel (%p813) target = $region116
      $region115: #{tpu_custom_call.1} parent=5 // pred_region
        %s817 = ssub.s32 %s42, 1
        %s818 = sand.u32 %s133, 1
        %s819 = scalar_lea.sflag [#allocation3], %s818
        %s820 = sand.u32 %s133, 1
        %s821 = scalar_lea.vmem [#allocation2], %s820
        // Predicated region
        $region117: #{tpu_custom_call.1} parent=115 // pred_check
          %p822 = pneg %p146
        $region118: #{tpu_custom_call.1} parent=115 // pred_check_branch
          %824 = sbr.rel (%p822) target = $region120
        $region119: #{tpu_custom_call.1} parent=115 // pred_region
          %825 = dma.done %s819, 16
        $region120: #{tpu_custom_call.1} parent=115 // pred_fallthru
          _
        // Predicated region
        $region121: #{tpu_custom_call.1} parent=115 // pred_check
          %p826 = pneg %p167
        $region122: #{tpu_custom_call.1} parent=115 // pred_check_branch
          %828 = sbr.rel (%p826) target = $region124
        $region123: #{tpu_custom_call.1} parent=115 // pred_region
          %829 = dma.done [#allocation6], 16
        $region124: #{tpu_custom_call.1} parent=115 // pred_fallthru
          _
        // Predicated region
        $region125: #{tpu_custom_call.1} parent=115 // pred_check
          %p830 = pneg %p188
        $region126: #{tpu_custom_call.1} parent=115 // pred_check_branch
          %832 = sbr.rel (%p830) target = $region128
        $region127: #{tpu_custom_call.1} parent=115 // pred_region
          %833 = dma.done [#allocation6], 16
        $region128: #{tpu_custom_call.1} parent=115 // pred_fallthru
          _
        // Predicated region
        $region129: #{tpu_custom_call.1} parent=115 // pred_check
          %p834 = pneg %p209
        $region130: #{tpu_custom_call.1} parent=115 // pred_check_branch
          %836 = sbr.rel (%p834) target = $region132
        $region131: #{tpu_custom_call.1} parent=115 // pred_region
          %837 = dma.done [#allocation9], 256
        $region132: #{tpu_custom_call.1} parent=115 // pred_fallthru
          _
        // Predicated region
        $region133: #{tpu_custom_call.1} parent=115 // pred_check
          %p838 = pneg %p230
        $region134: #{tpu_custom_call.1} parent=115 // pred_check_branch
          %840 = sbr.rel (%p838) target = $region136
        $region135: #{tpu_custom_call.1} parent=115 // pred_region
          %841 = dma.done [#allocation9], 16
        $region136: #{tpu_custom_call.1} parent=115 // pred_fallthru
          _
        // Predicated region
        $region137: #{tpu_custom_call.1} parent=115 // pred_check
          %p842 = pneg %p251
        $region138: #{tpu_custom_call.1} parent=115 // pred_check_branch
          %844 = sbr.rel (%p842) target = $region140
        $region139: #{tpu_custom_call.1} parent=115 // pred_region
          %845 = dma.done [#allocation12], 256
        $region140: #{tpu_custom_call.1} parent=115 // pred_fallthru
          _
        // Predicated region
        $region141: #{tpu_custom_call.1} parent=115 // pred_check
          %p846 = pneg %p272
        $region142: #{tpu_custom_call.1} parent=115 // pred_check_branch
          %848 = sbr.rel (%p846) target = $region144
        $region143: #{tpu_custom_call.1} parent=115 // pred_region
          %849 = dma.done [#allocation12], 16
        $region144: #{tpu_custom_call.1} parent=115 // pred_fallthru
          _
        // Predicated region
        $region145: #{tpu_custom_call.1} parent=115 // pred_check
          %p850 = pneg %p293
        $region146: #{tpu_custom_call.1} parent=115 // pred_check_branch
          %852 = sbr.rel (%p850) target = $region148
        $region147: #{tpu_custom_call.1} parent=115 // pred_region
          %853 = dma.done [#allocation15], 16
        $region148: #{tpu_custom_call.1} parent=115 // pred_fallthru
          _
        // Predicated region
        $region149: #{tpu_custom_call.1} parent=115 // pred_check
          %p854 = pneg %p314
        $region150: #{tpu_custom_call.1} parent=115 // pred_check_branch
          %856 = sbr.rel (%p854) target = $region152
        $region151: #{tpu_custom_call.1} parent=115 // pred_region
          %857 = dma.done [#allocation15], 16
        $region152: #{tpu_custom_call.1} parent=115 // pred_fallthru
          _
        // Predicated region
        $region153: #{tpu_custom_call.1} parent=115 // pred_check
          %p858 = pneg %p356
        $region154: #{tpu_custom_call.1} parent=115 // pred_check_branch
          %860 = sbr.rel (%p858) target = $region156
        $region155: #{tpu_custom_call.1} parent=115 // pred_region
          %861 = dma.done [#allocation18], 16
        $region156: #{tpu_custom_call.1} parent=115 // pred_fallthru
          _
        // Predicated region
        $region157: #{tpu_custom_call.1} parent=115 // pred_check
          %p862 = pneg %p398
        $region158: #{tpu_custom_call.1} parent=115 // pred_check_branch
          %864 = sbr.rel (%p862) target = $region160
        $region159: #{tpu_custom_call.1} parent=115 // pred_region
          %865 = dma.done [#allocation18], 16
        $region160: #{tpu_custom_call.1} parent=115 // pred_fallthru
          _
        // Predicated region
        $region161: #{tpu_custom_call.1} parent=115 // pred_check
          %p866 = pneg %p419
        $region162: #{tpu_custom_call.1} parent=115 // pred_check_branch
          %868 = sbr.rel (%p866) target = $region164
        $region163: #{tpu_custom_call.1} parent=115 // pred_region
          %869 = dma.done [#allocation21], 256
        $region164: #{tpu_custom_call.1} parent=115 // pred_fallthru
          _
        // Predicated region
        $region165: #{tpu_custom_call.1} parent=115 // pred_check
          %p870 = pneg %p440
        $region166: #{tpu_custom_call.1} parent=115 // pred_check_branch
          %872 = sbr.rel (%p870) target = $region168
        $region167: #{tpu_custom_call.1} parent=115 // pred_region
          %873 = dma.done [#allocation21], 16
        $region168: #{tpu_custom_call.1} parent=115 // pred_fallthru
          _
        %p874 = scmp.lt.s32.totalorder %s47, 1
        %s875 = scalar_select %p874, %s47, 1
        %s876 = smul.addr %s875, 8
        %s877 = scalar_lea.vmem %s0, %s876
        %p878 = pneg %p68
        %p879 = pneg %p65
        %p880 = scmp.lt.s32.totalorder %s47, 1
        %s881 = scalar_select %p880, %s47, 1
        %s882 = smul.addr %s881, 8
        %s883 = scalar_lea.vmem %s1, %s882
        %p884 = pneg %p94
        %p885 = pneg %p91
        %p886 = scmp.lt.s32.totalorder %s47, 1
        %s887 = scalar_select %p886, %s47, 1
        %s888 = smul.addr %s887, 8
        %s889 = scalar_lea.vmem %s2, %s888
        %p890 = pneg %p120
        %p891 = pneg %p117
        %s892 = sand.u32 %s133, 1
        %s893 = scalar_lea.sflag [#allocation3], %s892
        %s894 = sand.u32 %s133, 1
        %s895 = scalar_lea.vmem [#allocation2], %s894
        %p896 = pneg %p146
        %p897 = pneg %p143
        %p898 = pneg %p167
        %p899 = pneg %p164
        %p900 = pneg %p188
        %p901 = pneg %p185
        %p902 = pneg %p209
        %p903 = pneg %p206
        %p904 = pneg %p230
        %p905 = pneg %p227
        %p906 = pneg %p251
        %p907 = pneg %p248
        %p908 = pneg %p272
        %p909 = pneg %p269
        %p910 = pneg %p293
        %p911 = pneg %p290
        %p912 = pneg %p314
        %p913 = pneg %p311
        %p914 = pneg %p335
        %p915 = pneg %p332
        %p916 = pneg %p356
        %p917 = pneg %p353
        %p918 = pneg %p377
        %p919 = pneg %p374
        %p920 = pneg %p398
        %p921 = pneg %p395
        %p922 = pneg %p419
        %p923 = pneg %p416
        %p924 = pneg %p440
        %p925 = pneg %p437
        %p926 = pneg %p461
        %p927 = pneg %p458
        %p928 = pneg %p482
        %p929 = pneg %p479
        %p930 = pneg %p503
        %p931 = pneg %p500
        %p932 = pneg %p524
        %p933 = pneg %p521
        %p934 = pneg %p545
        %p935 = pneg %p542
        %p936 = pneg %p566
        %p937 = pneg %p563
        %p938 = pneg %p592
        %p939 = pneg %p589
        %s940 = sand.u32 %s579, 1
        %s941 = scalar_lea.sflag [#allocation4], %s940
        %s942 = sand.u32 %s579, 1
        %s943 = smul.addr %s942, 8
        %s944 = scalar_lea.vmem [#allocation23], %s943
        %p945 = scmp.lt.s32.totalorder %s47, 1
        %s946 = scalar_select %p945, %s47, 1
        %s947 = smul.addr %s946, 8
        %s948 = scalar_lea.vmem %s0, %s947
        %p949 = scmp.lt.s32.totalorder %s47, 1
        %s950 = scalar_select %p949, %s47, 1
        %s951 = smul.addr %s950, 8
        %s952 = scalar_lea.vmem %s1, %s951
        %p953 = scmp.lt.s32.totalorder %s47, 1
        %s954 = scalar_select %p953, %s47, 1
        %s955 = smul.addr %s954, 8
        %s956 = scalar_lea.vmem %s2, %s955
        %v958 = vld [vmem:[%s948] sm:$0xff]
        %v959 = vld [vmem:[%s952] sm:$0xff]
        %v960 = vld [vmem:[%s956] sm:$0xff]
        %vm961 = vcmp.gt.f32.partialorder %v960, 0.0
        %v962 = vsel %vm961, 0.0, -1e+30
        %v963 = vld [vmem:[%s821] sm:$0x1]
        %vm964 = vcmp.gt.f32.partialorder %v963, 0.0
        %v965 = vsel %vm964, 0.0, -1e+30
        %v966 = vld [vmem:[#allocation5] sm:$0x1]
        %v967 = vld [vmem:[#allocation7] sm:$0x1]
        %vm968 = vcmask 261120
        %v969 = vsel %vm968, %v958, 0.0
        %970 = vadd.xlane.f32.xlu0 %v969
        %v971 = vpop.xlane.xlu0 %970
        %v972 = vrcp.pop 32.0
        %v973 = vmul.f32 %v971, %v972
        %v974 = vsub.f32 %v958, %v973
        %v975 = vmul.f32 %v974, %v974
        %v976 = vsel %vm968, %v975, 0.0
        %977 = vadd.xlane.f32.xlu0 %v976
        %v978 = vpop.xlane.xlu0 %977
        %v979 = vmul.f32 %v978, %v972
        %v980 = vadd.f32 %v979, 1e-06
        %v981 = vrsqrt.pop %v980
        %v982 = vmul.f32 %v974, %v981
        %v984 = vlaneseq
        %v985 = vshrl.u32 %v984, 7
        %v986 = vsub.s32 0, %v985
        %v987 = vrot.slane %v966, %v986
        %v989 = vmul.f32 %v982, %v987
        %v991 = vlaneseq
        %v992 = vshrl.u32 %v991, 7
        %v993 = vsub.s32 0, %v992
        %v994 = vrot.slane %v967, %v993
        %v996 = vadd.f32 %v989, %v994
        %v997 = vpack.c.bf16 %v996, %v996
        %v998 = vld [vmem:[#allocation8] sm:$0xf]
        %v999 = vld [vmem:[#allocation8 + $0x4] sm:$0xf]
        %v1000 = vld [vmem:[#allocation8 + $0x8] sm:$0xf]
        %v1001 = vld [vmem:[#allocation8 + $0xc] sm:$0xf]
        %v1002 = vld [vmem:[#allocation10] sm:$0x1]
        %v1004 = vlaneseq
        %v1005 = vshrl.u32 %v1004, 7
        %v1006 = vsub.s32 0, %v1005
        %v1007 = vrot.slane %v1002, %v1006
        %v1013 = vunpack.c.l.b16 %v998
        %v1014 = vunpack.c.l.b16 %v999
        %v1015 = vunpack.c.l.b16 %v1000
        %v1016 = vunpack.c.l.b16 %v1001
        %v1017 = vpack.c.b16 %v1014, %v1013
        %v1018 = vpack.c.b16 %v1016, %v1015
        %v1022 = vsel %vm968, %v997, 0
        %1024 = vmatprep.subr.bf16.mxu0 0
        %1025 = vmatpush1.bf16.msra.mxu0 %v1017
        %1026 = vmatprep.subr.bf16.mxu0 0
        %1027 = vmatpush1.bf16.msra.mxu0 %v1018
        %1028 = vmatprep.subr.bf16.mxu0 0
        %1029 = vmatpush1.bf16.msra.mxu0 0
        %1030 = vmatprep.subr.bf16.mxu0 0
        %1031 = vmatpush1.bf16.msra.mxu0 0
        %1032 = vmatprep.subr.bf16.mxu0 0
        %1033 = vmatpush1.bf16.msra.mxu0 0
        %1034 = vmatprep.subr.bf16.mxu0 0
        %1035 = vmatpush1.bf16.msra.mxu0 0
        %1036 = vmatprep.subr.bf16.mxu0 0
        %1037 = vmatpush1.bf16.msra.mxu0 0
        %1038 = vmatprep.subr.bf16.mxu0 0
        %1039 = vmatpush1.bf16.msra.mxu0 0
        %1040 = vmatprep.subr.bf16.mxu0 0
        %1041 = vmatpush1.bf16.msra.mxu0 0
        %1042 = vmatprep.subr.bf16.mxu0 0
        %1043 = vmatpush1.bf16.msra.mxu0 0
        %1044 = vmatprep.subr.bf16.mxu0 0
        %1045 = vmatpush1.bf16.msra.mxu0 0
        %1046 = vmatprep.subr.bf16.mxu0 0
        %1047 = vmatpush1.bf16.msra.mxu0 0
        %1048 = vmatprep.subr.bf16.mxu0 0
        %1049 = vmatpush1.bf16.msra.mxu0 0
        %1050 = vmatprep.subr.bf16.mxu0 0
        %1051 = vmatpush1.bf16.msra.mxu0 0
        %1052 = vmatprep.subr.bf16.mxu0 0
        %1053 = vmatpush1.bf16.msra.mxu0 0
        %1054 = vmatprep.subr.bf16.mxu0 0
        %1055 = vmatpush1.bf16.msra.mxu0 0
        %1056 = vmatprep.mubr.bf16.mxu0 0
        %1057 = vmatmul.mubr.bf16.gmra.mrb[0].mxu0 %v1022
        %v1058 = vpop.f32.mrb[0].mxu0
        %v1059 = vadd.f32 %v1007, %v1058
        %v1060 = vpop.f32.mrb[0].mxu0
        %v1061 = vpop.f32.mrb[0].mxu0
        %v1062 = vpop.f32.mrb[0].mxu0
        %1063 = vdwg.mxu0
        %v1064 = vld [vmem:[#allocation11] sm:$0xf]
        %v1065 = vld [vmem:[#allocation11 + $0x4] sm:$0xf]
        %v1066 = vld [vmem:[#allocation11 + $0x8] sm:$0xf]
        %v1067 = vld [vmem:[#allocation11 + $0xc] sm:$0xf]
        %v1068 = vld [vmem:[#allocation13] sm:$0x1]
        %v1069 = vpack.c.bf16 %v1059, %v1059
        %1071 = vrot.lane.b32.xlu0 %v1069, 96
        %v1072 = vpop.permute.xlu0 %1071
        %vm1073 = vcmask 64512
        %v1075 = vsel %vm1073, %v1069, 0
        %v1078 = vsel %vm1073, %v1072, 0
        %1080 = vmatprep.subr.bf16.mxu0 0
        %1081 = vmatpush1.bf16.xpose.msra.mxu0 %v1078
        %1082 = vmatprep.subr.bf16.mxu0 0
        %1083 = vmatpush1.bf16.xpose.msra.mxu0 0
        %1084 = vmatprep.subr.bf16.mxu0 0
        %1085 = vmatpush1.bf16.xpose.msra.mxu0 0
        %1086 = vmatprep.subr.bf16.mxu0 0
        %1087 = vmatpush1.bf16.xpose.msra.mxu0 0
        %1088 = vmatprep.subr.bf16.mxu0 0
        %1089 = vmatpush1.bf16.xpose.msra.mxu0 0
        %1090 = vmatprep.subr.bf16.mxu0 0
        %1091 = vmatpush1.bf16.xpose.msra.mxu0 0
        %1092 = vmatprep.subr.bf16.mxu0 0
        %1093 = vmatpush1.bf16.xpose.msra.mxu0 0
        %1094 = vmatprep.subr.bf16.mxu0 0
        %1095 = vmatpush1.bf16.xpose.msra.mxu0 0
        %1096 = vmatprep.subr.bf16.mxu0 0
        %1097 = vmatpush1.bf16.xpose.msra.mxu0 0
        %1098 = vmatprep.subr.bf16.mxu0 0
        %1099 = vmatpush1.bf16.xpose.msra.mxu0 0
        %1100 = vmatprep.subr.bf16.mxu0 0
        %1101 = vmatpush1.bf16.xpose.msra.mxu0 0
        %1102 = vmatprep.subr.bf16.mxu0 0
        %1103 = vmatpush1.bf16.xpose.msra.mxu0 0
        %1104 = vmatprep.subr.bf16.mxu0 0
        %1105 = vmatpush1.bf16.xpose.msra.mxu0 0
        %1106 = vmatprep.subr.bf16.mxu0 0
        %1107 = vmatpush1.bf16.xpose.msra.mxu0 0
        %1108 = vmatprep.subr.bf16.mxu0 0
        %1109 = vmatpush1.bf16.xpose.msra.mxu0 0
        %1110 = vmatprep.subr.bf16.mxu0 0
        %1111 = vmatpush1.bf16.xpose.msra.mxu0 0
        %1112 = vmatprep.mubr.bf16.mxu0 0
        %1113 = vmatmul.mubr.bf16.gmra.mrb[0].mxu0 %v1075
        %v1114 = vpop.f32.mrb[0].mxu0
        %v1115 = vadd.f32 %v962, %v1114
        %v1116 = vpop.f32.mrb[0].mxu0
        %v1117 = vpop.f32.mrb[0].mxu0
        %v1118 = vpop.f32.mrb[0].mxu0
        %1119 = vdwg.mxu0
        %v1120 = vsel %vm1073, %v1115, -inf
        %1121 = vmax.xlane.f32.xlu0 %v1120
        %v1122 = vpop.xlane.xlu0 %1121
        %v1123 = vsub.f32 %v1115, %v1122
        %v1124 = vmul.f32 %v1123, 1.442695
        %v1125 = vpow.pop %v1124
        %v1126 = vsel %vm1073, %v1125, 0.0
        %1127 = vadd.xlane.f32.xlu0 %v1126
        %v1128 = vpop.xlane.xlu0 %1127
        %v1129 = vrcp.pop %v1128
        %v1130 = vmul.f32 %v1125, %v1129
        %v1131 = vpack.c.bf16 %v1130, %v1130
        %1132 = vrot.lane.b32.xlu0 %v1069, 64
        %v1133 = vpop.permute.xlu0 %1132
        %v1135 = vsel %vm1073, %v1131, 0
        %vm1137 = vcmask 1043456
        %v1139 = vsel %vm1137, %v1133, 0
        %1141 = vmatprep.subr.bf16.mxu0 0
        %1142 = vmatpush1.bf16.msra.mxu0 %v1139
        %1143 = vmatprep.subr.bf16.mxu0 0
        %1144 = vmatpush1.bf16.msra.mxu0 0
        %1145 = vmatprep.subr.bf16.mxu0 0
        %1146 = vmatpush1.bf16.msra.mxu0 0
        %1147 = vmatprep.subr.bf16.mxu0 0
        %1148 = vmatpush1.bf16.msra.mxu0 0
        %1149 = vmatprep.subr.bf16.mxu0 0
        %1150 = vmatpush1.bf16.msra.mxu0 0
        %1151 = vmatprep.subr.bf16.mxu0 0
        %1152 = vmatpush1.bf16.msra.mxu0 0
        %1153 = vmatprep.subr.bf16.mxu0 0
        %1154 = vmatpush1.bf16.msra.mxu0 0
        %1155 = vmatprep.subr.bf16.mxu0 0
        %1156 = vmatpush1.bf16.msra.mxu0 0
        %1157 = vmatprep.subr.bf16.mxu0 0
        %1158 = vmatpush1.bf16.msra.mxu0 0
        %1159 = vmatprep.subr.bf16.mxu0 0
        %1160 = vmatpush1.bf16.msra.mxu0 0
        %1161 = vmatprep.subr.bf16.mxu0 0
        %1162 = vmatpush1.bf16.msra.mxu0 0
        %1163 = vmatprep.subr.bf16.mxu0 0
        %1164 = vmatpush1.bf16.msra.mxu0 0
        %1165 = vmatprep.subr.bf16.mxu0 0
        %1166 = vmatpush1.bf16.msra.mxu0 0
        %1167 = vmatprep.subr.bf16.mxu0 0
        %1168 = vmatpush1.bf16.msra.mxu0 0
        %1169 = vmatprep.subr.bf16.mxu0 0
        %1170 = vmatpush1.bf16.msra.mxu0 0
        %1171 = vmatprep.subr.bf16.mxu0 0
        %1172 = vmatpush1.bf16.msra.mxu0 0
        %1173 = vmatprep.mubr.bf16.mxu0 0
        %1174 = vmatmul.mubr.bf16.gmra.mrb[0].mxu0 %v1135
        %v1175 = vpop.f32.mrb[0].mxu0
        %v1176 = vadd.f32 0.0, %v1175
        %v1177 = vpop.f32.mrb[0].mxu0
        %v1178 = vpop.f32.mrb[0].mxu0
        %v1179 = vpop.f32.mrb[0].mxu0
        %1180 = vdwg.mxu0
        %1181 = vrot.lane.b32.xlu0 %v1069, 120
        %v1182 = vpop.permute.xlu0 %1181
        %1183 = vrot.lane.b32.xlu0 %v1069, 88
        %v1184 = vpop.permute.xlu0 %1183
        %v1186 = vsel %vm1073, %v1182, 0
        %v1189 = vsel %vm1073, %v1184, 0
        %1191 = vmatprep.subr.bf16.mxu0 0
        %1192 = vmatpush1.bf16.xpose.msra.mxu0 %v1189
        %1193 = vmatprep.subr.bf16.mxu0 0
        %1194 = vmatpush1.bf16.xpose.msra.mxu0 0
        %1195 = vmatprep.subr.bf16.mxu0 0
        %1196 = vmatpush1.bf16.xpose.msra.mxu0 0
        %1197 = vmatprep.subr.bf16.mxu0 0
        %1198 = vmatpush1.bf16.xpose.msra.mxu0 0
        %1199 = vmatprep.subr.bf16.mxu0 0
        %1200 = vmatpush1.bf16.xpose.msra.mxu0 0
        %1201 = vmatprep.subr.bf16.mxu0 0
        %1202 = vmatpush1.bf16.xpose.msra.mxu0 0
        %1203 = vmatprep.subr.bf16.mxu0 0
        %1204 = vmatpush1.bf16.xpose.msra.mxu0 0
        %1205 = vmatprep.subr.bf16.mxu0 0
        %1206 = vmatpush1.bf16.xpose.msra.mxu0 0
        %1207 = vmatprep.subr.bf16.mxu0 0
        %1208 = vmatpush1.bf16.xpose.msra.mxu0 0
        %1209 = vmatprep.subr.bf16.mxu0 0
        %1210 = vmatpush1.bf16.xpose.msra.mxu0 0
        %1211 = vmatprep.subr.bf16.mxu0 0
        %1212 = vmatpush1.bf16.xpose.msra.mxu0 0
        %1213 = vmatprep.subr.bf16.mxu0 0
        %1214 = vmatpush1.bf16.xpose.msra.mxu0 0
        %1215 = vmatprep.subr.bf16.mxu0 0
        %1216 = vmatpush1.bf16.xpose.msra.mxu0 0
        %1217 = vmatprep.subr.bf16.mxu0 0
        %1218 = vmatpush1.bf16.xpose.msra.mxu0 0
        %1219 = vmatprep.subr.bf16.mxu0 0
        %1220 = vmatpush1.bf16.xpose.msra.mxu0 0
        %1221 = vmatprep.subr.bf16.mxu0 0
        %1222 = vmatpush1.bf16.xpose.msra.mxu0 0
        %1223 = vmatprep.mubr.bf16.mxu0 0
        %1224 = vmatmul.mubr.bf16.gmra.mrb[0].mxu0 %v1186
        %v1225 = vpop.f32.mrb[0].mxu0
        %v1226 = vadd.f32 %v962, %v1225
        %v1227 = vpop.f32.mrb[0].mxu0
        %v1228 = vpop.f32.mrb[0].mxu0
        %v1229 = vpop.f32.mrb[0].mxu0
        %1230 = vdwg.mxu0
        %v1231 = vsel %vm1073, %v1226, -inf
        %1232 = vmax.xlane.f32.xlu0 %v1231
        %v1233 = vpop.xlane.xlu0 %1232
        %v1234 = vsub.f32 %v1226, %v1233
        %v1235 = vmul.f32 %v1234, 1.442695
        %v1236 = vpow.pop %v1235
        %v1237 = vsel %vm1073, %v1236, 0.0
        %1238 = vadd.xlane.f32.xlu0 %v1237
        %v1239 = vpop.xlane.xlu0 %1238
        %v1240 = vrcp.pop %v1239
        %v1241 = vmul.f32 %v1236, %v1240
        %v1242 = vpack.c.bf16 %v1241, %v1241
        %1243 = vrot.lane.b32.xlu0 %v1069, 56
        %v1244 = vpop.permute.xlu0 %1243
        %v1246 = vsel %vm1073, %v1242, 0
        %v1249 = vsel %vm1137, %v1244, 0
        %1251 = vmatprep.subr.bf16.mxu0 0
        %1252 = vmatpush1.bf16.msra.mxu0 %v1249
        %1253 = vmatprep.subr.bf16.mxu0 0
        %1254 = vmatpush1.bf16.msra.mxu0 0
        %1255 = vmatprep.subr.bf16.mxu0 0
        %1256 = vmatpush1.bf16.msra.mxu0 0
        %1257 = vmatprep.subr.bf16.mxu0 0
        %1258 = vmatpush1.bf16.msra.mxu0 0
        %1259 = vmatprep.subr.bf16.mxu0 0
        %1260 = vmatpush1.bf16.msra.mxu0 0
        %1261 = vmatprep.subr.bf16.mxu0 0
        %1262 = vmatpush1.bf16.msra.mxu0 0
        %1263 = vmatprep.subr.bf16.mxu0 0
        %1264 = vmatpush1.bf16.msra.mxu0 0
        %1265 = vmatprep.subr.bf16.mxu0 0
        %1266 = vmatpush1.bf16.msra.mxu0 0
        %1267 = vmatprep.subr.bf16.mxu0 0
        %1268 = vmatpush1.bf16.msra.mxu0 0
        %1269 = vmatprep.subr.bf16.mxu0 0
        %1270 = vmatpush1.bf16.msra.mxu0 0
        %1271 = vmatprep.subr.bf16.mxu0 0
        %1272 = vmatpush1.bf16.msra.mxu0 0
        %1273 = vmatprep.subr.bf16.mxu0 0
        %1274 = vmatpush1.bf16.msra.mxu0 0
        %1275 = vmatprep.subr.bf16.mxu0 0
        %1276 = vmatpush1.bf16.msra.mxu0 0
        %1277 = vmatprep.subr.bf16.mxu0 0
        %1278 = vmatpush1.bf16.msra.mxu0 0
        %1279 = vmatprep.subr.bf16.mxu0 0
        %1280 = vmatpush1.bf16.msra.mxu0 0
        %1281 = vmatprep.subr.bf16.mxu0 0
        %1282 = vmatpush1.bf16.msra.mxu0 0
        %1283 = vmatprep.mubr.bf16.mxu0 0
        %1284 = vmatmul.mubr.bf16.gmra.mrb[0].mxu0 %v1246
        %v1285 = vpop.f32.mrb[0].mxu0
        %v1286 = vadd.f32 0.0, %v1285
        %v1287 = vpop.f32.mrb[0].mxu0
        %v1288 = vpop.f32.mrb[0].mxu0
        %v1289 = vpop.f32.mrb[0].mxu0
        %1290 = vdwg.mxu0
        %1291 = vrot.lane.b32.xlu0 %v1069, 112
        %v1292 = vpop.permute.xlu0 %1291
        %1293 = vrot.lane.b32.xlu0 %v1069, 80
        %v1294 = vpop.permute.xlu0 %1293
        %v1296 = vsel %vm1073, %v1292, 0
        %v1299 = vsel %vm1073, %v1294, 0
        %1301 = vmatprep.subr.bf16.mxu0 0
        %1302 = vmatpush1.bf16.xpose.msra.mxu0 %v1299
        %1303 = vmatprep.subr.bf16.mxu0 0
        %1304 = vmatpush1.bf16.xpose.msra.mxu0 0
        %1305 = vmatprep.subr.bf16.mxu0 0
        %1306 = vmatpush1.bf16.xpose.msra.mxu0 0
        %1307 = vmatprep.subr.bf16.mxu0 0
        %1308 = vmatpush1.bf16.xpose.msra.mxu0 0
        %1309 = vmatprep.subr.bf16.mxu0 0
        %1310 = vmatpush1.bf16.xpose.msra.mxu0 0
        %1311 = vmatprep.subr.bf16.mxu0 0
        %1312 = vmatpush1.bf16.xpose.msra.mxu0 0
        %1313 = vmatprep.subr.bf16.mxu0 0
        %1314 = vmatpush1.bf16.xpose.msra.mxu0 0
        %1315 = vmatprep.subr.bf16.mxu0 0
        %1316 = vmatpush1.bf16.xpose.msra.mxu0 0
        %1317 = vmatprep.subr.bf16.mxu0 0
        %1318 = vmatpush1.bf16.xpose.msra.mxu0 0
        %1319 = vmatprep.subr.bf16.mxu0 0
        %1320 = vmatpush1.bf16.xpose.msra.mxu0 0
        %1321 = vmatprep.subr.bf16.mxu0 0
        %1322 = vmatpush1.bf16.xpose.msra.mxu0 0
        %1323 = vmatprep.subr.bf16.mxu0 0
        %1324 = vmatpush1.bf16.xpose.msra.mxu0 0
        %1325 = vmatprep.subr.bf16.mxu0 0
        %1326 = vmatpush1.bf16.xpose.msra.mxu0 0
        %1327 = vmatprep.subr.bf16.mxu0 0
        %1328 = vmatpush1.bf16.xpose.msra.mxu0 0
        %1329 = vmatprep.subr.bf16.mxu0 0
        %1330 = vmatpush1.bf16.xpose.msra.mxu0 0
        %1331 = vmatprep.subr.bf16.mxu0 0
        %1332 = vmatpush1.bf16.xpose.msra.mxu0 0
        %1333 = vmatprep.mubr.bf16.mxu0 0
        %1334 = vmatmul.mubr.bf16.gmra.mrb[0].mxu0 %v1296
        %v1335 = vpop.f32.mrb[0].mxu0
        %v1336 = vadd.f32 %v962, %v1335
        %v1337 = vpop.f32.mrb[0].mxu0
        %v1338 = vpop.f32.mrb[0].mxu0
        %v1339 = vpop.f32.mrb[0].mxu0
        %1340 = vdwg.mxu0
        %v1341 = vsel %vm1073, %v1336, -inf
        %1342 = vmax.xlane.f32.xlu0 %v1341
        %v1343 = vpop.xlane.xlu0 %1342
        %v1344 = vsub.f32 %v1336, %v1343
        %v1345 = vmul.f32 %v1344, 1.442695
        %v1346 = vpow.pop %v1345
        %v1347 = vsel %vm1073, %v1346, 0.0
        %1348 = vadd.xlane.f32.xlu0 %v1347
        %v1349 = vpop.xlane.xlu0 %1348
        %v1350 = vrcp.pop %v1349
        %v1351 = vmul.f32 %v1346, %v1350
        %v1352 = vpack.c.bf16 %v1351, %v1351
        %1353 = vrot.lane.b32.xlu0 %v1069, 48
        %v1354 = vpop.permute.xlu0 %1353
        %v1356 = vsel %vm1073, %v1352, 0
        %v1359 = vsel %vm1137, %v1354, 0
        %1361 = vmatprep.subr.bf16.mxu0 0
        %1362 = vmatpush1.bf16.msra.mxu0 %v1359
        %1363 = vmatprep.subr.bf16.mxu0 0
        %1364 = vmatpush1.bf16.msra.mxu0 0
        %1365 = vmatprep.subr.bf16.mxu0 0
        %1366 = vmatpush1.bf16.msra.mxu0 0
        %1367 = vmatprep.subr.bf16.mxu0 0
        %1368 = vmatpush1.bf16.msra.mxu0 0
        %1369 = vmatprep.subr.bf16.mxu0 0
        %1370 = vmatpush1.bf16.msra.mxu0 0
        %1371 = vmatprep.subr.bf16.mxu0 0
        %1372 = vmatpush1.bf16.msra.mxu0 0
        %1373 = vmatprep.subr.bf16.mxu0 0
        %1374 = vmatpush1.bf16.msra.mxu0 0
        %1375 = vmatprep.subr.bf16.mxu0 0
        %1376 = vmatpush1.bf16.msra.mxu0 0
        %1377 = vmatprep.subr.bf16.mxu0 0
        %1378 = vmatpush1.bf16.msra.mxu0 0
        %1379 = vmatprep.subr.bf16.mxu0 0
        %1380 = vmatpush1.bf16.msra.mxu0 0
        %1381 = vmatprep.subr.bf16.mxu0 0
        %1382 = vmatpush1.bf16.msra.mxu0 0
        %1383 = vmatprep.subr.bf16.mxu0 0
        %1384 = vmatpush1.bf16.msra.mxu0 0
        %1385 = vmatprep.subr.bf16.mxu0 0
        %1386 = vmatpush1.bf16.msra.mxu0 0
        %1387 = vmatprep.subr.bf16.mxu0 0
        %1388 = vmatpush1.bf16.msra.mxu0 0
        %1389 = vmatprep.subr.bf16.mxu0 0
        %1390 = vmatpush1.bf16.msra.mxu0 0
        %1391 = vmatprep.subr.bf16.mxu0 0
        %1392 = vmatpush1.bf16.msra.mxu0 0
        %1393 = vmatprep.mubr.bf16.mxu0 0
        %1394 = vmatmul.mubr.bf16.gmra.mrb[0].mxu0 %v1356
        %v1395 = vpop.f32.mrb[0].mxu0
        %v1396 = vadd.f32 0.0, %v1395
        %v1397 = vpop.f32.mrb[0].mxu0
        %v1398 = vpop.f32.mrb[0].mxu0
        %v1399 = vpop.f32.mrb[0].mxu0
        %1400 = vdwg.mxu0
        %1401 = vrot.lane.b32.xlu0 %v1069, 104
        %v1402 = vpop.permute.xlu0 %1401
        %1403 = vrot.lane.b32.xlu0 %v1069, 72
        %v1404 = vpop.permute.xlu0 %1403
        %v1406 = vsel %vm1073, %v1402, 0
        %v1409 = vsel %vm1073, %v1404, 0
        %1411 = vmatprep.subr.bf16.mxu0 0
        %1412 = vmatpush1.bf16.xpose.msra.mxu0 %v1409
        %1413 = vmatprep.subr.bf16.mxu0 0
        %1414 = vmatpush1.bf16.xpose.msra.mxu0 0
        %1415 = vmatprep.subr.bf16.mxu0 0
        %1416 = vmatpush1.bf16.xpose.msra.mxu0 0
        %1417 = vmatprep.subr.bf16.mxu0 0
        %1418 = vmatpush1.bf16.xpose.msra.mxu0 0
        %1419 = vmatprep.subr.bf16.mxu0 0
        %1420 = vmatpush1.bf16.xpose.msra.mxu0 0
        %1421 = vmatprep.subr.bf16.mxu0 0
        %1422 = vmatpush1.bf16.xpose.msra.mxu0 0
        %1423 = vmatprep.subr.bf16.mxu0 0
        %1424 = vmatpush1.bf16.xpose.msra.mxu0 0
        %1425 = vmatprep.subr.bf16.mxu0 0
        %1426 = vmatpush1.bf16.xpose.msra.mxu0 0
        %1427 = vmatprep.subr.bf16.mxu0 0
        %1428 = vmatpush1.bf16.xpose.msra.mxu0 0
        %1429 = vmatprep.subr.bf16.mxu0 0
        %1430 = vmatpush1.bf16.xpose.msra.mxu0 0
        %1431 = vmatprep.subr.bf16.mxu0 0
        %1432 = vmatpush1.bf16.xpose.msra.mxu0 0
        %1433 = vmatprep.subr.bf16.mxu0 0
        %1434 = vmatpush1.bf16.xpose.msra.mxu0 0
        %1435 = vmatprep.subr.bf16.mxu0 0
        %1436 = vmatpush1.bf16.xpose.msra.mxu0 0
        %1437 = vmatprep.subr.bf16.mxu0 0
        %1438 = vmatpush1.bf16.xpose.msra.mxu0 0
        %1439 = vmatprep.subr.bf16.mxu0 0
        %1440 = vmatpush1.bf16.xpose.msra.mxu0 0
        %1441 = vmatprep.subr.bf16.mxu0 0
        %1442 = vmatpush1.bf16.xpose.msra.mxu0 0
        %1443 = vmatprep.mubr.bf16.mxu0 0
        %1444 = vmatmul.mubr.bf16.gmra.mrb[0].mxu0 %v1406
        %v1445 = vpop.f32.mrb[0].mxu0
        %v1446 = vadd.f32 %v962, %v1445
        %v1447 = vpop.f32.mrb[0].mxu0
        %v1448 = vpop.f32.mrb[0].mxu0
        %v1449 = vpop.f32.mrb[0].mxu0
        %1450 = vdwg.mxu0
        %v1451 = vsel %vm1073, %v1446, -inf
        %1452 = vmax.xlane.f32.xlu0 %v1451
        %v1453 = vpop.xlane.xlu0 %1452
        %v1454 = vsub.f32 %v1446, %v1453
        %v1455 = vmul.f32 %v1454, 1.442695
        %v1456 = vpow.pop %v1455
        %v1457 = vsel %vm1073, %v1456, 0.0
        %1458 = vadd.xlane.f32.xlu0 %v1457
        %v1459 = vpop.xlane.xlu0 %1458
        %v1460 = vrcp.pop %v1459
        %v1461 = vmul.f32 %v1456, %v1460
        %v1462 = vpack.c.bf16 %v1461, %v1461
        %1463 = vrot.lane.b32.xlu0 %v1069, 40
        %v1464 = vpop.permute.xlu0 %1463
        %v1466 = vsel %vm1073, %v1462, 0
        %v1469 = vsel %vm1137, %v1464, 0
        %1471 = vmatprep.subr.bf16.mxu0 0
        %1472 = vmatpush1.bf16.msra.mxu0 %v1469
        %1473 = vmatprep.subr.bf16.mxu0 0
        %1474 = vmatpush1.bf16.msra.mxu0 0
        %1475 = vmatprep.subr.bf16.mxu0 0
        %1476 = vmatpush1.bf16.msra.mxu0 0
        %1477 = vmatprep.subr.bf16.mxu0 0
        %1478 = vmatpush1.bf16.msra.mxu0 0
        %1479 = vmatprep.subr.bf16.mxu0 0
        %1480 = vmatpush1.bf16.msra.mxu0 0
        %1481 = vmatprep.subr.bf16.mxu0 0
        %1482 = vmatpush1.bf16.msra.mxu0 0
        %1483 = vmatprep.subr.bf16.mxu0 0
        %1484 = vmatpush1.bf16.msra.mxu0 0
        %1485 = vmatprep.subr.bf16.mxu0 0
        %1486 = vmatpush1.bf16.msra.mxu0 0
        %1487 = vmatprep.subr.bf16.mxu0 0
        %1488 = vmatpush1.bf16.msra.mxu0 0
        %1489 = vmatprep.subr.bf16.mxu0 0
        %1490 = vmatpush1.bf16.msra.mxu0 0
        %1491 = vmatprep.subr.bf16.mxu0 0
        %1492 = vmatpush1.bf16.msra.mxu0 0
        %1493 = vmatprep.subr.bf16.mxu0 0
        %1494 = vmatpush1.bf16.msra.mxu0 0
        %1495 = vmatprep.subr.bf16.mxu0 0
        %1496 = vmatpush1.bf16.msra.mxu0 0
        %1497 = vmatprep.subr.bf16.mxu0 0
        %1498 = vmatpush1.bf16.msra.mxu0 0
        %1499 = vmatprep.subr.bf16.mxu0 0
        %1500 = vmatpush1.bf16.msra.mxu0 0
        %1501 = vmatprep.subr.bf16.mxu0 0
        %1502 = vmatpush1.bf16.msra.mxu0 0
        %1503 = vmatprep.mubr.bf16.mxu0 0
        %1504 = vmatmul.mubr.bf16.gmra.mrb[0].mxu0 %v1466
        %v1505 = vpop.f32.mrb[0].mxu0
        %v1506 = vadd.f32 0.0, %v1505
        %v1507 = vpop.f32.mrb[0].mxu0
        %v1508 = vpop.f32.mrb[0].mxu0
        %v1509 = vpop.f32.mrb[0].mxu0
        %1510 = vdwg.mxu0
        %1512 = vrot.lane.b32.xlu0 %v1286, 8
        %v1513 = vpop.permute.xlu0 %1512
        %1516 = vrot.lane.b32.xlu0 %v1396, 16
        %v1517 = vpop.permute.xlu0 %1516
        %1520 = vrot.lane.b32.xlu0 %v1506, 24
        %v1521 = vpop.permute.xlu0 %1520
        %v1523 = vsel %vm1073, %v1176, %v1513
        %vm1524 = vcmask 130048
        %v1525 = vsel %vm1524, %v1523, %v1517
        %vm1526 = vcmask 195584
        %v1527 = vsel %vm1526, %v1525, %v1521
        %v1528 = vpack.c.bf16 %v1527, %v1527
        %v1530 = vlaneseq
        %v1531 = vshrl.u32 %v1530, 7
        %v1532 = vsub.s32 0, %v1531
        %v1533 = vrot.slane %v1068, %v1532
        %v1539 = vunpack.c.l.b16 %v1064
        %v1540 = vunpack.c.l.b16 %v1065
        %v1541 = vunpack.c.l.b16 %v1066
        %v1542 = vunpack.c.l.b16 %v1067
        %v1543 = vpack.c.b16 %v1540, %v1539
        %v1544 = vpack.c.b16 %v1542, %v1541
        %v1548 = vsel %vm968, %v1528, 0
        %1550 = vmatprep.subr.bf16.mxu0 0
        %1551 = vmatpush1.bf16.msra.mxu0 %v1543
        %1552 = vmatprep.subr.bf16.mxu0 0
        %1553 = vmatpush1.bf16.msra.mxu0 %v1544
        %1554 = vmatprep.subr.bf16.mxu0 0
        %1555 = vmatpush1.bf16.msra.mxu0 0
        %1556 = vmatprep.subr.bf16.mxu0 0
        %1557 = vmatpush1.bf16.msra.mxu0 0
        %1558 = vmatprep.subr.bf16.mxu0 0
        %1559 = vmatpush1.bf16.msra.mxu0 0
        %1560 = vmatprep.subr.bf16.mxu0 0
        %1561 = vmatpush1.bf16.msra.mxu0 0
        %1562 = vmatprep.subr.bf16.mxu0 0
        %1563 = vmatpush1.bf16.msra.mxu0 0
        %1564 = vmatprep.subr.bf16.mxu0 0
        %1565 = vmatpush1.bf16.msra.mxu0 0
        %1566 = vmatprep.subr.bf16.mxu0 0
        %1567 = vmatpush1.bf16.msra.mxu0 0
        %1568 = vmatprep.subr.bf16.mxu0 0
        %1569 = vmatpush1.bf16.msra.mxu0 0
        %1570 = vmatprep.subr.bf16.mxu0 0
        %1571 = vmatpush1.bf16.msra.mxu0 0
        %1572 = vmatprep.subr.bf16.mxu0 0
        %1573 = vmatpush1.bf16.msra.mxu0 0
        %1574 = vmatprep.subr.bf16.mxu0 0
        %1575 = vmatpush1.bf16.msra.mxu0 0
        %1576 = vmatprep.subr.bf16.mxu0 0
        %1577 = vmatpush1.bf16.msra.mxu0 0
        %1578 = vmatprep.subr.bf16.mxu0 0
        %1579 = vmatpush1.bf16.msra.mxu0 0
        %1580 = vmatprep.subr.bf16.mxu0 0
        %1581 = vmatpush1.bf16.msra.mxu0 0
        %1582 = vmatprep.mubr.bf16.mxu0 0
        %1583 = vmatmul.mubr.bf16.gmra.mrb[0].mxu0 %v1548
        %v1584 = vpop.f32.mrb[0].mxu0
        %v1585 = vadd.f32 %v1533, %v1584
        %v1586 = vpop.f32.mrb[0].mxu0
        %v1587 = vpop.f32.mrb[0].mxu0
        %v1588 = vpop.f32.mrb[0].mxu0
        %1589 = vdwg.mxu0
        %v1590 = vadd.f32 %v1585, %v958
        %v1591 = vld [vmem:[#allocation14] sm:$0x1]
        %v1592 = vld [vmem:[#allocation16] sm:$0x1]
        %v1593 = vsel %vm968, %v1590, 0.0
        %1594 = vadd.xlane.f32.xlu0 %v1593
        %v1595 = vpop.xlane.xlu0 %1594
        %v1596 = vmul.f32 %v1595, %v972
        %v1597 = vsub.f32 %v1590, %v1596
        %v1598 = vmul.f32 %v1597, %v1597
        %v1599 = vsel %vm968, %v1598, 0.0
        %1600 = vadd.xlane.f32.xlu0 %v1599
        %v1601 = vpop.xlane.xlu0 %1600
        %v1602 = vmul.f32 %v1601, %v972
        %v1603 = vadd.f32 %v1602, 1e-06
        %v1604 = vrsqrt.pop %v1603
        %v1605 = vmul.f32 %v1597, %v1604
        %v1607 = vlaneseq
        %v1608 = vshrl.u32 %v1607, 7
        %v1609 = vsub.s32 0, %v1608
        %v1610 = vrot.slane %v1591, %v1609
        %v1612 = vmul.f32 %v1605, %v1610
        %v1614 = vlaneseq
        %v1615 = vshrl.u32 %v1614, 7
        %v1616 = vsub.s32 0, %v1615
        %v1617 = vrot.slane %v1592, %v1616
        %v1619 = vadd.f32 %v1612, %v1617
        %v1620 = vpack.c.bf16 %v1619, %v1619
        %v1621 = vld [vmem:[%s12] sm:$0xf]
        %v1622 = vld [vmem:[%s12 + $0x4] sm:$0xf]
        %v1623 = vld [vmem:[%s12 + $0x8] sm:$0xf]
        %v1624 = vld [vmem:[%s12 + $0xc] sm:$0xf]
        %v1625 = vld [vmem:[#allocation17] sm:$0x1]
        %v1627 = vlaneseq
        %v1628 = vshrl.u32 %v1627, 7
        %v1629 = vsub.s32 0, %v1628
        %v1630 = vrot.slane %v1625, %v1629
        %v1636 = vunpack.c.l.b16 %v1621
        %v1637 = vunpack.c.l.b16 %v1622
        %v1638 = vunpack.c.l.b16 %v1623
        %v1639 = vunpack.c.l.b16 %v1624
        %v1640 = vpack.c.b16 %v1637, %v1636
        %v1641 = vpack.c.b16 %v1639, %v1638
        %v1645 = vsel %vm968, %v1620, 0
        %1647 = vmatprep.subr.bf16.mxu0 0
        %1648 = vmatpush1.bf16.msra.mxu0 %v1640
        %1649 = vmatprep.subr.bf16.mxu0 0
        %1650 = vmatpush1.bf16.msra.mxu0 %v1641
        %1651 = vmatprep.subr.bf16.mxu0 0
        %1652 = vmatpush1.bf16.msra.mxu0 0
        %1653 = vmatprep.subr.bf16.mxu0 0
        %1654 = vmatpush1.bf16.msra.mxu0 0
        %1655 = vmatprep.subr.bf16.mxu0 0
        %1656 = vmatpush1.bf16.msra.mxu0 0
        %1657 = vmatprep.subr.bf16.mxu0 0
        %1658 = vmatpush1.bf16.msra.mxu0 0
        %1659 = vmatprep.subr.bf16.mxu0 0
        %1660 = vmatpush1.bf16.msra.mxu0 0
        %1661 = vmatprep.subr.bf16.mxu0 0
        %1662 = vmatpush1.bf16.msra.mxu0 0
        %1663 = vmatprep.subr.bf16.mxu0 0
        %1664 = vmatpush1.bf16.msra.mxu0 0
        %1665 = vmatprep.subr.bf16.mxu0 0
        %1666 = vmatpush1.bf16.msra.mxu0 0
        %1667 = vmatprep.subr.bf16.mxu0 0
        %1668 = vmatpush1.bf16.msra.mxu0 0
        %1669 = vmatprep.subr.bf16.mxu0 0
        %1670 = vmatpush1.bf16.msra.mxu0 0
        %1671 = vmatprep.subr.bf16.mxu0 0
        %1672 = vmatpush1.bf16.msra.mxu0 0
        %1673 = vmatprep.subr.bf16.mxu0 0
        %1674 = vmatpush1.bf16.msra.mxu0 0
        %1675 = vmatprep.subr.bf16.mxu0 0
        %1676 = vmatpush1.bf16.msra.mxu0 0
        %1677 = vmatprep.subr.bf16.mxu0 0
        %1678 = vmatpush1.bf16.msra.mxu0 0
        %1679 = vmatprep.mubr.bf16.mxu0 0
        %1680 = vmatmul.mubr.bf16.gmra.mrb[0].mxu0 %v1645
        %v1681 = vpop.f32.mrb[0].mxu0
        %v1682 = vadd.f32 %v1630, %v1681
        %v1683 = vpop.f32.mrb[0].mxu0
        %v1684 = vpop.f32.mrb[0].mxu0
        %v1685 = vpop.f32.mrb[0].mxu0
        %1686 = vdwg.mxu0
        %v1687 = vpack.c.bf16 %v959, %v959
        %v1688 = vld [vmem:[%s14] sm:$0xf]
        %v1689 = vld [vmem:[%s14 + $0x4] sm:$0xf]
        %v1690 = vld [vmem:[%s14 + $0x8] sm:$0xf]
        %v1691 = vld [vmem:[%s14 + $0xc] sm:$0xf]
        %v1692 = vld [vmem:[#allocation19] sm:$0x1]
        %v1694 = vlaneseq
        %v1695 = vshrl.u32 %v1694, 7
        %v1696 = vsub.s32 0, %v1695
        %v1697 = vrot.slane %v1692, %v1696
        %v1703 = vunpack.c.l.b16 %v1688
        %v1704 = vunpack.c.l.b16 %v1689
        %v1705 = vunpack.c.l.b16 %v1690
        %v1706 = vunpack.c.l.b16 %v1691
        %v1707 = vpack.c.b16 %v1704, %v1703
        %v1708 = vpack.c.b16 %v1706, %v1705
        %v1712 = vsel %vm968, %v1687, 0
        %1714 = vmatprep.subr.bf16.mxu0 0
        %1715 = vmatpush1.bf16.msra.mxu0 %v1707
        %1716 = vmatprep.subr.bf16.mxu0 0
        %1717 = vmatpush1.bf16.msra.mxu0 %v1708
        %1718 = vmatprep.subr.bf16.mxu0 0
        %1719 = vmatpush1.bf16.msra.mxu0 0
        %1720 = vmatprep.subr.bf16.mxu0 0
        %1721 = vmatpush1.bf16.msra.mxu0 0
        %1722 = vmatprep.subr.bf16.mxu0 0
        %1723 = vmatpush1.bf16.msra.mxu0 0
        %1724 = vmatprep.subr.bf16.mxu0 0
        %1725 = vmatpush1.bf16.msra.mxu0 0
        %1726 = vmatprep.subr.bf16.mxu0 0
        %1727 = vmatpush1.bf16.msra.mxu0 0
        %1728 = vmatprep.subr.bf16.mxu0 0
        %1729 = vmatpush1.bf16.msra.mxu0 0
        %1730 = vmatprep.subr.bf16.mxu0 0
        %1731 = vmatpush1.bf16.msra.mxu0 0
        %1732 = vmatprep.subr.bf16.mxu0 0
        %1733 = vmatpush1.bf16.msra.mxu0 0
        %1734 = vmatprep.subr.bf16.mxu0 0
        %1735 = vmatpush1.bf16.msra.mxu0 0
        %1736 = vmatprep.subr.bf16.mxu0 0
        %1737 = vmatpush1.bf16.msra.mxu0 0
        %1738 = vmatprep.subr.bf16.mxu0 0
        %1739 = vmatpush1.bf16.msra.mxu0 0
        %1740 = vmatprep.subr.bf16.mxu0 0
        %1741 = vmatpush1.bf16.msra.mxu0 0
        %1742 = vmatprep.subr.bf16.mxu0 0
        %1743 = vmatpush1.bf16.msra.mxu0 0
        %1744 = vmatprep.subr.bf16.mxu0 0
        %1745 = vmatpush1.bf16.msra.mxu0 0
        %1746 = vmatprep.mubr.bf16.mxu0 0
        %1747 = vmatmul.mubr.bf16.gmra.mrb[0].mxu0 %v1712
        %v1748 = vpop.f32.mrb[0].mxu0
        %v1749 = vadd.f32 %v1697, %v1748
        %v1750 = vpop.f32.mrb[0].mxu0
        %v1751 = vpop.f32.mrb[0].mxu0
        %v1752 = vpop.f32.mrb[0].mxu0
        %1753 = vdwg.mxu0
        %v1754 = vld [vmem:[#allocation20] sm:$0xf]
        %v1755 = vld [vmem:[#allocation20 + $0x4] sm:$0xf]
        %v1756 = vld [vmem:[#allocation20 + $0x8] sm:$0xf]
        %v1757 = vld [vmem:[#allocation20 + $0xc] sm:$0xf]
        %v1758 = vld [vmem:[#allocation22] sm:$0x1]
        %v1759 = vpack.c.bf16 %v1682, %v1682
        %v1760 = vpack.c.bf16 %v1749, %v1749
        %v1762 = vlaneseq
        %v1763 = vshrl.u32 %v1762, 7
        %v1764 = vsub.s32 0, %v1763
        %v1765 = vrot.slane %v965, %v1764
        %v1768 = vsel %vm1073, %v1759, 0
        %v1771 = vsel %vm1073, %v1760, 0
        %1773 = vmatprep.subr.bf16.mxu0 0
        %1774 = vmatpush1.bf16.xpose.msra.mxu0 %v1771
        %1775 = vmatprep.subr.bf16.mxu0 0
        %1776 = vmatpush1.bf16.xpose.msra.mxu0 0
        %1777 = vmatprep.subr.bf16.mxu0 0
        %1778 = vmatpush1.bf16.xpose.msra.mxu0 0
        %1779 = vmatprep.subr.bf16.mxu0 0
        %1780 = vmatpush1.bf16.xpose.msra.mxu0 0
        %1781 = vmatprep.subr.bf16.mxu0 0
        %1782 = vmatpush1.bf16.xpose.msra.mxu0 0
        %1783 = vmatprep.subr.bf16.mxu0 0
        %1784 = vmatpush1.bf16.xpose.msra.mxu0 0
        %1785 = vmatprep.subr.bf16.mxu0 0
        %1786 = vmatpush1.bf16.xpose.msra.mxu0 0
        %1787 = vmatprep.subr.bf16.mxu0 0
        %1788 = vmatpush1.bf16.xpose.msra.mxu0 0
        %1789 = vmatprep.subr.bf16.mxu0 0
        %1790 = vmatpush1.bf16.xpose.msra.mxu0 0
        %1791 = vmatprep.subr.bf16.mxu0 0
        %1792 = vmatpush1.bf16.xpose.msra.mxu0 0
        %1793 = vmatprep.subr.bf16.mxu0 0
        %1794 = vmatpush1.bf16.xpose.msra.mxu0 0
        %1795 = vmatprep.subr.bf16.mxu0 0
        %1796 = vmatpush1.bf16.xpose.msra.mxu0 0
        %1797 = vmatprep.subr.bf16.mxu0 0
        %1798 = vmatpush1.bf16.xpose.msra.mxu0 0
        %1799 = vmatprep.subr.bf16.mxu0 0
        %1800 = vmatpush1.bf16.xpose.msra.mxu0 0
        %1801 = vmatprep.subr.bf16.mxu0 0
        %1802 = vmatpush1.bf16.xpose.msra.mxu0 0
        %1803 = vmatprep.subr.bf16.mxu0 0
        %1804 = vmatpush1.bf16.xpose.msra.mxu0 0
        %1805 = vmatprep.mubr.bf16.mxu0 0
        %1806 = vmatmul.mubr.bf16.gmra.mrb[0].mxu0 %v1768
        %v1807 = vpop.f32.mrb[0].mxu0
        %v1808 = vadd.f32 %v1765, %v1807
        %v1809 = vpop.f32.mrb[0].mxu0
        %v1810 = vpop.f32.mrb[0].mxu0
        %v1811 = vpop.f32.mrb[0].mxu0
        %1812 = vdwg.mxu0
        %v1813 = vsel %vm1073, %v1808, -inf
        %1814 = vmax.xlane.f32.xlu0 %v1813
        %v1815 = vpop.xlane.xlu0 %1814
        %v1816 = vsub.f32 %v1808, %v1815
        %v1817 = vmul.f32 %v1816, 1.442695
        %v1818 = vpow.pop %v1817
        %v1819 = vsel %vm1073, %v1818, 0.0
        %1820 = vadd.xlane.f32.xlu0 %v1819
        %v1821 = vpop.xlane.xlu0 %1820
        %v1822 = vrcp.pop %v1821
        %v1823 = vmul.f32 %v1818, %v1822
        %v1824 = vpack.c.bf16 %v1823, %v1823
        %1826 = vrot.lane.b32.xlu0 %v1760, 96
        %v1827 = vpop.permute.xlu0 %1826
        %v1829 = vsel %vm1073, %v1824, 0
        %v1832 = vsel %vm1137, %v1827, 0
        %1834 = vmatprep.subr.bf16.mxu0 0
        %1835 = vmatpush1.bf16.msra.mxu0 %v1832
        %1836 = vmatprep.subr.bf16.mxu0 0
        %1837 = vmatpush1.bf16.msra.mxu0 0
        %1838 = vmatprep.subr.bf16.mxu0 0
        %1839 = vmatpush1.bf16.msra.mxu0 0
        %1840 = vmatprep.subr.bf16.mxu0 0
        %1841 = vmatpush1.bf16.msra.mxu0 0
        %1842 = vmatprep.subr.bf16.mxu0 0
        %1843 = vmatpush1.bf16.msra.mxu0 0
        %1844 = vmatprep.subr.bf16.mxu0 0
        %1845 = vmatpush1.bf16.msra.mxu0 0
        %1846 = vmatprep.subr.bf16.mxu0 0
        %1847 = vmatpush1.bf16.msra.mxu0 0
        %1848 = vmatprep.subr.bf16.mxu0 0
        %1849 = vmatpush1.bf16.msra.mxu0 0
        %1850 = vmatprep.subr.bf16.mxu0 0
        %1851 = vmatpush1.bf16.msra.mxu0 0
        %1852 = vmatprep.subr.bf16.mxu0 0
        %1853 = vmatpush1.bf16.msra.mxu0 0
        %1854 = vmatprep.subr.bf16.mxu0 0
        %1855 = vmatpush1.bf16.msra.mxu0 0
        %1856 = vmatprep.subr.bf16.mxu0 0
        %1857 = vmatpush1.bf16.msra.mxu0 0
        %1858 = vmatprep.subr.bf16.mxu0 0
        %1859 = vmatpush1.bf16.msra.mxu0 0
        %1860 = vmatprep.subr.bf16.mxu0 0
        %1861 = vmatpush1.bf16.msra.mxu0 0
        %1862 = vmatprep.subr.bf16.mxu0 0
        %1863 = vmatpush1.bf16.msra.mxu0 0
        %1864 = vmatprep.subr.bf16.mxu0 0
        %1865 = vmatpush1.bf16.msra.mxu0 0
        %1866 = vmatprep.mubr.bf16.mxu0 0
        %1867 = vmatmul.mubr.bf16.gmra.mrb[0].mxu0 %v1829
        %v1868 = vpop.f32.mrb[0].mxu0
        %v1869 = vadd.f32 0.0, %v1868
        %v1870 = vpop.f32.mrb[0].mxu0
        %v1871 = vpop.f32.mrb[0].mxu0
        %v1872 = vpop.f32.mrb[0].mxu0
        %1873 = vdwg.mxu0
        %1875 = vrot.lane.b32.xlu0 %v1759, 120
        %v1876 = vpop.permute.xlu0 %1875
        %1877 = vrot.lane.b32.xlu0 %v1760, 120
        %v1878 = vpop.permute.xlu0 %1877
        %v1880 = vsel %vm1073, %v1876, 0
        %v1883 = vsel %vm1073, %v1878, 0
        %1885 = vmatprep.subr.bf16.mxu0 0
        %1886 = vmatpush1.bf16.xpose.msra.mxu0 %v1883
        %1887 = vmatprep.subr.bf16.mxu0 0
        %1888 = vmatpush1.bf16.xpose.msra.mxu0 0
        %1889 = vmatprep.subr.bf16.mxu0 0
        %1890 = vmatpush1.bf16.xpose.msra.mxu0 0
        %1891 = vmatprep.subr.bf16.mxu0 0
        %1892 = vmatpush1.bf16.xpose.msra.mxu0 0
        %1893 = vmatprep.subr.bf16.mxu0 0
        %1894 = vmatpush1.bf16.xpose.msra.mxu0 0
        %1895 = vmatprep.subr.bf16.mxu0 0
        %1896 = vmatpush1.bf16.xpose.msra.mxu0 0
        %1897 = vmatprep.subr.bf16.mxu0 0
        %1898 = vmatpush1.bf16.xpose.msra.mxu0 0
        %1899 = vmatprep.subr.bf16.mxu0 0
        %1900 = vmatpush1.bf16.xpose.msra.mxu0 0
        %1901 = vmatprep.subr.bf16.mxu0 0
        %1902 = vmatpush1.bf16.xpose.msra.mxu0 0
        %1903 = vmatprep.subr.bf16.mxu0 0
        %1904 = vmatpush1.bf16.xpose.msra.mxu0 0
        %1905 = vmatprep.subr.bf16.mxu0 0
        %1906 = vmatpush1.bf16.xpose.msra.mxu0 0
        %1907 = vmatprep.subr.bf16.mxu0 0
        %1908 = vmatpush1.bf16.xpose.msra.mxu0 0
        %1909 = vmatprep.subr.bf16.mxu0 0
        %1910 = vmatpush1.bf16.xpose.msra.mxu0 0
        %1911 = vmatprep.subr.bf16.mxu0 0
        %1912 = vmatpush1.bf16.xpose.msra.mxu0 0
        %1913 = vmatprep.subr.bf16.mxu0 0
        %1914 = vmatpush1.bf16.xpose.msra.mxu0 0
        %1915 = vmatprep.subr.bf16.mxu0 0
        %1916 = vmatpush1.bf16.xpose.msra.mxu0 0
        %1917 = vmatprep.mubr.bf16.mxu0 0
        %1918 = vmatmul.mubr.bf16.gmra.mrb[0].mxu0 %v1880
        %v1919 = vpop.f32.mrb[0].mxu0
        %v1920 = vadd.f32 %v1765, %v1919
        %v1921 = vpop.f32.mrb[0].mxu0
        %v1922 = vpop.f32.mrb[0].mxu0
        %v1923 = vpop.f32.mrb[0].mxu0
        %1924 = vdwg.mxu0
        %v1925 = vsel %vm1073, %v1920, -inf
        %1926 = vmax.xlane.f32.xlu0 %v1925
        %v1927 = vpop.xlane.xlu0 %1926
        %v1928 = vsub.f32 %v1920, %v1927
        %v1929 = vmul.f32 %v1928, 1.442695
        %v1930 = vpow.pop %v1929
        %v1931 = vsel %vm1073, %v1930, 0.0
        %1932 = vadd.xlane.f32.xlu0 %v1931
        %v1933 = vpop.xlane.xlu0 %1932
        %v1934 = vrcp.pop %v1933
        %v1935 = vmul.f32 %v1930, %v1934
        %v1936 = vpack.c.bf16 %v1935, %v1935
        %1937 = vrot.lane.b32.xlu0 %v1760, 88
        %v1938 = vpop.permute.xlu0 %1937
        %v1940 = vsel %vm1073, %v1936, 0
        %v1943 = vsel %vm1137, %v1938, 0
        %1945 = vmatprep.subr.bf16.mxu0 0
        %1946 = vmatpush1.bf16.msra.mxu0 %v1943
        %1947 = vmatprep.subr.bf16.mxu0 0
        %1948 = vmatpush1.bf16.msra.mxu0 0
        %1949 = vmatprep.subr.bf16.mxu0 0
        %1950 = vmatpush1.bf16.msra.mxu0 0
        %1951 = vmatprep.subr.bf16.mxu0 0
        %1952 = vmatpush1.bf16.msra.mxu0 0
        %1953 = vmatprep.subr.bf16.mxu0 0
        %1954 = vmatpush1.bf16.msra.mxu0 0
        %1955 = vmatprep.subr.bf16.mxu0 0
        %1956 = vmatpush1.bf16.msra.mxu0 0
        %1957 = vmatprep.subr.bf16.mxu0 0
        %1958 = vmatpush1.bf16.msra.mxu0 0
        %1959 = vmatprep.subr.bf16.mxu0 0
        %1960 = vmatpush1.bf16.msra.mxu0 0
        %1961 = vmatprep.subr.bf16.mxu0 0
        %1962 = vmatpush1.bf16.msra.mxu0 0
        %1963 = vmatprep.subr.bf16.mxu0 0
        %1964 = vmatpush1.bf16.msra.mxu0 0
        %1965 = vmatprep.subr.bf16.mxu0 0
        %1966 = vmatpush1.bf16.msra.mxu0 0
        %1967 = vmatprep.subr.bf16.mxu0 0
        %1968 = vmatpush1.bf16.msra.mxu0 0
        %1969 = vmatprep.subr.bf16.mxu0 0
        %1970 = vmatpush1.bf16.msra.mxu0 0
        %1971 = vmatprep.subr.bf16.mxu0 0
        %1972 = vmatpush1.bf16.msra.mxu0 0
        %1973 = vmatprep.subr.bf16.mxu0 0
        %1974 = vmatpush1.bf16.msra.mxu0 0
        %1975 = vmatprep.subr.bf16.mxu0 0
        %1976 = vmatpush1.bf16.msra.mxu0 0
        %1977 = vmatprep.mubr.bf16.mxu0 0
        %1978 = vmatmul.mubr.bf16.gmra.mrb[0].mxu0 %v1940
        %v1979 = vpop.f32.mrb[0].mxu0
        %v1980 = vadd.f32 0.0, %v1979
        %v1981 = vpop.f32.mrb[0].mxu0
        %v1982 = vpop.f32.mrb[0].mxu0
        %v1983 = vpop.f32.mrb[0].mxu0
        %1984 = vdwg.mxu0
        %1985 = vrot.lane.b32.xlu0 %v1759, 112
        %v1986 = vpop.permute.xlu0 %1985
        %1987 = vrot.lane.b32.xlu0 %v1760, 112
        %v1988 = vpop.permute.xlu0 %1987
        %v1990 = vsel %vm1073, %v1986, 0
        %v1993 = vsel %vm1073, %v1988, 0
        %1995 = vmatprep.subr.bf16.mxu0 0
        %1996 = vmatpush1.bf16.xpose.msra.mxu0 %v1993
        %1997 = vmatprep.subr.bf16.mxu0 0
        %1998 = vmatpush1.bf16.xpose.msra.mxu0 0
        %1999 = vmatprep.subr.bf16.mxu0 0
        %2000 = vmatpush1.bf16.xpose.msra.mxu0 0
        %2001 = vmatprep.subr.bf16.mxu0 0
        %2002 = vmatpush1.bf16.xpose.msra.mxu0 0
        %2003 = vmatprep.subr.bf16.mxu0 0
        %2004 = vmatpush1.bf16.xpose.msra.mxu0 0
        %2005 = vmatprep.subr.bf16.mxu0 0
        %2006 = vmatpush1.bf16.xpose.msra.mxu0 0
        %2007 = vmatprep.subr.bf16.mxu0 0
        %2008 = vmatpush1.bf16.xpose.msra.mxu0 0
        %2009 = vmatprep.subr.bf16.mxu0 0
        %2010 = vmatpush1.bf16.xpose.msra.mxu0 0
        %2011 = vmatprep.subr.bf16.mxu0 0
        %2012 = vmatpush1.bf16.xpose.msra.mxu0 0
        %2013 = vmatprep.subr.bf16.mxu0 0
        %2014 = vmatpush1.bf16.xpose.msra.mxu0 0
        %2015 = vmatprep.subr.bf16.mxu0 0
        %2016 = vmatpush1.bf16.xpose.msra.mxu0 0
        %2017 = vmatprep.subr.bf16.mxu0 0
        %2018 = vmatpush1.bf16.xpose.msra.mxu0 0
        %2019 = vmatprep.subr.bf16.mxu0 0
        %2020 = vmatpush1.bf16.xpose.msra.mxu0 0
        %2021 = vmatprep.subr.bf16.mxu0 0
        %2022 = vmatpush1.bf16.xpose.msra.mxu0 0
        %2023 = vmatprep.subr.bf16.mxu0 0
        %2024 = vmatpush1.bf16.xpose.msra.mxu0 0
        %2025 = vmatprep.subr.bf16.mxu0 0
        %2026 = vmatpush1.bf16.xpose.msra.mxu0 0
        %2027 = vmatprep.mubr.bf16.mxu0 0
        %2028 = vmatmul.mubr.bf16.gmra.mrb[0].mxu0 %v1990
        %v2029 = vpop.f32.mrb[0].mxu0
        %v2030 = vadd.f32 %v1765, %v2029
        %v2031 = vpop.f32.mrb[0].mxu0
        %v2032 = vpop.f32.mrb[0].mxu0
        %v2033 = vpop.f32.mrb[0].mxu0
        %2034 = vdwg.mxu0
        %v2035 = vsel %vm1073, %v2030, -inf
        %2036 = vmax.xlane.f32.xlu0 %v2035
        %v2037 = vpop.xlane.xlu0 %2036
        %v2038 = vsub.f32 %v2030, %v2037
        %v2039 = vmul.f32 %v2038, 1.442695
        %v2040 = vpow.pop %v2039
        %v2041 = vsel %vm1073, %v2040, 0.0
        %2042 = vadd.xlane.f32.xlu0 %v2041
        %v2043 = vpop.xlane.xlu0 %2042
        %v2044 = vrcp.pop %v2043
        %v2045 = vmul.f32 %v2040, %v2044
        %v2046 = vpack.c.bf16 %v2045, %v2045
        %2047 = vrot.lane.b32.xlu0 %v1760, 80
        %v2048 = vpop.permute.xlu0 %2047
        %v2050 = vsel %vm1073, %v2046, 0
        %v2053 = vsel %vm1137, %v2048, 0
        %2055 = vmatprep.subr.bf16.mxu0 0
        %2056 = vmatpush1.bf16.msra.mxu0 %v2053
        %2057 = vmatprep.subr.bf16.mxu0 0
        %2058 = vmatpush1.bf16.msra.mxu0 0
        %2059 = vmatprep.subr.bf16.mxu0 0
        %2060 = vmatpush1.bf16.msra.mxu0 0
        %2061 = vmatprep.subr.bf16.mxu0 0
        %2062 = vmatpush1.bf16.msra.mxu0 0
        %2063 = vmatprep.subr.bf16.mxu0 0
        %2064 = vmatpush1.bf16.msra.mxu0 0
        %2065 = vmatprep.subr.bf16.mxu0 0
        %2066 = vmatpush1.bf16.msra.mxu0 0
        %2067 = vmatprep.subr.bf16.mxu0 0
        %2068 = vmatpush1.bf16.msra.mxu0 0
        %2069 = vmatprep.subr.bf16.mxu0 0
        %2070 = vmatpush1.bf16.msra.mxu0 0
        %2071 = vmatprep.subr.bf16.mxu0 0
        %2072 = vmatpush1.bf16.msra.mxu0 0
        %2073 = vmatprep.subr.bf16.mxu0 0
        %2074 = vmatpush1.bf16.msra.mxu0 0
        %2075 = vmatprep.subr.bf16.mxu0 0
        %2076 = vmatpush1.bf16.msra.mxu0 0
        %2077 = vmatprep.subr.bf16.mxu0 0
        %2078 = vmatpush1.bf16.msra.mxu0 0
        %2079 = vmatprep.subr.bf16.mxu0 0
        %2080 = vmatpush1.bf16.msra.mxu0 0
        %2081 = vmatprep.subr.bf16.mxu0 0
        %2082 = vmatpush1.bf16.msra.mxu0 0
        %2083 = vmatprep.subr.bf16.mxu0 0
        %2084 = vmatpush1.bf16.msra.mxu0 0
        %2085 = vmatprep.subr.bf16.mxu0 0
        %2086 = vmatpush1.bf16.msra.mxu0 0
        %2087 = vmatprep.mubr.bf16.mxu0 0
        %2088 = vmatmul.mubr.bf16.gmra.mrb[0].mxu0 %v2050
        %v2089 = vpop.f32.mrb[0].mxu0
        %v2090 = vadd.f32 0.0, %v2089
        %v2091 = vpop.f32.mrb[0].mxu0
        %v2092 = vpop.f32.mrb[0].mxu0
        %v2093 = vpop.f32.mrb[0].mxu0
        %2094 = vdwg.mxu0
        %2095 = vrot.lane.b32.xlu0 %v1759, 104
        %v2096 = vpop.permute.xlu0 %2095
        %2097 = vrot.lane.b32.xlu0 %v1760, 104
        %v2098 = vpop.permute.xlu0 %2097
        %v2100 = vsel %vm1073, %v2096, 0
        %v2103 = vsel %vm1073, %v2098, 0
        %2105 = vmatprep.subr.bf16.mxu0 0
        %2106 = vmatpush1.bf16.xpose.msra.mxu0 %v2103
        %2107 = vmatprep.subr.bf16.mxu0 0
        %2108 = vmatpush1.bf16.xpose.msra.mxu0 0
        %2109 = vmatprep.subr.bf16.mxu0 0
        %2110 = vmatpush1.bf16.xpose.msra.mxu0 0
        %2111 = vmatprep.subr.bf16.mxu0 0
        %2112 = vmatpush1.bf16.xpose.msra.mxu0 0
        %2113 = vmatprep.subr.bf16.mxu0 0
        %2114 = vmatpush1.bf16.xpose.msra.mxu0 0
        %2115 = vmatprep.subr.bf16.mxu0 0
        %2116 = vmatpush1.bf16.xpose.msra.mxu0 0
        %2117 = vmatprep.subr.bf16.mxu0 0
        %2118 = vmatpush1.bf16.xpose.msra.mxu0 0
        %2119 = vmatprep.subr.bf16.mxu0 0
        %2120 = vmatpush1.bf16.xpose.msra.mxu0 0
        %2121 = vmatprep.subr.bf16.mxu0 0
        %2122 = vmatpush1.bf16.xpose.msra.mxu0 0
        %2123 = vmatprep.subr.bf16.mxu0 0
        %2124 = vmatpush1.bf16.xpose.msra.mxu0 0
        %2125 = vmatprep.subr.bf16.mxu0 0
        %2126 = vmatpush1.bf16.xpose.msra.mxu0 0
        %2127 = vmatprep.subr.bf16.mxu0 0
        %2128 = vmatpush1.bf16.xpose.msra.mxu0 0
        %2129 = vmatprep.subr.bf16.mxu0 0
        %2130 = vmatpush1.bf16.xpose.msra.mxu0 0
        %2131 = vmatprep.subr.bf16.mxu0 0
        %2132 = vmatpush1.bf16.xpose.msra.mxu0 0
        %2133 = vmatprep.subr.bf16.mxu0 0
        %2134 = vmatpush1.bf16.xpose.msra.mxu0 0
        %2135 = vmatprep.subr.bf16.mxu0 0
        %2136 = vmatpush1.bf16.xpose.msra.mxu0 0
        %2137 = vmatprep.mubr.bf16.mxu0 0
        %2138 = vmatmul.mubr.bf16.gmra.mrb[0].mxu0 %v2100
        %v2139 = vpop.f32.mrb[0].mxu0
        %v2140 = vadd.f32 %v1765, %v2139
        %v2141 = vpop.f32.mrb[0].mxu0
        %v2142 = vpop.f32.mrb[0].mxu0
        %v2143 = vpop.f32.mrb[0].mxu0
        %2144 = vdwg.mxu0
        %v2145 = vsel %vm1073, %v2140, -inf
        %2146 = vmax.xlane.f32.xlu0 %v2145
        %v2147 = vpop.xlane.xlu0 %2146
        %v2148 = vsub.f32 %v2140, %v2147
        %v2149 = vmul.f32 %v2148, 1.442695
        %v2150 = vpow.pop %v2149
        %v2151 = vsel %vm1073, %v2150, 0.0
        %2152 = vadd.xlane.f32.xlu0 %v2151
        %v2153 = vpop.xlane.xlu0 %2152
        %v2154 = vrcp.pop %v2153
        %v2155 = vmul.f32 %v2150, %v2154
        %v2156 = vpack.c.bf16 %v2155, %v2155
        %2157 = vrot.lane.b32.xlu0 %v1760, 72
        %v2158 = vpop.permute.xlu0 %2157
        %v2160 = vsel %vm1073, %v2156, 0
        %v2163 = vsel %vm1137, %v2158, 0
        %2165 = vmatprep.subr.bf16.mxu0 0
        %2166 = vmatpush1.bf16.msra.mxu0 %v2163
        %2167 = vmatprep.subr.bf16.mxu0 0
        %2168 = vmatpush1.bf16.msra.mxu0 0
        %2169 = vmatprep.subr.bf16.mxu0 0
        %2170 = vmatpush1.bf16.msra.mxu0 0
        %2171 = vmatprep.subr.bf16.mxu0 0
        %2172 = vmatpush1.bf16.msra.mxu0 0
        %2173 = vmatprep.subr.bf16.mxu0 0
        %2174 = vmatpush1.bf16.msra.mxu0 0
        %2175 = vmatprep.subr.bf16.mxu0 0
        %2176 = vmatpush1.bf16.msra.mxu0 0
        %2177 = vmatprep.subr.bf16.mxu0 0
        %2178 = vmatpush1.bf16.msra.mxu0 0
        %2179 = vmatprep.subr.bf16.mxu0 0
        %2180 = vmatpush1.bf16.msra.mxu0 0
        %2181 = vmatprep.subr.bf16.mxu0 0
        %2182 = vmatpush1.bf16.msra.mxu0 0
        %2183 = vmatprep.subr.bf16.mxu0 0
        %2184 = vmatpush1.bf16.msra.mxu0 0
        %2185 = vmatprep.subr.bf16.mxu0 0
        %2186 = vmatpush1.bf16.msra.mxu0 0
        %2187 = vmatprep.subr.bf16.mxu0 0
        %2188 = vmatpush1.bf16.msra.mxu0 0
        %2189 = vmatprep.subr.bf16.mxu0 0
        %2190 = vmatpush1.bf16.msra.mxu0 0
        %2191 = vmatprep.subr.bf16.mxu0 0
        %2192 = vmatpush1.bf16.msra.mxu0 0
        %2193 = vmatprep.subr.bf16.mxu0 0
        %2194 = vmatpush1.bf16.msra.mxu0 0
        %2195 = vmatprep.subr.bf16.mxu0 0
        %2196 = vmatpush1.bf16.msra.mxu0 0
        %2197 = vmatprep.mubr.bf16.mxu0 0
        %2198 = vmatmul.mubr.bf16.gmra.mrb[0].mxu0 %v2160
        %v2199 = vpop.f32.mrb[0].mxu0
        %v2200 = vadd.f32 0.0, %v2199
        %v2201 = vpop.f32.mrb[0].mxu0
        %v2202 = vpop.f32.mrb[0].mxu0
        %v2203 = vpop.f32.mrb[0].mxu0
        %2204 = vdwg.mxu0
        %2206 = vrot.lane.b32.xlu0 %v1980, 8
        %v2207 = vpop.permute.xlu0 %2206
        %2210 = vrot.lane.b32.xlu0 %v2090, 16
        %v2211 = vpop.permute.xlu0 %2210
        %2214 = vrot.lane.b32.xlu0 %v2200, 24
        %v2215 = vpop.permute.xlu0 %2214
        %v2217 = vsel %vm1073, %v1869, %v2207
        %v2218 = vsel %vm1524, %v2217, %v2211
        %v2219 = vsel %vm1526, %v2218, %v2215
        %v2220 = vpack.c.bf16 %v2219, %v2219
        %v2222 = vlaneseq
        %v2223 = vshrl.u32 %v2222, 7
        %v2224 = vsub.s32 0, %v2223
        %v2225 = vrot.slane %v1758, %v2224
        %v2231 = vunpack.c.l.b16 %v1754
        %v2232 = vunpack.c.l.b16 %v1755
        %v2233 = vunpack.c.l.b16 %v1756
        %v2234 = vunpack.c.l.b16 %v1757
        %v2235 = vpack.c.b16 %v2232, %v2231
        %v2236 = vpack.c.b16 %v2234, %v2233
        %v2240 = vsel %vm968, %v2220, 0
        %2242 = vmatprep.subr.bf16.mxu0 0
        %2243 = vmatpush1.bf16.msra.mxu0 %v2235
        %2244 = vmatprep.subr.bf16.mxu0 0
        %2245 = vmatpush1.bf16.msra.mxu0 %v2236
        %2246 = vmatprep.subr.bf16.mxu0 0
        %2247 = vmatpush1.bf16.msra.mxu0 0
        %2248 = vmatprep.subr.bf16.mxu0 0
        %2249 = vmatpush1.bf16.msra.mxu0 0
        %2250 = vmatprep.subr.bf16.mxu0 0
        %2251 = vmatpush1.bf16.msra.mxu0 0
        %2252 = vmatprep.subr.bf16.mxu0 0
        %2253 = vmatpush1.bf16.msra.mxu0 0
        %2254 = vmatprep.subr.bf16.mxu0 0
        %2255 = vmatpush1.bf16.msra.mxu0 0
        %2256 = vmatprep.subr.bf16.mxu0 0
        %2257 = vmatpush1.bf16.msra.mxu0 0
        %2258 = vmatprep.subr.bf16.mxu0 0
        %2259 = vmatpush1.bf16.msra.mxu0 0
        %2260 = vmatprep.subr.bf16.mxu0 0
        %2261 = vmatpush1.bf16.msra.mxu0 0
        %2262 = vmatprep.subr.bf16.mxu0 0
        %2263 = vmatpush1.bf16.msra.mxu0 0
        %2264 = vmatprep.subr.bf16.mxu0 0
        %2265 = vmatpush1.bf16.msra.mxu0 0
        %2266 = vmatprep.subr.bf16.mxu0 0
        %2267 = vmatpush1.bf16.msra.mxu0 0
        %2268 = vmatprep.subr.bf16.mxu0 0
        %2269 = vmatpush1.bf16.msra.mxu0 0
        %2270 = vmatprep.subr.bf16.mxu0 0
        %2271 = vmatpush1.bf16.msra.mxu0 0
        %2272 = vmatprep.subr.bf16.mxu0 0
        %2273 = vmatpush1.bf16.msra.mxu0 0
        %2274 = vmatprep.mubr.bf16.mxu0 0
        %2275 = vmatmul.mubr.bf16.gmra.mrb[0].mxu0 %v2240
        %v2276 = vpop.f32.mrb[0].mxu0
        %v2277 = vadd.f32 %v2225, %v2276
        %v2278 = vpop.f32.mrb[0].mxu0
        %v2279 = vpop.f32.mrb[0].mxu0
        %v2280 = vpop.f32.mrb[0].mxu0
        %2281 = vdwg.mxu0
        %v2282 = vadd.f32 %v2277, %v1590
        %v2283 = vld [vmem:[%s18] sm:$0x1]
        %v2284 = vld [vmem:[%s19] sm:$0x1]
        %v2285 = vsel %vm968, %v2282, 0.0
        %2286 = vadd.xlane.f32.xlu0 %v2285
        %v2287 = vpop.xlane.xlu0 %2286
        %v2288 = vmul.f32 %v2287, %v972
        %v2289 = vsub.f32 %v2282, %v2288
        %v2290 = vmul.f32 %v2289, %v2289
        %v2291 = vsel %vm968, %v2290, 0.0
        %2292 = vadd.xlane.f32.xlu0 %v2291
        %v2293 = vpop.xlane.xlu0 %2292
        %v2294 = vmul.f32 %v2293, %v972
        %v2295 = vadd.f32 %v2294, 1e-06
        %v2296 = vrsqrt.pop %v2295
        %v2297 = vmul.f32 %v2289, %v2296
        %v2299 = vlaneseq
        %v2300 = vshrl.u32 %v2299, 7
        %v2301 = vsub.s32 0, %v2300
        %v2302 = vrot.slane %v2283, %v2301
        %v2304 = vmul.f32 %v2297, %v2302
        %v2306 = vlaneseq
        %v2307 = vshrl.u32 %v2306, 7
        %v2308 = vsub.s32 0, %v2307
        %v2309 = vrot.slane %v2284, %v2308
        %v2311 = vadd.f32 %v2304, %v2309
        %v2312 = vpack.c.bf16 %v2311, %v2311
        %v2313 = vld [vmem:[%s20] sm:$0xf]
        %v2314 = vld [vmem:[%s20 + $0x4] sm:$0xf]
        %v2315 = vld [vmem:[%s20 + $0x8] sm:$0xf]
        %v2316 = vld [vmem:[%s20 + $0xc] sm:$0xf]
        %v2317 = vld [vmem:[%s21] sm:$0x1]
        %v2319 = vlaneseq
        %v2320 = vshrl.u32 %v2319, 7
        %v2321 = vsub.s32 0, %v2320
        %v2322 = vrot.slane %v2317, %v2321
        %v2328 = vunpack.c.l.b16 %v2313
        %v2329 = vunpack.c.l.b16 %v2314
        %v2330 = vunpack.c.l.b16 %v2315
        %v2331 = vunpack.c.l.b16 %v2316
        %v2332 = vpack.c.b16 %v2329, %v2328
        %v2333 = vpack.c.b16 %v2331, %v2330
        %v2337 = vsel %vm968, %v2312, 0
        %2339 = vmatprep.subr.bf16.mxu0 0
        %2340 = vmatpush1.bf16.msra.mxu0 %v2332
        %2341 = vmatprep.subr.bf16.mxu0 0
        %2342 = vmatpush1.bf16.msra.mxu0 %v2333
        %2343 = vmatprep.subr.bf16.mxu0 0
        %2344 = vmatpush1.bf16.msra.mxu0 0
        %2345 = vmatprep.subr.bf16.mxu0 0
        %2346 = vmatpush1.bf16.msra.mxu0 0
        %2347 = vmatprep.subr.bf16.mxu0 0
        %2348 = vmatpush1.bf16.msra.mxu0 0
        %2349 = vmatprep.subr.bf16.mxu0 0
        %2350 = vmatpush1.bf16.msra.mxu0 0
        %2351 = vmatprep.subr.bf16.mxu0 0
        %2352 = vmatpush1.bf16.msra.mxu0 0
        %2353 = vmatprep.subr.bf16.mxu0 0
        %2354 = vmatpush1.bf16.msra.mxu0 0
        %2355 = vmatprep.subr.bf16.mxu0 0
        %2356 = vmatpush1.bf16.msra.mxu0 0
        %2357 = vmatprep.subr.bf16.mxu0 0
        %2358 = vmatpush1.bf16.msra.mxu0 0
        %2359 = vmatprep.subr.bf16.mxu0 0
        %2360 = vmatpush1.bf16.msra.mxu0 0
        %2361 = vmatprep.subr.bf16.mxu0 0
        %2362 = vmatpush1.bf16.msra.mxu0 0
        %2363 = vmatprep.subr.bf16.mxu0 0
        %2364 = vmatpush1.bf16.msra.mxu0 0
        %2365 = vmatprep.subr.bf16.mxu0 0
        %2366 = vmatpush1.bf16.msra.mxu0 0
        %2367 = vmatprep.subr.bf16.mxu0 0
        %2368 = vmatpush1.bf16.msra.mxu0 0
        %2369 = vmatprep.subr.bf16.mxu0 0
        %2370 = vmatpush1.bf16.msra.mxu0 0
        %2371 = vmatprep.mubr.bf16.mxu0 0
        %2372 = vmatmul.mubr.bf16.gmra.mrb[0].mxu0 %v2337
        %v2373 = vpop.f32.mrb[0].mxu0
        %v2374 = vadd.f32 %v2322, %v2373
        %v2375 = vpop.f32.mrb[0].mxu0
        %v2376 = vpop.f32.mrb[0].mxu0
        %v2377 = vpop.f32.mrb[0].mxu0
        %2378 = vdwg.mxu0
        %v2379 = vmul.f32 %v2374, 0.5
        %v2380 = vmul.f32 %v2374, 0.044715
        %v2381 = vmul.f32 %v2380, %v2374
        %v2382 = vmul.f32 %v2381, %v2374
        %v2383 = vadd.f32 %v2374, %v2382
        %v2384 = vmul.f32 %v2383, 0.7978846
        %v2385 = vtanh.pop %v2384
        %v2386 = vadd.f32 %v2385, 1.0
        %v2387 = vmul.f32 %v2379, %v2386
        %v2388 = vpack.c.bf16 %v2387, %v2387
        %v2389 = vld [vmem:[%s22] sm:$0xf]
        %v2390 = vld [vmem:[%s22 + $0x4] sm:$0xf]
        %v2391 = vld [vmem:[%s22 + $0x8] sm:$0xf]
        %v2392 = vld [vmem:[%s22 + $0xc] sm:$0xf]
        %v2393 = vld [vmem:[%s22 + $0x10] sm:$0xf]
        %v2394 = vld [vmem:[%s22 + $0x14] sm:$0xf]
        %v2395 = vld [vmem:[%s22 + $0x18] sm:$0xf]
        %v2396 = vld [vmem:[%s22 + $0x1c] sm:$0xf]
        %v2397 = vld [vmem:[%s23] sm:$0x1]
        %v2399 = vlaneseq
        %v2400 = vshrl.u32 %v2399, 7
        %v2401 = vsub.s32 0, %v2400
        %v2402 = vrot.slane %v2397, %v2401
        %v2412 = vunpack.c.l.b16 %v2389
        %v2413 = vunpack.c.l.b16 %v2390
        %v2414 = vunpack.c.l.b16 %v2391
        %v2415 = vunpack.c.l.b16 %v2392
        %v2416 = vunpack.c.l.b16 %v2393
        %v2417 = vunpack.c.l.b16 %v2394
        %v2418 = vunpack.c.l.b16 %v2395
        %v2419 = vunpack.c.l.b16 %v2396
        %v2420 = vpack.c.b16 %v2413, %v2412
        %v2421 = vpack.c.b16 %v2415, %v2414
        %v2422 = vpack.c.b16 %v2417, %v2416
        %v2423 = vpack.c.b16 %v2419, %v2418
        %vm2428 = vcmask 523264
        %v2430 = vsel %vm2428, %v2388, 0
        %2432 = vmatprep.subr.bf16.mxu0 0
        %2433 = vmatpush1.bf16.msra.mxu0 %v2420
        %2434 = vmatprep.subr.bf16.mxu0 0
        %2435 = vmatpush1.bf16.msra.mxu0 %v2421
        %2436 = vmatprep.subr.bf16.mxu0 0
        %2437 = vmatpush1.bf16.msra.mxu0 %v2422
        %2438 = vmatprep.subr.bf16.mxu0 0
        %2439 = vmatpush1.bf16.msra.mxu0 %v2423
        %2440 = vmatprep.subr.bf16.mxu0 0
        %2441 = vmatpush1.bf16.msra.mxu0 0
        %2442 = vmatprep.subr.bf16.mxu0 0
        %2443 = vmatpush1.bf16.msra.mxu0 0
        %2444 = vmatprep.subr.bf16.mxu0 0
        %2445 = vmatpush1.bf16.msra.mxu0 0
        %2446 = vmatprep.subr.bf16.mxu0 0
        %2447 = vmatpush1.bf16.msra.mxu0 0
        %2448 = vmatprep.subr.bf16.mxu0 0
        %2449 = vmatpush1.bf16.msra.mxu0 0
        %2450 = vmatprep.subr.bf16.mxu0 0
        %2451 = vmatpush1.bf16.msra.mxu0 0
        %2452 = vmatprep.subr.bf16.mxu0 0
        %2453 = vmatpush1.bf16.msra.mxu0 0
        %2454 = vmatprep.subr.bf16.mxu0 0
        %2455 = vmatpush1.bf16.msra.mxu0 0
        %2456 = vmatprep.subr.bf16.mxu0 0
        %2457 = vmatpush1.bf16.msra.mxu0 0
        %2458 = vmatprep.subr.bf16.mxu0 0
        %2459 = vmatpush1.bf16.msra.mxu0 0
        %2460 = vmatprep.subr.bf16.mxu0 0
        %2461 = vmatpush1.bf16.msra.mxu0 0
        %2462 = vmatprep.subr.bf16.mxu0 0
        %2463 = vmatpush1.bf16.msra.mxu0 0
        %2464 = vmatprep.mubr.bf16.mxu0 0
        %2465 = vmatmul.mubr.bf16.gmra.mrb[0].mxu0 %v2430
        %v2466 = vpop.f32.mrb[0].mxu0
        %v2467 = vadd.f32 %v2402, %v2466
        %v2468 = vpop.f32.mrb[0].mxu0
        %v2469 = vpop.f32.mrb[0].mxu0
        %v2470 = vpop.f32.mrb[0].mxu0
        %2471 = vdwg.mxu0
        %v2472 = vadd.f32 %v2467, %v2282
        %2473 = vst.msk [vmem:[%s944] sm:$0xff] %vm968, %v2472
        %s2474 = sand.u32 %s579, 1
        %s2475 = scalar_lea.sflag [#allocation4], %s2474
        %s2476 = sand.u32 %s579, 1
        %s2477 = smul.addr %s2476, 8
        %s2478 = scalar_lea.vmem [#allocation23], %s2477
        // Predicated region
        $region169: #{tpu_custom_call.1} parent=115 // pred_check
          %p2479 = pneg %p589
        $region170: #{tpu_custom_call.1} parent=115 // pred_check_branch
          %2481 = sbr.rel (%p2479) target = $region172
        $region171: #{tpu_custom_call.1} parent=115 // pred_region
          %s2483 = ssub.s32 128, 128
          %2484 = vsyncadd %s2475, %s2483
          %s2485 = smul.addr %s47, 128
          %s2486 = scalar_lea.hbm %s24, %s2485
          %s2488 = sshll.u32 %s2478, 4
          %s2489 = int_to_ptr.vmem [resolvable:$true] %s2488
          %2491 = dma.vmem_to_hbm [thread:$0]  %s2489, 128, %s2486, %s2475
        $region172: #{tpu_custom_call.1} parent=115 // pred_fallthru
          _
      $region116: #{tpu_custom_call.1} parent=5 // pred_fallthru
        _
      %p2492 = scmp.le.s32.totalorder 2, %s42
      // Predicated region
      $region173: #{tpu_custom_call.1} parent=5 // pred_check
        %p2493 = pneg %p2492
      $region174: #{tpu_custom_call.1} parent=5 // pred_check_branch
        %2495 = sbr.rel (%p2493) target = $region176
      $region175: #{tpu_custom_call.1} parent=5 // pred_region
        %s2496 = ssub.s32 %s42, 2
        // Predicated region
        $region177: #{tpu_custom_call.1} parent=175 // pred_check
          %p2497 = pneg %p595
        $region178: #{tpu_custom_call.1} parent=175 // pred_check_branch
          %2499 = sbr.rel (%p2497) target = $region180
        $region179: #{tpu_custom_call.1} parent=175 // pred_region
          %s2500 = sand.u32 %s580, 1
          %s2501 = scalar_lea.sflag [#allocation4], %s2500
          %s2502 = sand.u32 %s580, 1
          %s2503 = smul.addr %s2502, 8
          %s2504 = scalar_lea.vmem [#allocation23], %s2503
          %2505 = dma.done %s2501, 128
        $region180: #{tpu_custom_call.1} parent=175 // pred_fallthru
          _
      $region176: #{tpu_custom_call.1} parent=5 // pred_fallthru
        _
    $region6: #{tpu_custom_call.1} parent=1 // loop_footer
      %s46 = sadd.s32 1, %s42
    $region7: #{tpu_custom_call.1} parent=1 // loop_footer_branch
      %41 = sbr.rel target = $region3
    $region8: #{tpu_custom_call.1} parent=1 // loop_exit
      _
    %2506 = vsyncpa [#allocation3], 1
    %s2507 = scalar_lea.sflag [#allocation3], 1
    %2508 = vsyncpa %s2507, 1
    %2509 = vsyncpa [#allocation6], 1
    %2510 = vsyncpa [#allocation9], 1
    %2511 = vsyncpa [#allocation12], 1
    %2512 = vsyncpa [#allocation15], 1
    %2513 = vsyncpa [#allocation18], 1
    %2514 = vsyncpa [#allocation21], 1
    %2515 = vsyncpa [#allocation4], 1
    %s2516 = scalar_lea.sflag [#allocation4], 1
    %2517 = vsyncpa %s2516, 1

</llo_original>
